<compile_context>
chip_gen: v7x
topology: tpu7x:2x2x1
jax: 0.10.0
libtpu: 0.0.40
codegen_flags: <defaults>
</compile_context>

<pallas_src>
import functools

import numpy as np
import jax
import jax.numpy as jnp
from jax.experimental import pallas as pl
from jax.experimental.pallas import tpu as pltpu

N_QUBITS = 4
N_QLAYERS = 1
N_GATES = 4                  # forget, input, update, output
DIM = 2 ** N_QUBITS          # 16

# ----------------------------------------------------------------------------
# Host-side helpers: exact statevector machinery for the quantum sub-circuits.
# ----------------------------------------------------------------------------

def _rx(theta):
    c = np.cos(theta / 2.0)
    s = np.sin(theta / 2.0)
    return np.array([[c, -1j * s], [-1j * s, c]], dtype=np.complex128)


def _cnot(n, control, target):
    dim = 2 ** n
    m = np.zeros((dim, dim), dtype=np.complex128)
    for b in range(dim):
        bits = [(b >> (n - 1 - i)) & 1 for i in range(n)]
        if bits[control] == 1:
            bits[target] ^= 1
        b2 = 0
        for i, bit in enumerate(bits):
            b2 |= bit << (n - 1 - i)
        m[b2, b] = 1.0
    return m


def basic_entangler_unitary(weights):
    """16x16 unitary of BasicEntanglerLayers (RX rotations + CNOT ring per layer)."""
    weights = np.asarray(weights, dtype=np.float64)
    n = weights.shape[1]
    u = np.eye(2 ** n, dtype=np.complex128)
    for l in range(weights.shape[0]):
        r = np.array([[1.0 + 0j]])
        for i in range(n):
            r = np.kron(r, _rx(weights[l, i]))
        u = r @ u
        for i in range(n):
            u = _cnot(n, i, (i + 1) % n) @ u
    return u


# Constant lookup tables (wire 0 is the most-significant bit, PennyLane order).
_BITS = np.array(
    [[(b >> (N_QUBITS - 1 - i)) & 1 for b in range(DIM)] for i in range(N_QUBITS)],
    dtype=np.float32,
)                                                   # (4, 16)
_POPC = _BITS.sum(axis=0).astype(np.int32)          # (16,)
_SIGN_R = np.where(_POPC % 4 == 0, 1.0,
                   np.where(_POPC % 4 == 2, -1.0, 0.0)).astype(np.float64)  # Re[(-i)^p]
_SIGN_I = np.where(_POPC % 4 == 1, -1.0,
                   np.where(_POPC % 4 == 3, 1.0, 0.0)).astype(np.float64)   # Im[(-i)^p]
_ZSIGNS = (1.0 - 2.0 * _BITS.T).astype(np.float32)  # (16, 4)  PauliZ eigenvalues


# ----------------------------------------------------------------------------
# Pallas kernel: one grid step == one chunk of Tt LSTM time steps.
# h/c carried across chunks in VMEM scratch.
# ----------------------------------------------------------------------------

def _qlstm_kernel(
    xp_ref,       # (Tt, B, 4)   pre-projected x (x @ W_in_x^T + b_in)
    win_h_ref,    # (H, 4)       clayer_in columns acting on h, pre-transposed
    a_frfi_ref,   # (16, 128)    [Re | Im] stacked entangler mats, signs folded
    m_blk_ref,    # (64, 4H)     block-diag( zsigns @ W_out^T ) per gate
    b_all_ref,    # (1, 4H)      b_out tiled for the 4 gates
    out_ref,      # (Tt, B, H)
    hfin_ref,     # (B, H)
    cfin_ref,     # (B, H)
    h_sc,         # VMEM (B, H)
    c_sc,         # VMEM (B, H)
    *,
    t_total,      # static: number of VALID time steps (<= n_chunks * Tt)
    needs_mask,   # static: whether the padded tail needs state-freeze masking
    unroll,       # static: inner-loop unroll factor
):
    chunk = pl.program_id(0)

    @pl.when(chunk == 0)
    def _():
        h_sc[...] = jnp.zeros_like(h_sc)
        c_sc[...] = jnp.zeros_like(c_sc)

    tt = xp_ref.shape[0]
    hdim = h_sc.shape[1]
    gdim = N_GATES * DIM  # 64

    # Hoist constant loads out of the recurrence loop.
    win_h = win_h_ref[...]
    a_frfi = a_frfi_ref[...]
    m_blk = m_blk_ref[...]
    b_all = b_all_ref[...]

    # Per-qubit basis-state bit selectors built from iota (no streamed tables).
    basis = jax.lax.broadcasted_iota(jnp.int32, (1, DIM), 1)       # (1, 16)
    sin_sel = [
        (jnp.bitwise_and(basis, 1 << (N_QUBITS - 1 - q)) > 0).astype(jnp.float32)
        for q in range(N_QUBITS)
    ]
    cos_sel = [1.0 - s for s in sin_sel]

    def step(s, carry):
        h, c = carry

        # clayer_in: y = h @ W_h + (x @ W_x + b_in)   -- x part precomputed.
        y = jnp.dot(h, win_h, preferred_element_type=jnp.float32) + xp_ref[s]  # (B, 4)

        # Exact 4-qubit product-state magnitudes of AngleEmbedding(RX(y)) |0000>.
        half = 0.5 * y
        ch = jnp.cos(half)                                   # (B, 4)
        sh = jnp.sin(half)
        terms = [
            ch[:, q:q + 1] * cos_sel[q] + sh[:, q:q + 1] * sin_sel[q]
            for q in range(N_QUBITS)
        ]
        mag = (terms[0] * terms[1]) * (terms[2] * terms[3])  # (B, 16)

        # All four gates' entangler unitaries (Re and Im paths) in ONE 128-lane
        # matmul; (-i)^popcount signs already folded into a_frfi.
        frfi = jnp.dot(mag, a_frfi, preferred_element_type=jnp.float32)  # (B, 128)
        sq = frfi * frfi
        prob = sq[:, :gdim] + sq[:, gdim:]                               # (B, 64)

        # Measurement <Z_w> and clayer_out for all 4 gates in one matmul.
        z = jnp.dot(prob, m_blk, preferred_element_type=jnp.float32) + b_all  # (B, 4H)

        zs = jax.nn.sigmoid(z)                               # one EUP pass
        f_t = zs[:, 0:hdim]
        i_t = zs[:, hdim:2 * hdim]
        o_t = zs[:, 3 * hdim:4 * hdim]
        g_t = jnp.tanh(z[:, 2 * hdim:3 * hdim])

        c_new = f_t * c + i_t * g_t
        h_new = o_t * jnp.tanh(c_new)

        if needs_mask:
            # Freeze the state on padded tail steps (t >= t_total).
            keep = ((chunk * tt + s) < t_total).astype(jnp.float32)
            h_new = keep * h_new + (1.0 - keep) * h
            c_new = keep * c_new + (1.0 - keep) * c

        out_ref[s] = h_new
        return h_new, c_new

    h_last, c_last = jax.lax.fori_loop(
        0, tt, step, (h_sc[...], c_sc[...]), unroll=unroll
    )

    h_sc[...] = h_last
    c_sc[...] = c_last

    @pl.when(chunk == pl.num_programs(0) - 1)
    def _():
        hfin_ref[...] = h_last
        cfin_ref[...] = c_last


# ----------------------------------------------------------------------------
# Wrapper
# ----------------------------------------------------------------------------

def _tile_bytes_f32(shape):
    """Bytes of an f32 array padded to (8, 128) tiles in its last two dims."""
    shape = tuple(shape)
    if len(shape) == 1:
        shape = (1,) + shape
    lead = int(np.prod(shape[:-2])) if len(shape) > 2 else 1
    r = -(-shape[-2] // 8) * 8
    c = -(-shape[-1] // 128) * 128
    return lead * r * c * 4


def qlstm_forward(x, params, *, time_chunk=128):
    """x: (B, T, F) float32. Returns (outputs (B,T,H), (h (B,H), c (B,H)))."""
    B, T, F = x.shape
    H = params["w_out"].shape[0]
    four_h = N_GATES * H
    gdim = N_GATES * DIM

    # --- time chunking (pad-to-multiple; awkward T never degrades Tt) ---
    Tt = int(min(time_chunk, T))
    n_chunks = -(-T // Tt)            # ceil
    T_pad = n_chunks * Tt
    needs_mask = (T_pad != T)
    unroll = int(min(Tt, 8))          # partial unroll of the inner recurrence

    # --- clayer_in split (cat(h, x) order: first H cols act on h) ---
    w_in = np.asarray(params["w_in"], np.float32)               # (4, H+F)
    win_h = jnp.asarray(w_in[:, :H].T)                          # (H, 4)
    win_x = jnp.asarray(w_in[:, H:].T)                          # (F, 4)
    b_in = jnp.asarray(
        np.asarray(params["b_in"], np.float32).reshape(1, 1, N_QUBITS))

    # --- hoist the x projection out of the recurrence (one big XLA matmul) ---
    x_tbf = jnp.transpose(x, (1, 0, 2)).astype(jnp.float32)     # (T, B, F)
    x_proj = jnp.einsum("tbf,fq->tbq", x_tbf, win_x,
                        precision=jax.lax.Precision.HIGHEST) + b_in  # (T, B, 4)
    if needs_mask:
        x_proj = jnp.pad(x_proj, ((0, T_pad - T), (0, 0), (0, 0)))

    # --- fold sign tables into stacked [Re | Im] entangler matrices (16,128) ---
    a_frfi_np = np.zeros((DIM, 2 * gdim), np.float64)
    for g in range(N_GATES):
        u = basic_entangler_unitary(np.asarray(params["vqc_w"][g]))
        urT = u.real.T
        uiT = u.imag.T
        a_frfi_np[:, g * DIM:(g + 1) * DIM] = (
            _SIGN_R[:, None] * urT - _SIGN_I[:, None] * uiT)
        a_frfi_np[:, gdim + g * DIM:gdim + (g + 1) * DIM] = (
            _SIGN_R[:, None] * uiT + _SIGN_I[:, None] * urT)
    a_frfi = jnp.asarray(a_frfi_np.astype(np.float32))          # (16, 128)

    # --- fold zsigns @ W_out^T into block-diagonal (64, 4H) + tiled bias ---
    w_out_np = np.asarray(params["w_out"], np.float64)          # (H, 4)
    m_g = _ZSIGNS.astype(np.float64) @ w_out_np.T               # (16, H)
    m_blk_np = np.zeros((gdim, four_h), np.float64)
    for g in range(N_GATES):
        m_blk_np[g * DIM:(g + 1) * DIM, g * H:(g + 1) * H] = m_g
    m_blk = jnp.asarray(m_blk_np.astype(np.float32))            # (64, 4H)
    b_all = jnp.asarray(
        np.tile(np.asarray(params["b_out"], np.float32).reshape(1, H), (1, N_GATES)))

    # --- explicit VMEM budget (double-buffered blocks + constants + scratch) ---
    needed = 2 * (
        _tile_bytes_f32((Tt, B, N_QUBITS))      # x_proj block
        + _tile_bytes_f32((Tt, B, H))           # out block
        + _tile_bytes_f32((H, N_QUBITS))
        + _tile_bytes_f32((DIM, 2 * gdim))
        + _tile_bytes_f32((gdim, four_h))
        + _tile_bytes_f32((1, four_h))
        + 2 * _tile_bytes_f32((B, H))           # hfin/cfin blocks
    ) + 2 * _tile_bytes_f32((B, H))             # h/c scratch
    vmem_limit = int(min(max(2 * needed + (8 << 20), 16 << 20), 60 << 20))

    grid_spec = pltpu.PrefetchScalarGridSpec(
        num_scalar_prefetch=0,
        grid=(n_chunks,),
        in_specs=[
            pl.BlockSpec((Tt, B, N_QUBITS), lambda c: (c, 0, 0)),
            pl.BlockSpec((H, N_QUBITS), lambda c: (0, 0)),
            pl.BlockSpec((DIM, 2 * gdim), lambda c: (0, 0)),
            pl.BlockSpec((gdim, four_h), lambda c: (0, 0)),
            pl.BlockSpec((1, four_h), lambda c: (0, 0)),
        ],
        out_specs=[
            pl.BlockSpec((Tt, B, H), lambda c: (c, 0, 0)),
            pl.BlockSpec((B, H), lambda c: (0, 0)),
            pl.BlockSpec((B, H), lambda c: (0, 0)),
        ],
        scratch_shapes=[
            pltpu.VMEM((B, H), jnp.float32),
            pltpu.VMEM((B, H), jnp.float32),
        ],
    )

    kernel = functools.partial(
        _qlstm_kernel, t_total=T, needs_mask=needs_mask, unroll=unroll)

    out_seq, h_fin, c_fin = pl.pallas_call(
        kernel,
        out_shape=(
            jax.ShapeDtypeStruct((T_pad, B, H), jnp.float32),
            jax.ShapeDtypeStruct((B, H), jnp.float32),
            jax.ShapeDtypeStruct((B, H), jnp.float32),
        ),
        grid_spec=grid_spec,
        compiler_params=pltpu.CompilerParams(
            dimension_semantics=("arbitrary",),   # time recurrence is sequential
            vmem_limit_bytes=vmem_limit,
        ),
    )(x_proj, win_h, a_frfi, m_blk, b_all)

    if needs_mask:
        out_seq = out_seq[:T]
    return jnp.transpose(out_seq, (1, 0, 2)), (h_fin, c_fin)


# ----------------------------------------------------------------------------
# Pure-JAX reference (same math, independent complex-number path) for checking.
# ----------------------------------------------------------------------------

def qlstm_reference(x, params):
    B, T, F = x.shape
    H = params["w_out"].shape[0]
    us = [
        jnp.asarray(
            basic_entangler_unitary(np.asarray(params["vqc_w"][g])).astype(np.complex64)
        )
        for g in range(N_GATES)
    ]
    bits = jnp.asarray(_BITS)
    zs = jnp.asarray(_ZSIGNS)

    def vqc(y, u):
        half = 0.5 * y
        psi = jnp.ones((y.shape[0], DIM), dtype=jnp.complex64)
        for q in range(N_QUBITS):
            bq = bits[q][None, :]
            amp = jnp.cos(half[:, q:q + 1]) * (1.0 - bq) + (-1j) * jnp.sin(
                half[:, q:q + 1]) * bq
            psi = psi * amp
        psi_f = psi @ u.T
        prob = jnp.abs(psi_f) ** 2
        return prob.astype(jnp.float32) @ zs

    h = jnp.zeros((B, H), jnp.float32)
    c = jnp.zeros((B, H), jnp.float32)
    outs = []
    for t in range(T):
        x_t = x[:, t, :]
        v = jnp.concatenate([h, x_t], axis=1)
        y = v @ params["w_in"].T + params["b_in"]
        pre = [vqc(y, us[g]) @ params["w_out"].T + params["b_out"] for g in range(4)]
        f = jax.nn.sigmoid(pre[0])
        i = jax.nn.sigmoid(pre[1])
        g = jnp.tanh(pre[2])
        o = jax.nn.sigmoid(pre[3])
        c = f * c + i * g
        h = o * jnp.tanh(c)
        outs.append(h)
    return jnp.stack(outs, axis=1), (h, c)


# ----------------------------------------------------------------------------

if __name__ == "__main__":
    B, T, F, H = 2, 8, 8, 32

    key = jax.random.PRNGKey(0)
    k1, k2, k3, k4, k5, k6 = jax.random.split(key, 6)
    params = {
        "w_in": jax.random.normal(k1, (N_QUBITS, F + H), jnp.float32) * 0.3,
        "b_in": jax.random.normal(k2, (N_QUBITS,), jnp.float32) * 0.1,
        "w_out": jax.random.normal(k3, (H, N_QUBITS), jnp.float32) * 0.3,
        "b_out": jax.random.normal(k4, (H,), jnp.float32) * 0.1,
        # one (n_qlayers, n_qubits) weight tensor per VQC gate
        "vqc_w": jax.random.uniform(
            k5, (N_GATES, N_QLAYERS, N_QUBITS), jnp.float32, 0.0, 2.0 * np.pi
        ),
    }
    x = jax.random.normal(k6, (B, T, F), jnp.float32)

    out_ref, (h_ref, c_ref) = qlstm_reference(x, params)

    # 1) Single-chunk path (default large time_chunk -> one grid step).
    out, (h_fin, c_fin) = qlstm_forward(x, params, time_chunk=128)
    jax.block_until_ready(out)
    assert out.shape == (B, T, H)
    np.testing.assert_allclose(np.asarray(out), np.asarray(out_ref), atol=2e-4, rtol=2e-4)
    np.testing.assert_allclose(np.asarray(h_fin), np.asarray(h_ref), atol=2e-4, rtol=2e-4)
    np.testing.assert_allclose(np.asarray(c_fin), np.asarray(c_ref), atol=2e-4, rtol=2e-4)

    # 2) Multi-chunk path with a padded tail (T=8, Tt=3 -> 3 chunks, 1 pad step):
    #    exercises cross-chunk h/c carry and the tail state-freeze mask.
    out2, (h2, c2) = qlstm_forward(x, params, time_chunk=3)
    jax.block_until_ready(out2)
    np.testing.assert_allclose(np.asarray(out2), np.asarray(out_ref), atol=2e-4, rtol=2e-4)
    np.testing.assert_allclose(np.asarray(h2), np.asarray(h_ref), atol=2e-4, rtol=2e-4)
    np.testing.assert_allclose(np.asarray(c2), np.asarray(c_ref), atol=2e-4, rtol=2e-4)

    print("KERNEL_OK")
</pallas_src>

<mosaic_0001>
module attributes {stable_mosaic.version = 11 : i64} {
  func.func @_qlstm_kernel(%arg0: i32, %arg1: memref<8x2x4xf32, #tpu.memory_space<vmem>>, %arg2: memref<32x4xf32, #tpu.memory_space<vmem>>, %arg3: memref<16x128xf32, #tpu.memory_space<vmem>>, %arg4: memref<64x128xf32, #tpu.memory_space<vmem>>, %arg5: memref<1x128xf32, #tpu.memory_space<vmem>>, %arg6: memref<8x2x32xf32, #tpu.memory_space<vmem>>, %arg7: memref<2x32xf32, #tpu.memory_space<vmem>>, %arg8: memref<2x32xf32, #tpu.memory_space<vmem>>, %arg9: memref<2x32xf32, #tpu.memory_space<vmem>>, %arg10: memref<2x32xf32, #tpu.memory_space<vmem>>) attributes {dimension_semantics = [#tpu.dimension_semantics<arbitrary>], iteration_bounds = array<i64: 1>, scalar_prefetch = 0 : i64, scratch_operands = 2 : i64, tpu.core_type = #tpu.core_type<tc>, window_params = [{transform_indices = @transform_0, window_bounds = array<i64: 8, 2, 4>}, {pipeline_mode = #tpu.pipeline_mode<synchronous>, transform_indices = @transform_1, window_bounds = array<i64: 32, 4>}, {pipeline_mode = #tpu.pipeline_mode<synchronous>, transform_indices = @transform_2, window_bounds = array<i64: 16, 128>}, {pipeline_mode = #tpu.pipeline_mode<synchronous>, transform_indices = @transform_3, window_bounds = array<i64: 64, 128>}, {pipeline_mode = #tpu.pipeline_mode<synchronous>, transform_indices = @transform_4, window_bounds = array<i64: 1, 128>}, {transform_indices = @transform_5, window_bounds = array<i64: 8, 2, 32>}, {pipeline_mode = #tpu.pipeline_mode<synchronous>, transform_indices = @transform_6, window_bounds = array<i64: 2, 32>}, {pipeline_mode = #tpu.pipeline_mode<synchronous>, transform_indices = @transform_7, window_bounds = array<i64: 2, 32>}]} {
    %c0_i32 = arith.constant 0 : i32
    %0 = arith.cmpi eq, %arg0, %c0_i32 : i32
    %1 = arith.extui %0 : i1 to i32
    %c0_i32_0 = arith.constant 0 : i32
    %2 = arith.cmpi ne, %1, %c0_i32_0 : i32
    scf.if %2 {
      %cst_102 = arith.constant 0.000000e+00 : f32
      %647 = vector.broadcast %cst_102 : f32 to vector<2x32xf32>
      %c0_103 = arith.constant 0 : index
      %c0_104 = arith.constant 0 : index
      %648 = vector.load %arg9[%c0_103, %c0_104] : memref<2x32xf32, #tpu.memory_space<vmem>>, vector<2x32xf32>
      tpu.vector_store %arg9[%c0_103, %c0_104], %647 {strides = array<i32>} : memref<2x32xf32, #tpu.memory_space<vmem>>, vector<2x32xf32>,
      %cst_105 = arith.constant 0.000000e+00 : f32
      %649 = vector.broadcast %cst_105 : f32 to vector<2x32xf32>
      %c0_106 = arith.constant 0 : index
      %c0_107 = arith.constant 0 : index
      %650 = vector.load %arg10[%c0_106, %c0_107] : memref<2x32xf32, #tpu.memory_space<vmem>>, vector<2x32xf32>
      tpu.vector_store %arg10[%c0_106, %c0_107], %649 {strides = array<i32>} : memref<2x32xf32, #tpu.memory_space<vmem>>, vector<2x32xf32>,
    } else {
    }
    %c0 = arith.constant 0 : index
    %c0_1 = arith.constant 0 : index
    %3 = vector.load %arg2[%c0, %c0_1] : memref<32x4xf32, #tpu.memory_space<vmem>>, vector<32x4xf32>
    %c0_2 = arith.constant 0 : index
    %c0_3 = arith.constant 0 : index
    %4 = vector.load %arg3[%c0_2, %c0_3] : memref<16x128xf32, #tpu.memory_space<vmem>>, vector<16x128xf32>
    %c0_4 = arith.constant 0 : index
    %c0_5 = arith.constant 0 : index
    %5 = vector.load %arg4[%c0_4, %c0_5] : memref<64x128xf32, #tpu.memory_space<vmem>>, vector<64x128xf32>
    %c0_6 = arith.constant 0 : index
    %c0_7 = arith.constant 0 : index
    %6 = vector.load %arg5[%c0_6, %c0_7] : memref<1x128xf32, #tpu.memory_space<vmem>>, vector<1x128xf32>
    %7 = tpu.iota {dimensions = array<i32: 1>} : vector<1x16xi32>
    %c8_i32 = arith.constant 8 : i32
    %8 = vector.broadcast %c8_i32 : i32 to vector<1x16xi32>
    %9 = arith.andi %7, %8 : vector<1x16xi32>
    %c0_i32_8 = arith.constant 0 : i32
    %10 = vector.broadcast %c0_i32_8 : i32 to vector<1x16xi32>
    %11 = arith.cmpi sgt, %9, %10 : vector<1x16xi32>
    %12 = arith.extui %11 : vector<1x16xi1> to vector<1x16xi32>
    %13 = arith.sitofp %12 : vector<1x16xi32> to vector<1x16xf32>
    %c4_i32 = arith.constant 4 : i32
    %14 = vector.broadcast %c4_i32 : i32 to vector<1x16xi32>
    %15 = arith.andi %7, %14 : vector<1x16xi32>
    %c0_i32_9 = arith.constant 0 : i32
    %16 = vector.broadcast %c0_i32_9 : i32 to vector<1x16xi32>
    %17 = arith.cmpi sgt, %15, %16 : vector<1x16xi32>
    %18 = arith.extui %17 : vector<1x16xi1> to vector<1x16xi32>
    %19 = arith.sitofp %18 : vector<1x16xi32> to vector<1x16xf32>
    %c2_i32 = arith.constant 2 : i32
    %20 = vector.broadcast %c2_i32 : i32 to vector<1x16xi32>
    %21 = arith.andi %7, %20 : vector<1x16xi32>
    %c0_i32_10 = arith.constant 0 : i32
    %22 = vector.broadcast %c0_i32_10 : i32 to vector<1x16xi32>
    %23 = arith.cmpi sgt, %21, %22 : vector<1x16xi32>
    %24 = arith.extui %23 : vector<1x16xi1> to vector<1x16xi32>
    %25 = arith.sitofp %24 : vector<1x16xi32> to vector<1x16xf32>
    %c1_i32 = arith.constant 1 : i32
    %26 = vector.broadcast %c1_i32 : i32 to vector<1x16xi32>
    %27 = arith.andi %7, %26 : vector<1x16xi32>
    %c0_i32_11 = arith.constant 0 : i32
    %28 = vector.broadcast %c0_i32_11 : i32 to vector<1x16xi32>
    %29 = arith.cmpi sgt, %27, %28 : vector<1x16xi32>
    %30 = arith.extui %29 : vector<1x16xi1> to vector<1x16xi32>
    %31 = arith.sitofp %30 : vector<1x16xi32> to vector<1x16xf32>
    %cst = arith.constant 1.000000e+00 : f32
    %32 = vector.broadcast %cst : f32 to vector<1x16xf32>
    %33 = arith.subf %32, %13 : vector<1x16xf32>
    %cst_12 = arith.constant 1.000000e+00 : f32
    %34 = vector.broadcast %cst_12 : f32 to vector<1x16xf32>
    %35 = arith.subf %34, %19 : vector<1x16xf32>
    %cst_13 = arith.constant 1.000000e+00 : f32
    %36 = vector.broadcast %cst_13 : f32 to vector<1x16xf32>
    %37 = arith.subf %36, %25 : vector<1x16xf32>
    %cst_14 = arith.constant 1.000000e+00 : f32
    %38 = vector.broadcast %cst_14 : f32 to vector<1x16xf32>
    %39 = arith.subf %38, %31 : vector<1x16xf32>
    %c0_15 = arith.constant 0 : index
    %c0_16 = arith.constant 0 : index
    %40 = vector.load %arg9[%c0_15, %c0_16] : memref<2x32xf32, #tpu.memory_space<vmem>>, vector<2x32xf32>
    %c0_17 = arith.constant 0 : index
    %c0_18 = arith.constant 0 : index
    %41 = vector.load %arg10[%c0_17, %c0_18] : memref<2x32xf32, #tpu.memory_space<vmem>>, vector<2x32xf32>
    %c0_i32_19 = arith.constant 0 : i32
    %cst_20 = arith.constant dense<0.000000e+00> : vector<2x4xf32>
    %42 = tpu.matmul %40, %3, %cst_20 {dimension_numbers = #tpu.dot_dimension_numbers<[1], [0], [0], [1], [0, 0, 1, 1], [], []>} : vector<2x32xf32>, vector<32x4xf32>, vector<2x4xf32> -> vector<2x4xf32>
    %43 = arith.index_cast %c0_i32_19 : i32 to index
    %c0_21 = arith.constant 0 : index
    %c0_22 = arith.constant 0 : index
    %44 = vector.load %arg1[%43, %c0_21, %c0_22] : memref<8x2x4xf32, #tpu.memory_space<vmem>>, vector<1x2x4xf32>
    %45 = vector.shape_cast %44 : vector<1x2x4xf32> to vector<2x4xf32>
    %46 = arith.addf %42, %45 : vector<2x4xf32>
    %cst_23 = arith.constant 5.000000e-01 : f32
    %47 = vector.broadcast %cst_23 : f32 to vector<2x4xf32>
    %48 = arith.mulf %47, %46 : vector<2x4xf32>
    %49 = math.cos %48 : vector<2x4xf32>
    %50 = math.sin %48 : vector<2x4xf32>
    %51 = vector.extract_strided_slice %49 {offsets = [0, 0], sizes = [2, 1], strides = [1, 1]} : vector<2x4xf32> to vector<2x1xf32>
    %52 = vector.broadcast %51 : vector<2x1xf32> to vector<2x16xf32>
    %53 = vector.broadcast %33 : vector<1x16xf32> to vector<2x16xf32>
    %54 = arith.mulf %52, %53 : vector<2x16xf32>
    %55 = vector.extract_strided_slice %50 {offsets = [0, 0], sizes = [2, 1], strides = [1, 1]} : vector<2x4xf32> to vector<2x1xf32>
    %56 = vector.broadcast %55 : vector<2x1xf32> to vector<2x16xf32>
    %57 = vector.broadcast %13 : vector<1x16xf32> to vector<2x16xf32>
    %58 = arith.mulf %56, %57 : vector<2x16xf32>
    %59 = arith.addf %54, %58 : vector<2x16xf32>
    %60 = vector.extract_strided_slice %49 {offsets = [0, 1], sizes = [2, 1], strides = [1, 1]} : vector<2x4xf32> to vector<2x1xf32>
    %61 = vector.broadcast %60 : vector<2x1xf32> to vector<2x16xf32>
    %62 = vector.broadcast %35 : vector<1x16xf32> to vector<2x16xf32>
    %63 = arith.mulf %61, %62 : vector<2x16xf32>
    %64 = vector.extract_strided_slice %50 {offsets = [0, 1], sizes = [2, 1], strides = [1, 1]} : vector<2x4xf32> to vector<2x1xf32>
    %65 = vector.broadcast %64 : vector<2x1xf32> to vector<2x16xf32>
    %66 = vector.broadcast %19 : vector<1x16xf32> to vector<2x16xf32>
    %67 = arith.mulf %65, %66 : vector<2x16xf32>
    %68 = arith.addf %63, %67 : vector<2x16xf32>
    %69 = vector.extract_strided_slice %49 {offsets = [0, 2], sizes = [2, 1], strides = [1, 1]} : vector<2x4xf32> to vector<2x1xf32>
    %70 = vector.broadcast %69 : vector<2x1xf32> to vector<2x16xf32>
    %71 = vector.broadcast %37 : vector<1x16xf32> to vector<2x16xf32>
    %72 = arith.mulf %70, %71 : vector<2x16xf32>
    %73 = vector.extract_strided_slice %50 {offsets = [0, 2], sizes = [2, 1], strides = [1, 1]} : vector<2x4xf32> to vector<2x1xf32>
    %74 = vector.broadcast %73 : vector<2x1xf32> to vector<2x16xf32>
    %75 = vector.broadcast %25 : vector<1x16xf32> to vector<2x16xf32>
    %76 = arith.mulf %74, %75 : vector<2x16xf32>
    %77 = arith.addf %72, %76 : vector<2x16xf32>
    %78 = vector.extract_strided_slice %49 {offsets = [0, 3], sizes = [2, 1], strides = [1, 1]} : vector<2x4xf32> to vector<2x1xf32>
    %79 = vector.broadcast %78 : vector<2x1xf32> to vector<2x16xf32>
    %80 = vector.broadcast %39 : vector<1x16xf32> to vector<2x16xf32>
    %81 = arith.mulf %79, %80 : vector<2x16xf32>
    %82 = vector.extract_strided_slice %50 {offsets = [0, 3], sizes = [2, 1], strides = [1, 1]} : vector<2x4xf32> to vector<2x1xf32>
    %83 = vector.broadcast %82 : vector<2x1xf32> to vector<2x16xf32>
    %84 = vector.broadcast %31 : vector<1x16xf32> to vector<2x16xf32>
    %85 = arith.mulf %83, %84 : vector<2x16xf32>
    %86 = arith.addf %81, %85 : vector<2x16xf32>
    %87 = arith.mulf %59, %68 : vector<2x16xf32>
    %88 = arith.mulf %77, %86 : vector<2x16xf32>
    %89 = arith.mulf %87, %88 : vector<2x16xf32>
    %cst_24 = arith.constant dense<0.000000e+00> : vector<2x128xf32>
    %90 = tpu.matmul %89, %4, %cst_24 {dimension_numbers = #tpu.dot_dimension_numbers<[1], [0], [0], [1], [0, 0, 1, 1], [], []>} : vector<2x16xf32>, vector<16x128xf32>, vector<2x128xf32> -> vector<2x128xf32>
    %91 = arith.mulf %90, %90 : vector<2x128xf32>
    %92 = vector.extract_strided_slice %91 {offsets = [0, 0], sizes = [2, 64], strides = [1, 1]} : vector<2x128xf32> to vector<2x64xf32>
    %93 = vector.extract_strided_slice %91 {offsets = [0, 64], sizes = [2, 64], strides = [1, 1]} : vector<2x128xf32> to vector<2x64xf32>
    %94 = arith.addf %92, %93 : vector<2x64xf32>
    %cst_25 = arith.constant dense<0.000000e+00> : vector<2x128xf32>
    %95 = tpu.matmul %94, %5, %cst_25 {dimension_numbers = #tpu.dot_dimension_numbers<[1], [0], [0], [1], [0, 0, 1, 1], [], []>} : vector<2x64xf32>, vector<64x128xf32>, vector<2x128xf32> -> vector<2x128xf32>
    %96 = vector.broadcast %6 : vector<1x128xf32> to vector<2x128xf32>
    %97 = arith.addf %95, %96 : vector<2x128xf32>
    %98 = arith.negf %97 : vector<2x128xf32>
    %99 = math.exp %98 : vector<2x128xf32>
    %cst_26 = arith.constant 1.000000e+00 : f32
    %100 = vector.broadcast %cst_26 : f32 to vector<2x128xf32>
    %101 = arith.addf %100, %99 : vector<2x128xf32>
    %102 = arith.divf %100, %101 : vector<2x128xf32>
    %103 = vector.extract_strided_slice %102 {offsets = [0, 0], sizes = [2, 32], strides = [1, 1]} : vector<2x128xf32> to vector<2x32xf32>
    %104 = vector.extract_strided_slice %102 {offsets = [0, 32], sizes = [2, 32], strides = [1, 1]} : vector<2x128xf32> to vector<2x32xf32>
    %105 = vector.extract_strided_slice %102 {offsets = [0, 96], sizes = [2, 32], strides = [1, 1]} : vector<2x128xf32> to vector<2x32xf32>
    %106 = vector.extract_strided_slice %97 {offsets = [0, 64], sizes = [2, 32], strides = [1, 1]} : vector<2x128xf32> to vector<2x32xf32>
    %107 = math.tanh %106 : vector<2x32xf32>
    %108 = arith.mulf %103, %41 : vector<2x32xf32>
    %109 = arith.mulf %104, %107 : vector<2x32xf32>
    %110 = arith.addf %108, %109 : vector<2x32xf32>
    %111 = math.tanh %110 : vector<2x32xf32>
    %112 = arith.mulf %105, %111 : vector<2x32xf32>
    %113 = arith.index_cast %c0_i32_19 : i32 to index
    %c0_27 = arith.constant 0 : index
    %c0_28 = arith.constant 0 : index
    %114 = vector.load %arg6[%113, %c0_27, %c0_28] : memref<8x2x32xf32, #tpu.memory_space<vmem>>, vector<1x2x32xf32>
    %115 = vector.shape_cast %114 : vector<1x2x32xf32> to vector<2x32xf32>
    %116 = vector.shape_cast %112 : vector<2x32xf32> to vector<1x2x32xf32>
    tpu.vector_store %arg6[%113, %c0_27, %c0_28], %116 {strides = array<i32>} : memref<8x2x32xf32, #tpu.memory_space<vmem>>, vector<1x2x32xf32>,
    %c1_i32_29 = arith.constant 1 : i32
    %cst_30 = arith.constant dense<0.000000e+00> : vector<2x4xf32>
    %117 = tpu.matmul %112, %3, %cst_30 {dimension_numbers = #tpu.dot_dimension_numbers<[1], [0], [0], [1], [0, 0, 1, 1], [], []>} : vector<2x32xf32>, vector<32x4xf32>, vector<2x4xf32> -> vector<2x4xf32>
    %118 = arith.index_cast %c1_i32_29 : i32 to index
    %c0_31 = arith.constant 0 : index
    %c0_32 = arith.constant 0 : index
    %119 = vector.load %arg1[%118, %c0_31, %c0_32] : memref<8x2x4xf32, #tpu.memory_space<vmem>>, vector<1x2x4xf32>
    %120 = vector.shape_cast %119 : vector<1x2x4xf32> to vector<2x4xf32>
    %121 = arith.addf %117, %120 : vector<2x4xf32>
    %cst_33 = arith.constant 5.000000e-01 : f32
    %122 = vector.broadcast %cst_33 : f32 to vector<2x4xf32>
    %123 = arith.mulf %122, %121 : vector<2x4xf32>
    %124 = math.cos %123 : vector<2x4xf32>
    %125 = math.sin %123 : vector<2x4xf32>
    %126 = vector.extract_strided_slice %124 {offsets = [0, 0], sizes = [2, 1], strides = [1, 1]} : vector<2x4xf32> to vector<2x1xf32>
    %127 = vector.broadcast %126 : vector<2x1xf32> to vector<2x16xf32>
    %128 = vector.broadcast %33 : vector<1x16xf32> to vector<2x16xf32>
    %129 = arith.mulf %127, %128 : vector<2x16xf32>
    %130 = vector.extract_strided_slice %125 {offsets = [0, 0], sizes = [2, 1], strides = [1, 1]} : vector<2x4xf32> to vector<2x1xf32>
    %131 = vector.broadcast %130 : vector<2x1xf32> to vector<2x16xf32>
    %132 = vector.broadcast %13 : vector<1x16xf32> to vector<2x16xf32>
    %133 = arith.mulf %131, %132 : vector<2x16xf32>
    %134 = arith.addf %129, %133 : vector<2x16xf32>
    %135 = vector.extract_strided_slice %124 {offsets = [0, 1], sizes = [2, 1], strides = [1, 1]} : vector<2x4xf32> to vector<2x1xf32>
    %136 = vector.broadcast %135 : vector<2x1xf32> to vector<2x16xf32>
    %137 = vector.broadcast %35 : vector<1x16xf32> to vector<2x16xf32>
    %138 = arith.mulf %136, %137 : vector<2x16xf32>
    %139 = vector.extract_strided_slice %125 {offsets = [0, 1], sizes = [2, 1], strides = [1, 1]} : vector<2x4xf32> to vector<2x1xf32>
    %140 = vector.broadcast %139 : vector<2x1xf32> to vector<2x16xf32>
    %141 = vector.broadcast %19 : vector<1x16xf32> to vector<2x16xf32>
    %142 = arith.mulf %140, %141 : vector<2x16xf32>
    %143 = arith.addf %138, %142 : vector<2x16xf32>
    %144 = vector.extract_strided_slice %124 {offsets = [0, 2], sizes = [2, 1], strides = [1, 1]} : vector<2x4xf32> to vector<2x1xf32>
    %145 = vector.broadcast %144 : vector<2x1xf32> to vector<2x16xf32>
    %146 = vector.broadcast %37 : vector<1x16xf32> to vector<2x16xf32>
    %147 = arith.mulf %145, %146 : vector<2x16xf32>
    %148 = vector.extract_strided_slice %125 {offsets = [0, 2], sizes = [2, 1], strides = [1, 1]} : vector<2x4xf32> to vector<2x1xf32>
    %149 = vector.broadcast %148 : vector<2x1xf32> to vector<2x16xf32>
    %150 = vector.broadcast %25 : vector<1x16xf32> to vector<2x16xf32>
    %151 = arith.mulf %149, %150 : vector<2x16xf32>
    %152 = arith.addf %147, %151 : vector<2x16xf32>
    %153 = vector.extract_strided_slice %124 {offsets = [0, 3], sizes = [2, 1], strides = [1, 1]} : vector<2x4xf32> to vector<2x1xf32>
    %154 = vector.broadcast %153 : vector<2x1xf32> to vector<2x16xf32>
    %155 = vector.broadcast %39 : vector<1x16xf32> to vector<2x16xf32>
    %156 = arith.mulf %154, %155 : vector<2x16xf32>
    %157 = vector.extract_strided_slice %125 {offsets = [0, 3], sizes = [2, 1], strides = [1, 1]} : vector<2x4xf32> to vector<2x1xf32>
    %158 = vector.broadcast %157 : vector<2x1xf32> to vector<2x16xf32>
    %159 = vector.broadcast %31 : vector<1x16xf32> to vector<2x16xf32>
    %160 = arith.mulf %158, %159 : vector<2x16xf32>
    %161 = arith.addf %156, %160 : vector<2x16xf32>
    %162 = arith.mulf %134, %143 : vector<2x16xf32>
    %163 = arith.mulf %152, %161 : vector<2x16xf32>
    %164 = arith.mulf %162, %163 : vector<2x16xf32>
    %cst_34 = arith.constant dense<0.000000e+00> : vector<2x128xf32>
    %165 = tpu.matmul %164, %4, %cst_34 {dimension_numbers = #tpu.dot_dimension_numbers<[1], [0], [0], [1], [0, 0, 1, 1], [], []>} : vector<2x16xf32>, vector<16x128xf32>, vector<2x128xf32> -> vector<2x128xf32>
    %166 = arith.mulf %165, %165 : vector<2x128xf32>
    %167 = vector.extract_strided_slice %166 {offsets = [0, 0], sizes = [2, 64], strides = [1, 1]} : vector<2x128xf32> to vector<2x64xf32>
    %168 = vector.extract_strided_slice %166 {offsets = [0, 64], sizes = [2, 64], strides = [1, 1]} : vector<2x128xf32> to vector<2x64xf32>
    %169 = arith.addf %167, %168 : vector<2x64xf32>
    %cst_35 = arith.constant dense<0.000000e+00> : vector<2x128xf32>
    %170 = tpu.matmul %169, %5, %cst_35 {dimension_numbers = #tpu.dot_dimension_numbers<[1], [0], [0], [1], [0, 0, 1, 1], [], []>} : vector<2x64xf32>, vector<64x128xf32>, vector<2x128xf32> -> vector<2x128xf32>
    %171 = vector.broadcast %6 : vector<1x128xf32> to vector<2x128xf32>
    %172 = arith.addf %170, %171 : vector<2x128xf32>
    %173 = arith.negf %172 : vector<2x128xf32>
    %174 = math.exp %173 : vector<2x128xf32>
    %cst_36 = arith.constant 1.000000e+00 : f32
    %175 = vector.broadcast %cst_36 : f32 to vector<2x128xf32>
    %176 = arith.addf %175, %174 : vector<2x128xf32>
    %177 = arith.divf %175, %176 : vector<2x128xf32>
    %178 = vector.extract_strided_slice %177 {offsets = [0, 0], sizes = [2, 32], strides = [1, 1]} : vector<2x128xf32> to vector<2x32xf32>
    %179 = vector.extract_strided_slice %177 {offsets = [0, 32], sizes = [2, 32], strides = [1, 1]} : vector<2x128xf32> to vector<2x32xf32>
    %180 = vector.extract_strided_slice %177 {offsets = [0, 96], sizes = [2, 32], strides = [1, 1]} : vector<2x128xf32> to vector<2x32xf32>
    %181 = vector.extract_strided_slice %172 {offsets = [0, 64], sizes = [2, 32], strides = [1, 1]} : vector<2x128xf32> to vector<2x32xf32>
    %182 = math.tanh %181 : vector<2x32xf32>
    %183 = arith.mulf %178, %110 : vector<2x32xf32>
    %184 = arith.mulf %179, %182 : vector<2x32xf32>
    %185 = arith.addf %183, %184 : vector<2x32xf32>
    %186 = math.tanh %185 : vector<2x32xf32>
    %187 = arith.mulf %180, %186 : vector<2x32xf32>
    %188 = arith.index_cast %c1_i32_29 : i32 to index
    %c0_37 = arith.constant 0 : index
    %c0_38 = arith.constant 0 : index
    %189 = vector.load %arg6[%188, %c0_37, %c0_38] : memref<8x2x32xf32, #tpu.memory_space<vmem>>, vector<1x2x32xf32>
    %190 = vector.shape_cast %189 : vector<1x2x32xf32> to vector<2x32xf32>
    %191 = vector.shape_cast %187 : vector<2x32xf32> to vector<1x2x32xf32>
    tpu.vector_store %arg6[%188, %c0_37, %c0_38], %191 {strides = array<i32>} : memref<8x2x32xf32, #tpu.memory_space<vmem>>, vector<1x2x32xf32>,
    %c2_i32_39 = arith.constant 2 : i32
    %cst_40 = arith.constant dense<0.000000e+00> : vector<2x4xf32>
    %192 = tpu.matmul %187, %3, %cst_40 {dimension_numbers = #tpu.dot_dimension_numbers<[1], [0], [0], [1], [0, 0, 1, 1], [], []>} : vector<2x32xf32>, vector<32x4xf32>, vector<2x4xf32> -> vector<2x4xf32>
    %193 = arith.index_cast %c2_i32_39 : i32 to index
    %c0_41 = arith.constant 0 : index
    %c0_42 = arith.constant 0 : index
    %194 = vector.load %arg1[%193, %c0_41, %c0_42] : memref<8x2x4xf32, #tpu.memory_space<vmem>>, vector<1x2x4xf32>
    %195 = vector.shape_cast %194 : vector<1x2x4xf32> to vector<2x4xf32>
    %196 = arith.addf %192, %195 : vector<2x4xf32>
    %cst_43 = arith.constant 5.000000e-01 : f32
    %197 = vector.broadcast %cst_43 : f32 to vector<2x4xf32>
    %198 = arith.mulf %197, %196 : vector<2x4xf32>
    %199 = math.cos %198 : vector<2x4xf32>
    %200 = math.sin %198 : vector<2x4xf32>
    %201 = vector.extract_strided_slice %199 {offsets = [0, 0], sizes = [2, 1], strides = [1, 1]} : vector<2x4xf32> to vector<2x1xf32>
    %202 = vector.broadcast %201 : vector<2x1xf32> to vector<2x16xf32>
    %203 = vector.broadcast %33 : vector<1x16xf32> to vector<2x16xf32>
    %204 = arith.mulf %202, %203 : vector<2x16xf32>
    %205 = vector.extract_strided_slice %200 {offsets = [0, 0], sizes = [2, 1], strides = [1, 1]} : vector<2x4xf32> to vector<2x1xf32>
    %206 = vector.broadcast %205 : vector<2x1xf32> to vector<2x16xf32>
    %207 = vector.broadcast %13 : vector<1x16xf32> to vector<2x16xf32>
    %208 = arith.mulf %206, %207 : vector<2x16xf32>
    %209 = arith.addf %204, %208 : vector<2x16xf32>
    %210 = vector.extract_strided_slice %199 {offsets = [0, 1], sizes = [2, 1], strides = [1, 1]} : vector<2x4xf32> to vector<2x1xf32>
    %211 = vector.broadcast %210 : vector<2x1xf32> to vector<2x16xf32>
    %212 = vector.broadcast %35 : vector<1x16xf32> to vector<2x16xf32>
    %213 = arith.mulf %211, %212 : vector<2x16xf32>
    %214 = vector.extract_strided_slice %200 {offsets = [0, 1], sizes = [2, 1], strides = [1, 1]} : vector<2x4xf32> to vector<2x1xf32>
    %215 = vector.broadcast %214 : vector<2x1xf32> to vector<2x16xf32>
    %216 = vector.broadcast %19 : vector<1x16xf32> to vector<2x16xf32>
    %217 = arith.mulf %215, %216 : vector<2x16xf32>
    %218 = arith.addf %213, %217 : vector<2x16xf32>
    %219 = vector.extract_strided_slice %199 {offsets = [0, 2], sizes = [2, 1], strides = [1, 1]} : vector<2x4xf32> to vector<2x1xf32>
    %220 = vector.broadcast %219 : vector<2x1xf32> to vector<2x16xf32>
    %221 = vector.broadcast %37 : vector<1x16xf32> to vector<2x16xf32>
    %222 = arith.mulf %220, %221 : vector<2x16xf32>
    %223 = vector.extract_strided_slice %200 {offsets = [0, 2], sizes = [2, 1], strides = [1, 1]} : vector<2x4xf32> to vector<2x1xf32>
    %224 = vector.broadcast %223 : vector<2x1xf32> to vector<2x16xf32>
    %225 = vector.broadcast %25 : vector<1x16xf32> to vector<2x16xf32>
    %226 = arith.mulf %224, %225 : vector<2x16xf32>
    %227 = arith.addf %222, %226 : vector<2x16xf32>
    %228 = vector.extract_strided_slice %199 {offsets = [0, 3], sizes = [2, 1], strides = [1, 1]} : vector<2x4xf32> to vector<2x1xf32>
    %229 = vector.broadcast %228 : vector<2x1xf32> to vector<2x16xf32>
    %230 = vector.broadcast %39 : vector<1x16xf32> to vector<2x16xf32>
    %231 = arith.mulf %229, %230 : vector<2x16xf32>
    %232 = vector.extract_strided_slice %200 {offsets = [0, 3], sizes = [2, 1], strides = [1, 1]} : vector<2x4xf32> to vector<2x1xf32>
    %233 = vector.broadcast %232 : vector<2x1xf32> to vector<2x16xf32>
    %234 = vector.broadcast %31 : vector<1x16xf32> to vector<2x16xf32>
    %235 = arith.mulf %233, %234 : vector<2x16xf32>
    %236 = arith.addf %231, %235 : vector<2x16xf32>
    %237 = arith.mulf %209, %218 : vector<2x16xf32>
    %238 = arith.mulf %227, %236 : vector<2x16xf32>
    %239 = arith.mulf %237, %238 : vector<2x16xf32>
    %cst_44 = arith.constant dense<0.000000e+00> : vector<2x128xf32>
    %240 = tpu.matmul %239, %4, %cst_44 {dimension_numbers = #tpu.dot_dimension_numbers<[1], [0], [0], [1], [0, 0, 1, 1], [], []>} : vector<2x16xf32>, vector<16x128xf32>, vector<2x128xf32> -> vector<2x128xf32>
    %241 = arith.mulf %240, %240 : vector<2x128xf32>
    %242 = vector.extract_strided_slice %241 {offsets = [0, 0], sizes = [2, 64], strides = [1, 1]} : vector<2x128xf32> to vector<2x64xf32>
    %243 = vector.extract_strided_slice %241 {offsets = [0, 64], sizes = [2, 64], strides = [1, 1]} : vector<2x128xf32> to vector<2x64xf32>
    %244 = arith.addf %242, %243 : vector<2x64xf32>
    %cst_45 = arith.constant dense<0.000000e+00> : vector<2x128xf32>
    %245 = tpu.matmul %244, %5, %cst_45 {dimension_numbers = #tpu.dot_dimension_numbers<[1], [0], [0], [1], [0, 0, 1, 1], [], []>} : vector<2x64xf32>, vector<64x128xf32>, vector<2x128xf32> -> vector<2x128xf32>
    %246 = vector.broadcast %6 : vector<1x128xf32> to vector<2x128xf32>
    %247 = arith.addf %245, %246 : vector<2x128xf32>
    %248 = arith.negf %247 : vector<2x128xf32>
    %249 = math.exp %248 : vector<2x128xf32>
    %cst_46 = arith.constant 1.000000e+00 : f32
    %250 = vector.broadcast %cst_46 : f32 to vector<2x128xf32>
    %251 = arith.addf %250, %249 : vector<2x128xf32>
    %252 = arith.divf %250, %251 : vector<2x128xf32>
    %253 = vector.extract_strided_slice %252 {offsets = [0, 0], sizes = [2, 32], strides = [1, 1]} : vector<2x128xf32> to vector<2x32xf32>
    %254 = vector.extract_strided_slice %252 {offsets = [0, 32], sizes = [2, 32], strides = [1, 1]} : vector<2x128xf32> to vector<2x32xf32>
    %255 = vector.extract_strided_slice %252 {offsets = [0, 96], sizes = [2, 32], strides = [1, 1]} : vector<2x128xf32> to vector<2x32xf32>
    %256 = vector.extract_strided_slice %247 {offsets = [0, 64], sizes = [2, 32], strides = [1, 1]} : vector<2x128xf32> to vector<2x32xf32>
    %257 = math.tanh %256 : vector<2x32xf32>
    %258 = arith.mulf %253, %185 : vector<2x32xf32>
    %259 = arith.mulf %254, %257 : vector<2x32xf32>
    %260 = arith.addf %258, %259 : vector<2x32xf32>
    %261 = math.tanh %260 : vector<2x32xf32>
    %262 = arith.mulf %255, %261 : vector<2x32xf32>
    %263 = arith.index_cast %c2_i32_39 : i32 to index
    %c0_47 = arith.constant 0 : index
    %c0_48 = arith.constant 0 : index
    %264 = vector.load %arg6[%263, %c0_47, %c0_48] : memref<8x2x32xf32, #tpu.memory_space<vmem>>, vector<1x2x32xf32>
    %265 = vector.shape_cast %264 : vector<1x2x32xf32> to vector<2x32xf32>
    %266 = vector.shape_cast %262 : vector<2x32xf32> to vector<1x2x32xf32>
    tpu.vector_store %arg6[%263, %c0_47, %c0_48], %266 {strides = array<i32>} : memref<8x2x32xf32, #tpu.memory_space<vmem>>, vector<1x2x32xf32>,
    %c3_i32 = arith.constant 3 : i32
    %cst_49 = arith.constant dense<0.000000e+00> : vector<2x4xf32>
    %267 = tpu.matmul %262, %3, %cst_49 {dimension_numbers = #tpu.dot_dimension_numbers<[1], [0], [0], [1], [0, 0, 1, 1], [], []>} : vector<2x32xf32>, vector<32x4xf32>, vector<2x4xf32> -> vector<2x4xf32>
    %268 = arith.index_cast %c3_i32 : i32 to index
    %c0_50 = arith.constant 0 : index
    %c0_51 = arith.constant 0 : index
    %269 = vector.load %arg1[%268, %c0_50, %c0_51] : memref<8x2x4xf32, #tpu.memory_space<vmem>>, vector<1x2x4xf32>
    %270 = vector.shape_cast %269 : vector<1x2x4xf32> to vector<2x4xf32>
    %271 = arith.addf %267, %270 : vector<2x4xf32>
    %cst_52 = arith.constant 5.000000e-01 : f32
    %272 = vector.broadcast %cst_52 : f32 to vector<2x4xf32>
    %273 = arith.mulf %272, %271 : vector<2x4xf32>
    %274 = math.cos %273 : vector<2x4xf32>
    %275 = math.sin %273 : vector<2x4xf32>
    %276 = vector.extract_strided_slice %274 {offsets = [0, 0], sizes = [2, 1], strides = [1, 1]} : vector<2x4xf32> to vector<2x1xf32>
    %277 = vector.broadcast %276 : vector<2x1xf32> to vector<2x16xf32>
    %278 = vector.broadcast %33 : vector<1x16xf32> to vector<2x16xf32>
    %279 = arith.mulf %277, %278 : vector<2x16xf32>
    %280 = vector.extract_strided_slice %275 {offsets = [0, 0], sizes = [2, 1], strides = [1, 1]} : vector<2x4xf32> to vector<2x1xf32>
    %281 = vector.broadcast %280 : vector<2x1xf32> to vector<2x16xf32>
    %282 = vector.broadcast %13 : vector<1x16xf32> to vector<2x16xf32>
    %283 = arith.mulf %281, %282 : vector<2x16xf32>
    %284 = arith.addf %279, %283 : vector<2x16xf32>
    %285 = vector.extract_strided_slice %274 {offsets = [0, 1], sizes = [2, 1], strides = [1, 1]} : vector<2x4xf32> to vector<2x1xf32>
    %286 = vector.broadcast %285 : vector<2x1xf32> to vector<2x16xf32>
    %287 = vector.broadcast %35 : vector<1x16xf32> to vector<2x16xf32>
    %288 = arith.mulf %286, %287 : vector<2x16xf32>
    %289 = vector.extract_strided_slice %275 {offsets = [0, 1], sizes = [2, 1], strides = [1, 1]} : vector<2x4xf32> to vector<2x1xf32>
    %290 = vector.broadcast %289 : vector<2x1xf32> to vector<2x16xf32>
    %291 = vector.broadcast %19 : vector<1x16xf32> to vector<2x16xf32>
    %292 = arith.mulf %290, %291 : vector<2x16xf32>
    %293 = arith.addf %288, %292 : vector<2x16xf32>
    %294 = vector.extract_strided_slice %274 {offsets = [0, 2], sizes = [2, 1], strides = [1, 1]} : vector<2x4xf32> to vector<2x1xf32>
    %295 = vector.broadcast %294 : vector<2x1xf32> to vector<2x16xf32>
    %296 = vector.broadcast %37 : vector<1x16xf32> to vector<2x16xf32>
    %297 = arith.mulf %295, %296 : vector<2x16xf32>
    %298 = vector.extract_strided_slice %275 {offsets = [0, 2], sizes = [2, 1], strides = [1, 1]} : vector<2x4xf32> to vector<2x1xf32>
    %299 = vector.broadcast %298 : vector<2x1xf32> to vector<2x16xf32>
    %300 = vector.broadcast %25 : vector<1x16xf32> to vector<2x16xf32>
    %301 = arith.mulf %299, %300 : vector<2x16xf32>
    %302 = arith.addf %297, %301 : vector<2x16xf32>
    %303 = vector.extract_strided_slice %274 {offsets = [0, 3], sizes = [2, 1], strides = [1, 1]} : vector<2x4xf32> to vector<2x1xf32>
    %304 = vector.broadcast %303 : vector<2x1xf32> to vector<2x16xf32>
    %305 = vector.broadcast %39 : vector<1x16xf32> to vector<2x16xf32>
    %306 = arith.mulf %304, %305 : vector<2x16xf32>
    %307 = vector.extract_strided_slice %275 {offsets = [0, 3], sizes = [2, 1], strides = [1, 1]} : vector<2x4xf32> to vector<2x1xf32>
    %308 = vector.broadcast %307 : vector<2x1xf32> to vector<2x16xf32>
    %309 = vector.broadcast %31 : vector<1x16xf32> to vector<2x16xf32>
    %310 = arith.mulf %308, %309 : vector<2x16xf32>
    %311 = arith.addf %306, %310 : vector<2x16xf32>
    %312 = arith.mulf %284, %293 : vector<2x16xf32>
    %313 = arith.mulf %302, %311 : vector<2x16xf32>
    %314 = arith.mulf %312, %313 : vector<2x16xf32>
    %cst_53 = arith.constant dense<0.000000e+00> : vector<2x128xf32>
    %315 = tpu.matmul %314, %4, %cst_53 {dimension_numbers = #tpu.dot_dimension_numbers<[1], [0], [0], [1], [0, 0, 1, 1], [], []>} : vector<2x16xf32>, vector<16x128xf32>, vector<2x128xf32> -> vector<2x128xf32>
    %316 = arith.mulf %315, %315 : vector<2x128xf32>
    %317 = vector.extract_strided_slice %316 {offsets = [0, 0], sizes = [2, 64], strides = [1, 1]} : vector<2x128xf32> to vector<2x64xf32>
    %318 = vector.extract_strided_slice %316 {offsets = [0, 64], sizes = [2, 64], strides = [1, 1]} : vector<2x128xf32> to vector<2x64xf32>
    %319 = arith.addf %317, %318 : vector<2x64xf32>
    %cst_54 = arith.constant dense<0.000000e+00> : vector<2x128xf32>
    %320 = tpu.matmul %319, %5, %cst_54 {dimension_numbers = #tpu.dot_dimension_numbers<[1], [0], [0], [1], [0, 0, 1, 1], [], []>} : vector<2x64xf32>, vector<64x128xf32>, vector<2x128xf32> -> vector<2x128xf32>
    %321 = vector.broadcast %6 : vector<1x128xf32> to vector<2x128xf32>
    %322 = arith.addf %320, %321 : vector<2x128xf32>
    %323 = arith.negf %322 : vector<2x128xf32>
    %324 = math.exp %323 : vector<2x128xf32>
    %cst_55 = arith.constant 1.000000e+00 : f32
    %325 = vector.broadcast %cst_55 : f32 to vector<2x128xf32>
    %326 = arith.addf %325, %324 : vector<2x128xf32>
    %327 = arith.divf %325, %326 : vector<2x128xf32>
    %328 = vector.extract_strided_slice %327 {offsets = [0, 0], sizes = [2, 32], strides = [1, 1]} : vector<2x128xf32> to vector<2x32xf32>
    %329 = vector.extract_strided_slice %327 {offsets = [0, 32], sizes = [2, 32], strides = [1, 1]} : vector<2x128xf32> to vector<2x32xf32>
    %330 = vector.extract_strided_slice %327 {offsets = [0, 96], sizes = [2, 32], strides = [1, 1]} : vector<2x128xf32> to vector<2x32xf32>
    %331 = vector.extract_strided_slice %322 {offsets = [0, 64], sizes = [2, 32], strides = [1, 1]} : vector<2x128xf32> to vector<2x32xf32>
    %332 = math.tanh %331 : vector<2x32xf32>
    %333 = arith.mulf %328, %260 : vector<2x32xf32>
    %334 = arith.mulf %329, %332 : vector<2x32xf32>
    %335 = arith.addf %333, %334 : vector<2x32xf32>
    %336 = math.tanh %335 : vector<2x32xf32>
    %337 = arith.mulf %330, %336 : vector<2x32xf32>
    %338 = arith.index_cast %c3_i32 : i32 to index
    %c0_56 = arith.constant 0 : index
    %c0_57 = arith.constant 0 : index
    %339 = vector.load %arg6[%338, %c0_56, %c0_57] : memref<8x2x32xf32, #tpu.memory_space<vmem>>, vector<1x2x32xf32>
    %340 = vector.shape_cast %339 : vector<1x2x32xf32> to vector<2x32xf32>
    %341 = vector.shape_cast %337 : vector<2x32xf32> to vector<1x2x32xf32>
    tpu.vector_store %arg6[%338, %c0_56, %c0_57], %341 {strides = array<i32>} : memref<8x2x32xf32, #tpu.memory_space<vmem>>, vector<1x2x32xf32>,
    %c4_i32_58 = arith.constant 4 : i32
    %cst_59 = arith.constant dense<0.000000e+00> : vector<2x4xf32>
    %342 = tpu.matmul %337, %3, %cst_59 {dimension_numbers = #tpu.dot_dimension_numbers<[1], [0], [0], [1], [0, 0, 1, 1], [], []>} : vector<2x32xf32>, vector<32x4xf32>, vector<2x4xf32> -> vector<2x4xf32>
    %343 = arith.index_cast %c4_i32_58 : i32 to index
    %c0_60 = arith.constant 0 : index
    %c0_61 = arith.constant 0 : index
    %344 = vector.load %arg1[%343, %c0_60, %c0_61] : memref<8x2x4xf32, #tpu.memory_space<vmem>>, vector<1x2x4xf32>
    %345 = vector.shape_cast %344 : vector<1x2x4xf32> to vector<2x4xf32>
    %346 = arith.addf %342, %345 : vector<2x4xf32>
    %cst_62 = arith.constant 5.000000e-01 : f32
    %347 = vector.broadcast %cst_62 : f32 to vector<2x4xf32>
    %348 = arith.mulf %347, %346 : vector<2x4xf32>
    %349 = math.cos %348 : vector<2x4xf32>
    %350 = math.sin %348 : vector<2x4xf32>
    %351 = vector.extract_strided_slice %349 {offsets = [0, 0], sizes = [2, 1], strides = [1, 1]} : vector<2x4xf32> to vector<2x1xf32>
    %352 = vector.broadcast %351 : vector<2x1xf32> to vector<2x16xf32>
    %353 = vector.broadcast %33 : vector<1x16xf32> to vector<2x16xf32>
    %354 = arith.mulf %352, %353 : vector<2x16xf32>
    %355 = vector.extract_strided_slice %350 {offsets = [0, 0], sizes = [2, 1], strides = [1, 1]} : vector<2x4xf32> to vector<2x1xf32>
    %356 = vector.broadcast %355 : vector<2x1xf32> to vector<2x16xf32>
    %357 = vector.broadcast %13 : vector<1x16xf32> to vector<2x16xf32>
    %358 = arith.mulf %356, %357 : vector<2x16xf32>
    %359 = arith.addf %354, %358 : vector<2x16xf32>
    %360 = vector.extract_strided_slice %349 {offsets = [0, 1], sizes = [2, 1], strides = [1, 1]} : vector<2x4xf32> to vector<2x1xf32>
    %361 = vector.broadcast %360 : vector<2x1xf32> to vector<2x16xf32>
    %362 = vector.broadcast %35 : vector<1x16xf32> to vector<2x16xf32>
    %363 = arith.mulf %361, %362 : vector<2x16xf32>
    %364 = vector.extract_strided_slice %350 {offsets = [0, 1], sizes = [2, 1], strides = [1, 1]} : vector<2x4xf32> to vector<2x1xf32>
    %365 = vector.broadcast %364 : vector<2x1xf32> to vector<2x16xf32>
    %366 = vector.broadcast %19 : vector<1x16xf32> to vector<2x16xf32>
    %367 = arith.mulf %365, %366 : vector<2x16xf32>
    %368 = arith.addf %363, %367 : vector<2x16xf32>
    %369 = vector.extract_strided_slice %349 {offsets = [0, 2], sizes = [2, 1], strides = [1, 1]} : vector<2x4xf32> to vector<2x1xf32>
    %370 = vector.broadcast %369 : vector<2x1xf32> to vector<2x16xf32>
    %371 = vector.broadcast %37 : vector<1x16xf32> to vector<2x16xf32>
    %372 = arith.mulf %370, %371 : vector<2x16xf32>
    %373 = vector.extract_strided_slice %350 {offsets = [0, 2], sizes = [2, 1], strides = [1, 1]} : vector<2x4xf32> to vector<2x1xf32>
    %374 = vector.broadcast %373 : vector<2x1xf32> to vector<2x16xf32>
    %375 = vector.broadcast %25 : vector<1x16xf32> to vector<2x16xf32>
    %376 = arith.mulf %374, %375 : vector<2x16xf32>
    %377 = arith.addf %372, %376 : vector<2x16xf32>
    %378 = vector.extract_strided_slice %349 {offsets = [0, 3], sizes = [2, 1], strides = [1, 1]} : vector<2x4xf32> to vector<2x1xf32>
    %379 = vector.broadcast %378 : vector<2x1xf32> to vector<2x16xf32>
    %380 = vector.broadcast %39 : vector<1x16xf32> to vector<2x16xf32>
    %381 = arith.mulf %379, %380 : vector<2x16xf32>
    %382 = vector.extract_strided_slice %350 {offsets = [0, 3], sizes = [2, 1], strides = [1, 1]} : vector<2x4xf32> to vector<2x1xf32>
    %383 = vector.broadcast %382 : vector<2x1xf32> to vector<2x16xf32>
    %384 = vector.broadcast %31 : vector<1x16xf32> to vector<2x16xf32>
    %385 = arith.mulf %383, %384 : vector<2x16xf32>
    %386 = arith.addf %381, %385 : vector<2x16xf32>
    %387 = arith.mulf %359, %368 : vector<2x16xf32>
    %388 = arith.mulf %377, %386 : vector<2x16xf32>
    %389 = arith.mulf %387, %388 : vector<2x16xf32>
    %cst_63 = arith.constant dense<0.000000e+00> : vector<2x128xf32>
    %390 = tpu.matmul %389, %4, %cst_63 {dimension_numbers = #tpu.dot_dimension_numbers<[1], [0], [0], [1], [0, 0, 1, 1], [], []>} : vector<2x16xf32>, vector<16x128xf32>, vector<2x128xf32> -> vector<2x128xf32>
    %391 = arith.mulf %390, %390 : vector<2x128xf32>
    %392 = vector.extract_strided_slice %391 {offsets = [0, 0], sizes = [2, 64], strides = [1, 1]} : vector<2x128xf32> to vector<2x64xf32>
    %393 = vector.extract_strided_slice %391 {offsets = [0, 64], sizes = [2, 64], strides = [1, 1]} : vector<2x128xf32> to vector<2x64xf32>
    %394 = arith.addf %392, %393 : vector<2x64xf32>
    %cst_64 = arith.constant dense<0.000000e+00> : vector<2x128xf32>
    %395 = tpu.matmul %394, %5, %cst_64 {dimension_numbers = #tpu.dot_dimension_numbers<[1], [0], [0], [1], [0, 0, 1, 1], [], []>} : vector<2x64xf32>, vector<64x128xf32>, vector<2x128xf32> -> vector<2x128xf32>
    %396 = vector.broadcast %6 : vector<1x128xf32> to vector<2x128xf32>
    %397 = arith.addf %395, %396 : vector<2x128xf32>
    %398 = arith.negf %397 : vector<2x128xf32>
    %399 = math.exp %398 : vector<2x128xf32>
    %cst_65 = arith.constant 1.000000e+00 : f32
    %400 = vector.broadcast %cst_65 : f32 to vector<2x128xf32>
    %401 = arith.addf %400, %399 : vector<2x128xf32>
    %402 = arith.divf %400, %401 : vector<2x128xf32>
    %403 = vector.extract_strided_slice %402 {offsets = [0, 0], sizes = [2, 32], strides = [1, 1]} : vector<2x128xf32> to vector<2x32xf32>
    %404 = vector.extract_strided_slice %402 {offsets = [0, 32], sizes = [2, 32], strides = [1, 1]} : vector<2x128xf32> to vector<2x32xf32>
    %405 = vector.extract_strided_slice %402 {offsets = [0, 96], sizes = [2, 32], strides = [1, 1]} : vector<2x128xf32> to vector<2x32xf32>
    %406 = vector.extract_strided_slice %397 {offsets = [0, 64], sizes = [2, 32], strides = [1, 1]} : vector<2x128xf32> to vector<2x32xf32>
    %407 = math.tanh %406 : vector<2x32xf32>
    %408 = arith.mulf %403, %335 : vector<2x32xf32>
    %409 = arith.mulf %404, %407 : vector<2x32xf32>
    %410 = arith.addf %408, %409 : vector<2x32xf32>
    %411 = math.tanh %410 : vector<2x32xf32>
    %412 = arith.mulf %405, %411 : vector<2x32xf32>
    %413 = arith.index_cast %c4_i32_58 : i32 to index
    %c0_66 = arith.constant 0 : index
    %c0_67 = arith.constant 0 : index
    %414 = vector.load %arg6[%413, %c0_66, %c0_67] : memref<8x2x32xf32, #tpu.memory_space<vmem>>, vector<1x2x32xf32>
    %415 = vector.shape_cast %414 : vector<1x2x32xf32> to vector<2x32xf32>
    %416 = vector.shape_cast %412 : vector<2x32xf32> to vector<1x2x32xf32>
    tpu.vector_store %arg6[%413, %c0_66, %c0_67], %416 {strides = array<i32>} : memref<8x2x32xf32, #tpu.memory_space<vmem>>, vector<1x2x32xf32>,
    %c5_i32 = arith.constant 5 : i32
    %cst_68 = arith.constant dense<0.000000e+00> : vector<2x4xf32>
    %417 = tpu.matmul %412, %3, %cst_68 {dimension_numbers = #tpu.dot_dimension_numbers<[1], [0], [0], [1], [0, 0, 1, 1], [], []>} : vector<2x32xf32>, vector<32x4xf32>, vector<2x4xf32> -> vector<2x4xf32>
    %418 = arith.index_cast %c5_i32 : i32 to index
    %c0_69 = arith.constant 0 : index
    %c0_70 = arith.constant 0 : index
    %419 = vector.load %arg1[%418, %c0_69, %c0_70] : memref<8x2x4xf32, #tpu.memory_space<vmem>>, vector<1x2x4xf32>
    %420 = vector.shape_cast %419 : vector<1x2x4xf32> to vector<2x4xf32>
    %421 = arith.addf %417, %420 : vector<2x4xf32>
    %cst_71 = arith.constant 5.000000e-01 : f32
    %422 = vector.broadcast %cst_71 : f32 to vector<2x4xf32>
    %423 = arith.mulf %422, %421 : vector<2x4xf32>
    %424 = math.cos %423 : vector<2x4xf32>
    %425 = math.sin %423 : vector<2x4xf32>
    %426 = vector.extract_strided_slice %424 {offsets = [0, 0], sizes = [2, 1], strides = [1, 1]} : vector<2x4xf32> to vector<2x1xf32>
    %427 = vector.broadcast %426 : vector<2x1xf32> to vector<2x16xf32>
    %428 = vector.broadcast %33 : vector<1x16xf32> to vector<2x16xf32>
    %429 = arith.mulf %427, %428 : vector<2x16xf32>
    %430 = vector.extract_strided_slice %425 {offsets = [0, 0], sizes = [2, 1], strides = [1, 1]} : vector<2x4xf32> to vector<2x1xf32>
    %431 = vector.broadcast %430 : vector<2x1xf32> to vector<2x16xf32>
    %432 = vector.broadcast %13 : vector<1x16xf32> to vector<2x16xf32>
    %433 = arith.mulf %431, %432 : vector<2x16xf32>
    %434 = arith.addf %429, %433 : vector<2x16xf32>
    %435 = vector.extract_strided_slice %424 {offsets = [0, 1], sizes = [2, 1], strides = [1, 1]} : vector<2x4xf32> to vector<2x1xf32>
    %436 = vector.broadcast %435 : vector<2x1xf32> to vector<2x16xf32>
    %437 = vector.broadcast %35 : vector<1x16xf32> to vector<2x16xf32>
    %438 = arith.mulf %436, %437 : vector<2x16xf32>
    %439 = vector.extract_strided_slice %425 {offsets = [0, 1], sizes = [2, 1], strides = [1, 1]} : vector<2x4xf32> to vector<2x1xf32>
    %440 = vector.broadcast %439 : vector<2x1xf32> to vector<2x16xf32>
    %441 = vector.broadcast %19 : vector<1x16xf32> to vector<2x16xf32>
    %442 = arith.mulf %440, %441 : vector<2x16xf32>
    %443 = arith.addf %438, %442 : vector<2x16xf32>
    %444 = vector.extract_strided_slice %424 {offsets = [0, 2], sizes = [2, 1], strides = [1, 1]} : vector<2x4xf32> to vector<2x1xf32>
    %445 = vector.broadcast %444 : vector<2x1xf32> to vector<2x16xf32>
    %446 = vector.broadcast %37 : vector<1x16xf32> to vector<2x16xf32>
    %447 = arith.mulf %445, %446 : vector<2x16xf32>
    %448 = vector.extract_strided_slice %425 {offsets = [0, 2], sizes = [2, 1], strides = [1, 1]} : vector<2x4xf32> to vector<2x1xf32>
    %449 = vector.broadcast %448 : vector<2x1xf32> to vector<2x16xf32>
    %450 = vector.broadcast %25 : vector<1x16xf32> to vector<2x16xf32>
    %451 = arith.mulf %449, %450 : vector<2x16xf32>
    %452 = arith.addf %447, %451 : vector<2x16xf32>
    %453 = vector.extract_strided_slice %424 {offsets = [0, 3], sizes = [2, 1], strides = [1, 1]} : vector<2x4xf32> to vector<2x1xf32>
    %454 = vector.broadcast %453 : vector<2x1xf32> to vector<2x16xf32>
    %455 = vector.broadcast %39 : vector<1x16xf32> to vector<2x16xf32>
    %456 = arith.mulf %454, %455 : vector<2x16xf32>
    %457 = vector.extract_strided_slice %425 {offsets = [0, 3], sizes = [2, 1], strides = [1, 1]} : vector<2x4xf32> to vector<2x1xf32>
    %458 = vector.broadcast %457 : vector<2x1xf32> to vector<2x16xf32>
    %459 = vector.broadcast %31 : vector<1x16xf32> to vector<2x16xf32>
    %460 = arith.mulf %458, %459 : vector<2x16xf32>
    %461 = arith.addf %456, %460 : vector<2x16xf32>
    %462 = arith.mulf %434, %443 : vector<2x16xf32>
    %463 = arith.mulf %452, %461 : vector<2x16xf32>
    %464 = arith.mulf %462, %463 : vector<2x16xf32>
    %cst_72 = arith.constant dense<0.000000e+00> : vector<2x128xf32>
    %465 = tpu.matmul %464, %4, %cst_72 {dimension_numbers = #tpu.dot_dimension_numbers<[1], [0], [0], [1], [0, 0, 1, 1], [], []>} : vector<2x16xf32>, vector<16x128xf32>, vector<2x128xf32> -> vector<2x128xf32>
    %466 = arith.mulf %465, %465 : vector<2x128xf32>
    %467 = vector.extract_strided_slice %466 {offsets = [0, 0], sizes = [2, 64], strides = [1, 1]} : vector<2x128xf32> to vector<2x64xf32>
    %468 = vector.extract_strided_slice %466 {offsets = [0, 64], sizes = [2, 64], strides = [1, 1]} : vector<2x128xf32> to vector<2x64xf32>
    %469 = arith.addf %467, %468 : vector<2x64xf32>
    %cst_73 = arith.constant dense<0.000000e+00> : vector<2x128xf32>
    %470 = tpu.matmul %469, %5, %cst_73 {dimension_numbers = #tpu.dot_dimension_numbers<[1], [0], [0], [1], [0, 0, 1, 1], [], []>} : vector<2x64xf32>, vector<64x128xf32>, vector<2x128xf32> -> vector<2x128xf32>
    %471 = vector.broadcast %6 : vector<1x128xf32> to vector<2x128xf32>
    %472 = arith.addf %470, %471 : vector<2x128xf32>
    %473 = arith.negf %472 : vector<2x128xf32>
    %474 = math.exp %473 : vector<2x128xf32>
    %cst_74 = arith.constant 1.000000e+00 : f32
    %475 = vector.broadcast %cst_74 : f32 to vector<2x128xf32>
    %476 = arith.addf %475, %474 : vector<2x128xf32>
    %477 = arith.divf %475, %476 : vector<2x128xf32>
    %478 = vector.extract_strided_slice %477 {offsets = [0, 0], sizes = [2, 32], strides = [1, 1]} : vector<2x128xf32> to vector<2x32xf32>
    %479 = vector.extract_strided_slice %477 {offsets = [0, 32], sizes = [2, 32], strides = [1, 1]} : vector<2x128xf32> to vector<2x32xf32>
    %480 = vector.extract_strided_slice %477 {offsets = [0, 96], sizes = [2, 32], strides = [1, 1]} : vector<2x128xf32> to vector<2x32xf32>
    %481 = vector.extract_strided_slice %472 {offsets = [0, 64], sizes = [2, 32], strides = [1, 1]} : vector<2x128xf32> to vector<2x32xf32>
    %482 = math.tanh %481 : vector<2x32xf32>
    %483 = arith.mulf %478, %410 : vector<2x32xf32>
    %484 = arith.mulf %479, %482 : vector<2x32xf32>
    %485 = arith.addf %483, %484 : vector<2x32xf32>
    %486 = math.tanh %485 : vector<2x32xf32>
    %487 = arith.mulf %480, %486 : vector<2x32xf32>
    %488 = arith.index_cast %c5_i32 : i32 to index
    %c0_75 = arith.constant 0 : index
    %c0_76 = arith.constant 0 : index
    %489 = vector.load %arg6[%488, %c0_75, %c0_76] : memref<8x2x32xf32, #tpu.memory_space<vmem>>, vector<1x2x32xf32>
    %490 = vector.shape_cast %489 : vector<1x2x32xf32> to vector<2x32xf32>
    %491 = vector.shape_cast %487 : vector<2x32xf32> to vector<1x2x32xf32>
    tpu.vector_store %arg6[%488, %c0_75, %c0_76], %491 {strides = array<i32>} : memref<8x2x32xf32, #tpu.memory_space<vmem>>, vector<1x2x32xf32>,
    %c6_i32 = arith.constant 6 : i32
    %cst_77 = arith.constant dense<0.000000e+00> : vector<2x4xf32>
    %492 = tpu.matmul %487, %3, %cst_77 {dimension_numbers = #tpu.dot_dimension_numbers<[1], [0], [0], [1], [0, 0, 1, 1], [], []>} : vector<2x32xf32>, vector<32x4xf32>, vector<2x4xf32> -> vector<2x4xf32>
    %493 = arith.index_cast %c6_i32 : i32 to index
    %c0_78 = arith.constant 0 : index
    %c0_79 = arith.constant 0 : index
    %494 = vector.load %arg1[%493, %c0_78, %c0_79] : memref<8x2x4xf32, #tpu.memory_space<vmem>>, vector<1x2x4xf32>
    %495 = vector.shape_cast %494 : vector<1x2x4xf32> to vector<2x4xf32>
    %496 = arith.addf %492, %495 : vector<2x4xf32>
    %cst_80 = arith.constant 5.000000e-01 : f32
    %497 = vector.broadcast %cst_80 : f32 to vector<2x4xf32>
    %498 = arith.mulf %497, %496 : vector<2x4xf32>
    %499 = math.cos %498 : vector<2x4xf32>
    %500 = math.sin %498 : vector<2x4xf32>
    %501 = vector.extract_strided_slice %499 {offsets = [0, 0], sizes = [2, 1], strides = [1, 1]} : vector<2x4xf32> to vector<2x1xf32>
    %502 = vector.broadcast %501 : vector<2x1xf32> to vector<2x16xf32>
    %503 = vector.broadcast %33 : vector<1x16xf32> to vector<2x16xf32>
    %504 = arith.mulf %502, %503 : vector<2x16xf32>
    %505 = vector.extract_strided_slice %500 {offsets = [0, 0], sizes = [2, 1], strides = [1, 1]} : vector<2x4xf32> to vector<2x1xf32>
    %506 = vector.broadcast %505 : vector<2x1xf32> to vector<2x16xf32>
    %507 = vector.broadcast %13 : vector<1x16xf32> to vector<2x16xf32>
    %508 = arith.mulf %506, %507 : vector<2x16xf32>
    %509 = arith.addf %504, %508 : vector<2x16xf32>
    %510 = vector.extract_strided_slice %499 {offsets = [0, 1], sizes = [2, 1], strides = [1, 1]} : vector<2x4xf32> to vector<2x1xf32>
    %511 = vector.broadcast %510 : vector<2x1xf32> to vector<2x16xf32>
    %512 = vector.broadcast %35 : vector<1x16xf32> to vector<2x16xf32>
    %513 = arith.mulf %511, %512 : vector<2x16xf32>
    %514 = vector.extract_strided_slice %500 {offsets = [0, 1], sizes = [2, 1], strides = [1, 1]} : vector<2x4xf32> to vector<2x1xf32>
    %515 = vector.broadcast %514 : vector<2x1xf32> to vector<2x16xf32>
    %516 = vector.broadcast %19 : vector<1x16xf32> to vector<2x16xf32>
    %517 = arith.mulf %515, %516 : vector<2x16xf32>
    %518 = arith.addf %513, %517 : vector<2x16xf32>
    %519 = vector.extract_strided_slice %499 {offsets = [0, 2], sizes = [2, 1], strides = [1, 1]} : vector<2x4xf32> to vector<2x1xf32>
    %520 = vector.broadcast %519 : vector<2x1xf32> to vector<2x16xf32>
    %521 = vector.broadcast %37 : vector<1x16xf32> to vector<2x16xf32>
    %522 = arith.mulf %520, %521 : vector<2x16xf32>
    %523 = vector.extract_strided_slice %500 {offsets = [0, 2], sizes = [2, 1], strides = [1, 1]} : vector<2x4xf32> to vector<2x1xf32>
    %524 = vector.broadcast %523 : vector<2x1xf32> to vector<2x16xf32>
    %525 = vector.broadcast %25 : vector<1x16xf32> to vector<2x16xf32>
    %526 = arith.mulf %524, %525 : vector<2x16xf32>
    %527 = arith.addf %522, %526 : vector<2x16xf32>
    %528 = vector.extract_strided_slice %499 {offsets = [0, 3], sizes = [2, 1], strides = [1, 1]} : vector<2x4xf32> to vector<2x1xf32>
    %529 = vector.broadcast %528 : vector<2x1xf32> to vector<2x16xf32>
    %530 = vector.broadcast %39 : vector<1x16xf32> to vector<2x16xf32>
    %531 = arith.mulf %529, %530 : vector<2x16xf32>
    %532 = vector.extract_strided_slice %500 {offsets = [0, 3], sizes = [2, 1], strides = [1, 1]} : vector<2x4xf32> to vector<2x1xf32>
    %533 = vector.broadcast %532 : vector<2x1xf32> to vector<2x16xf32>
    %534 = vector.broadcast %31 : vector<1x16xf32> to vector<2x16xf32>
    %535 = arith.mulf %533, %534 : vector<2x16xf32>
    %536 = arith.addf %531, %535 : vector<2x16xf32>
    %537 = arith.mulf %509, %518 : vector<2x16xf32>
    %538 = arith.mulf %527, %536 : vector<2x16xf32>
    %539 = arith.mulf %537, %538 : vector<2x16xf32>
    %cst_81 = arith.constant dense<0.000000e+00> : vector<2x128xf32>
    %540 = tpu.matmul %539, %4, %cst_81 {dimension_numbers = #tpu.dot_dimension_numbers<[1], [0], [0], [1], [0, 0, 1, 1], [], []>} : vector<2x16xf32>, vector<16x128xf32>, vector<2x128xf32> -> vector<2x128xf32>
    %541 = arith.mulf %540, %540 : vector<2x128xf32>
    %542 = vector.extract_strided_slice %541 {offsets = [0, 0], sizes = [2, 64], strides = [1, 1]} : vector<2x128xf32> to vector<2x64xf32>
    %543 = vector.extract_strided_slice %541 {offsets = [0, 64], sizes = [2, 64], strides = [1, 1]} : vector<2x128xf32> to vector<2x64xf32>
    %544 = arith.addf %542, %543 : vector<2x64xf32>
    %cst_82 = arith.constant dense<0.000000e+00> : vector<2x128xf32>
    %545 = tpu.matmul %544, %5, %cst_82 {dimension_numbers = #tpu.dot_dimension_numbers<[1], [0], [0], [1], [0, 0, 1, 1], [], []>} : vector<2x64xf32>, vector<64x128xf32>, vector<2x128xf32> -> vector<2x128xf32>
    %546 = vector.broadcast %6 : vector<1x128xf32> to vector<2x128xf32>
    %547 = arith.addf %545, %546 : vector<2x128xf32>
    %548 = arith.negf %547 : vector<2x128xf32>
    %549 = math.exp %548 : vector<2x128xf32>
    %cst_83 = arith.constant 1.000000e+00 : f32
    %550 = vector.broadcast %cst_83 : f32 to vector<2x128xf32>
    %551 = arith.addf %550, %549 : vector<2x128xf32>
    %552 = arith.divf %550, %551 : vector<2x128xf32>
    %553 = vector.extract_strided_slice %552 {offsets = [0, 0], sizes = [2, 32], strides = [1, 1]} : vector<2x128xf32> to vector<2x32xf32>
    %554 = vector.extract_strided_slice %552 {offsets = [0, 32], sizes = [2, 32], strides = [1, 1]} : vector<2x128xf32> to vector<2x32xf32>
    %555 = vector.extract_strided_slice %552 {offsets = [0, 96], sizes = [2, 32], strides = [1, 1]} : vector<2x128xf32> to vector<2x32xf32>
    %556 = vector.extract_strided_slice %547 {offsets = [0, 64], sizes = [2, 32], strides = [1, 1]} : vector<2x128xf32> to vector<2x32xf32>
    %557 = math.tanh %556 : vector<2x32xf32>
    %558 = arith.mulf %553, %485 : vector<2x32xf32>
    %559 = arith.mulf %554, %557 : vector<2x32xf32>
    %560 = arith.addf %558, %559 : vector<2x32xf32>
    %561 = math.tanh %560 : vector<2x32xf32>
    %562 = arith.mulf %555, %561 : vector<2x32xf32>
    %563 = arith.index_cast %c6_i32 : i32 to index
    %c0_84 = arith.constant 0 : index
    %c0_85 = arith.constant 0 : index
    %564 = vector.load %arg6[%563, %c0_84, %c0_85] : memref<8x2x32xf32, #tpu.memory_space<vmem>>, vector<1x2x32xf32>
    %565 = vector.shape_cast %564 : vector<1x2x32xf32> to vector<2x32xf32>
    %566 = vector.shape_cast %562 : vector<2x32xf32> to vector<1x2x32xf32>
    tpu.vector_store %arg6[%563, %c0_84, %c0_85], %566 {strides = array<i32>} : memref<8x2x32xf32, #tpu.memory_space<vmem>>, vector<1x2x32xf32>,
    %c7_i32 = arith.constant 7 : i32
    %cst_86 = arith.constant dense<0.000000e+00> : vector<2x4xf32>
    %567 = tpu.matmul %562, %3, %cst_86 {dimension_numbers = #tpu.dot_dimension_numbers<[1], [0], [0], [1], [0, 0, 1, 1], [], []>} : vector<2x32xf32>, vector<32x4xf32>, vector<2x4xf32> -> vector<2x4xf32>
    %568 = arith.index_cast %c7_i32 : i32 to index
    %c0_87 = arith.constant 0 : index
    %c0_88 = arith.constant 0 : index
    %569 = vector.load %arg1[%568, %c0_87, %c0_88] : memref<8x2x4xf32, #tpu.memory_space<vmem>>, vector<1x2x4xf32>
    %570 = vector.shape_cast %569 : vector<1x2x4xf32> to vector<2x4xf32>
    %571 = arith.addf %567, %570 : vector<2x4xf32>
    %cst_89 = arith.constant 5.000000e-01 : f32
    %572 = vector.broadcast %cst_89 : f32 to vector<2x4xf32>
    %573 = arith.mulf %572, %571 : vector<2x4xf32>
    %574 = math.cos %573 : vector<2x4xf32>
    %575 = math.sin %573 : vector<2x4xf32>
    %576 = vector.extract_strided_slice %574 {offsets = [0, 0], sizes = [2, 1], strides = [1, 1]} : vector<2x4xf32> to vector<2x1xf32>
    %577 = vector.broadcast %576 : vector<2x1xf32> to vector<2x16xf32>
    %578 = vector.broadcast %33 : vector<1x16xf32> to vector<2x16xf32>
    %579 = arith.mulf %577, %578 : vector<2x16xf32>
    %580 = vector.extract_strided_slice %575 {offsets = [0, 0], sizes = [2, 1], strides = [1, 1]} : vector<2x4xf32> to vector<2x1xf32>
    %581 = vector.broadcast %580 : vector<2x1xf32> to vector<2x16xf32>
    %582 = vector.broadcast %13 : vector<1x16xf32> to vector<2x16xf32>
    %583 = arith.mulf %581, %582 : vector<2x16xf32>
    %584 = arith.addf %579, %583 : vector<2x16xf32>
    %585 = vector.extract_strided_slice %574 {offsets = [0, 1], sizes = [2, 1], strides = [1, 1]} : vector<2x4xf32> to vector<2x1xf32>
    %586 = vector.broadcast %585 : vector<2x1xf32> to vector<2x16xf32>
    %587 = vector.broadcast %35 : vector<1x16xf32> to vector<2x16xf32>
    %588 = arith.mulf %586, %587 : vector<2x16xf32>
    %589 = vector.extract_strided_slice %575 {offsets = [0, 1], sizes = [2, 1], strides = [1, 1]} : vector<2x4xf32> to vector<2x1xf32>
    %590 = vector.broadcast %589 : vector<2x1xf32> to vector<2x16xf32>
    %591 = vector.broadcast %19 : vector<1x16xf32> to vector<2x16xf32>
    %592 = arith.mulf %590, %591 : vector<2x16xf32>
    %593 = arith.addf %588, %592 : vector<2x16xf32>
    %594 = vector.extract_strided_slice %574 {offsets = [0, 2], sizes = [2, 1], strides = [1, 1]} : vector<2x4xf32> to vector<2x1xf32>
    %595 = vector.broadcast %594 : vector<2x1xf32> to vector<2x16xf32>
    %596 = vector.broadcast %37 : vector<1x16xf32> to vector<2x16xf32>
    %597 = arith.mulf %595, %596 : vector<2x16xf32>
    %598 = vector.extract_strided_slice %575 {offsets = [0, 2], sizes = [2, 1], strides = [1, 1]} : vector<2x4xf32> to vector<2x1xf32>
    %599 = vector.broadcast %598 : vector<2x1xf32> to vector<2x16xf32>
    %600 = vector.broadcast %25 : vector<1x16xf32> to vector<2x16xf32>
    %601 = arith.mulf %599, %600 : vector<2x16xf32>
    %602 = arith.addf %597, %601 : vector<2x16xf32>
    %603 = vector.extract_strided_slice %574 {offsets = [0, 3], sizes = [2, 1], strides = [1, 1]} : vector<2x4xf32> to vector<2x1xf32>
    %604 = vector.broadcast %603 : vector<2x1xf32> to vector<2x16xf32>
    %605 = vector.broadcast %39 : vector<1x16xf32> to vector<2x16xf32>
    %606 = arith.mulf %604, %605 : vector<2x16xf32>
    %607 = vector.extract_strided_slice %575 {offsets = [0, 3], sizes = [2, 1], strides = [1, 1]} : vector<2x4xf32> to vector<2x1xf32>
    %608 = vector.broadcast %607 : vector<2x1xf32> to vector<2x16xf32>
    %609 = vector.broadcast %31 : vector<1x16xf32> to vector<2x16xf32>
    %610 = arith.mulf %608, %609 : vector<2x16xf32>
    %611 = arith.addf %606, %610 : vector<2x16xf32>
    %612 = arith.mulf %584, %593 : vector<2x16xf32>
    %613 = arith.mulf %602, %611 : vector<2x16xf32>
    %614 = arith.mulf %612, %613 : vector<2x16xf32>
    %cst_90 = arith.constant dense<0.000000e+00> : vector<2x128xf32>
    %615 = tpu.matmul %614, %4, %cst_90 {dimension_numbers = #tpu.dot_dimension_numbers<[1], [0], [0], [1], [0, 0, 1, 1], [], []>} : vector<2x16xf32>, vector<16x128xf32>, vector<2x128xf32> -> vector<2x128xf32>
    %616 = arith.mulf %615, %615 : vector<2x128xf32>
    %617 = vector.extract_strided_slice %616 {offsets = [0, 0], sizes = [2, 64], strides = [1, 1]} : vector<2x128xf32> to vector<2x64xf32>
    %618 = vector.extract_strided_slice %616 {offsets = [0, 64], sizes = [2, 64], strides = [1, 1]} : vector<2x128xf32> to vector<2x64xf32>
    %619 = arith.addf %617, %618 : vector<2x64xf32>
    %cst_91 = arith.constant dense<0.000000e+00> : vector<2x128xf32>
    %620 = tpu.matmul %619, %5, %cst_91 {dimension_numbers = #tpu.dot_dimension_numbers<[1], [0], [0], [1], [0, 0, 1, 1], [], []>} : vector<2x64xf32>, vector<64x128xf32>, vector<2x128xf32> -> vector<2x128xf32>
    %621 = vector.broadcast %6 : vector<1x128xf32> to vector<2x128xf32>
    %622 = arith.addf %620, %621 : vector<2x128xf32>
    %623 = arith.negf %622 : vector<2x128xf32>
    %624 = math.exp %623 : vector<2x128xf32>
    %cst_92 = arith.constant 1.000000e+00 : f32
    %625 = vector.broadcast %cst_92 : f32 to vector<2x128xf32>
    %626 = arith.addf %625, %624 : vector<2x128xf32>
    %627 = arith.divf %625, %626 : vector<2x128xf32>
    %628 = vector.extract_strided_slice %627 {offsets = [0, 0], sizes = [2, 32], strides = [1, 1]} : vector<2x128xf32> to vector<2x32xf32>
    %629 = vector.extract_strided_slice %627 {offsets = [0, 32], sizes = [2, 32], strides = [1, 1]} : vector<2x128xf32> to vector<2x32xf32>
    %630 = vector.extract_strided_slice %627 {offsets = [0, 96], sizes = [2, 32], strides = [1, 1]} : vector<2x128xf32> to vector<2x32xf32>
    %631 = vector.extract_strided_slice %622 {offsets = [0, 64], sizes = [2, 32], strides = [1, 1]} : vector<2x128xf32> to vector<2x32xf32>
    %632 = math.tanh %631 : vector<2x32xf32>
    %633 = arith.mulf %628, %560 : vector<2x32xf32>
    %634 = arith.mulf %629, %632 : vector<2x32xf32>
    %635 = arith.addf %633, %634 : vector<2x32xf32>
    %636 = math.tanh %635 : vector<2x32xf32>
    %637 = arith.mulf %630, %636 : vector<2x32xf32>
    %638 = arith.index_cast %c7_i32 : i32 to index
    %c0_93 = arith.constant 0 : index
    %c0_94 = arith.constant 0 : index
    %639 = vector.load %arg6[%638, %c0_93, %c0_94] : memref<8x2x32xf32, #tpu.memory_space<vmem>>, vector<1x2x32xf32>
    %640 = vector.shape_cast %639 : vector<1x2x32xf32> to vector<2x32xf32>
    %641 = vector.shape_cast %637 : vector<2x32xf32> to vector<1x2x32xf32>
    tpu.vector_store %arg6[%638, %c0_93, %c0_94], %641 {strides = array<i32>} : memref<8x2x32xf32, #tpu.memory_space<vmem>>, vector<1x2x32xf32>,
    %c8_i32_95 = arith.constant 8 : i32
    %c0_96 = arith.constant 0 : index
    %c0_97 = arith.constant 0 : index
    %642 = vector.load %arg9[%c0_96, %c0_97] : memref<2x32xf32, #tpu.memory_space<vmem>>, vector<2x32xf32>
    tpu.vector_store %arg9[%c0_96, %c0_97], %637 {strides = array<i32>} : memref<2x32xf32, #tpu.memory_space<vmem>>, vector<2x32xf32>,
    %c0_98 = arith.constant 0 : index
    %c0_99 = arith.constant 0 : index
    %643 = vector.load %arg10[%c0_98, %c0_99] : memref<2x32xf32, #tpu.memory_space<vmem>>, vector<2x32xf32>
    tpu.vector_store %arg10[%c0_98, %c0_99], %635 {strides = array<i32>} : memref<2x32xf32, #tpu.memory_space<vmem>>, vector<2x32xf32>,
    %c0_i32_100 = arith.constant 0 : i32
    %644 = arith.cmpi eq, %arg0, %c0_i32_100 : i32
    %645 = arith.extui %644 : i1 to i32
    %c0_i32_101 = arith.constant 0 : i32
    %646 = arith.cmpi ne, %645, %c0_i32_101 : i32
    scf.if %646 {
      %c0_102 = arith.constant 0 : index
      %c0_103 = arith.constant 0 : index
      %647 = vector.load %arg7[%c0_102, %c0_103] : memref<2x32xf32, #tpu.memory_space<vmem>>, vector<2x32xf32>
      tpu.vector_store %arg7[%c0_102, %c0_103], %637 {strides = array<i32>} : memref<2x32xf32, #tpu.memory_space<vmem>>, vector<2x32xf32>,
      %c0_104 = arith.constant 0 : index
      %c0_105 = arith.constant 0 : index
      %648 = vector.load %arg8[%c0_104, %c0_105] : memref<2x32xf32, #tpu.memory_space<vmem>>, vector<2x32xf32>
      tpu.vector_store %arg8[%c0_104, %c0_105], %635 {strides = array<i32>} : memref<2x32xf32, #tpu.memory_space<vmem>>, vector<2x32xf32>,
    } else {
    }
    return
  }
  func.func @transform_0(%arg0: i32) -> (i32, i32, i32) {
    %c0_i32 = arith.constant 0 : i32
    %c0_i32_0 = arith.constant 0 : i32
    %c0_i32_1 = arith.constant 0 : i32
    return %arg0, %c0_i32, %c0_i32_0 : i32, i32, i32
  }
  func.func @transform_1(%arg0: i32) -> (i32, i32) {
    %c0_i32 = arith.constant 0 : i32
    %c0_i32_0 = arith.constant 0 : i32
    %c0_i32_1 = arith.constant 0 : i32
    return %c0_i32, %c0_i32_0 : i32, i32
  }
  func.func @transform_2(%arg0: i32) -> (i32, i32) {
    %c0_i32 = arith.constant 0 : i32
    %c0_i32_0 = arith.constant 0 : i32
    %c0_i32_1 = arith.constant 0 : i32
    return %c0_i32, %c0_i32_0 : i32, i32
  }
  func.func @transform_3(%arg0: i32) -> (i32, i32) {
    %c0_i32 = arith.constant 0 : i32
    %c0_i32_0 = arith.constant 0 : i32
    %c0_i32_1 = arith.constant 0 : i32
    return %c0_i32, %c0_i32_0 : i32, i32
  }
  func.func @transform_4(%arg0: i32) -> (i32, i32) {
    %c0_i32 = arith.constant 0 : i32
    %c0_i32_0 = arith.constant 0 : i32
    %c0_i32_1 = arith.constant 0 : i32
    return %c0_i32, %c0_i32_0 : i32, i32
  }
  func.func @transform_5(%arg0: i32) -> (i32, i32, i32) {
    %c0_i32 = arith.constant 0 : i32
    %c0_i32_0 = arith.constant 0 : i32
    %c0_i32_1 = arith.constant 0 : i32
    return %arg0, %c0_i32, %c0_i32_0 : i32, i32, i32
  }
  func.func @transform_6(%arg0: i32) -> (i32, i32) {
    %c0_i32 = arith.constant 0 : i32
    %c0_i32_0 = arith.constant 0 : i32
    %c0_i32_1 = arith.constant 0 : i32
    return %c0_i32, %c0_i32_0 : i32, i32
  }
  func.func @transform_7(%arg0: i32) -> (i32, i32) {
    %c0_i32 = arith.constant 0 : i32
    %c0_i32_0 = arith.constant 0 : i32
    %c0_i32_1 = arith.constant 0 : i32
    return %c0_i32, %c0_i32_0 : i32, i32
  }
}

</mosaic_0001>

<llo_original>
// kernel: tpu_custom_call.1
$region0: #{tpu_custom_call.1}
  #allocation0 [shape = 'u32[]', space=smem, size = 0x4, offset = 0x4, fixed_abs, tag = 'smem constant byte address 0x4 - core index']
  #allocation1 [shape = 'u32[144,128]{1,0:T(1,128)}', space=vmem, size = 0x12000, scoped, tag = 'internal scratch']
  #allocation2 [shape = 'f32[2,32]{1,0:T(2,128)}', space=vmem, size = 0x400, scoped, tag = 'scratch operand']
  #allocation3 [shape = 'f32[2,32]{1,0:T(2,128)}', space=vmem, size = 0x400, scoped, tag = 'scratch operand']
  %s0 = inlined_call_operand.vmem [shape: f32[8,2,4], index: 0, kind: input, shape index: {}]
  %s1 = inlined_call_operand.vmem [shape: f32[32,4], index: 1, kind: input, shape index: {}]
  %s2 = inlined_call_operand.hbm [shape: f32[16,128], index: 2, kind: input, shape index: {}]
  %s3 = inlined_call_operand.vmem [shape: f32[64,128], index: 3, kind: input, shape index: {}]
  %s4 = inlined_call_operand.vmem [shape: f32[1,128], index: 4, kind: input, shape index: {}]
  %s5 = inlined_call_operand.hbm [shape: f32[8,2,32], index: 5, kind: output, shape index: {0}]
  %s6 = inlined_call_operand.hbm [shape: f32[2,32], index: 6, kind: output, shape index: {1}]
  %s7 = inlined_call_operand.hbm [shape: f32[2,32], index: 7, kind: output, shape index: {2}]
  %8 = xla_tuple %s5, %s6, %s7
  %s9 = sld [smem:[#allocation0]]
  $region58: #{tpu_custom_call.1} parent=0
    _
  %s11 = ssub.s32 1, %s9
  %s12 = scalar_select 0, %s11, %s9
  $region1: #{tpu_custom_call.1} parent=0
    #allocation4 [shape = 'u8[8192]{0}', space=vmem, size = 0x2000, scoped, tag = 'input window, operand 2, single buffered']
    #allocation5 [shape = 's32[1]{0}', space=sflag, size = 0x4, scoped, tag = 'scoped memory for tpu_custom_call.1']
    #allocation6 [shape = 's32[1]{0}', space=sflag, size = 0x4, scoped, tag = 'scoped memory for tpu_custom_call.1']
    #allocation7 [shape = 'u8[8192]{0}', space=vmem, size = 0x2000, scoped, tag = 'output window, operand 0, single buffered']
    #allocation8 [shape = 'u8[1024]{0}', space=vmem, size = 0x400, scoped, tag = 'output window, operand 1, single buffered']
    #allocation9 [shape = 's32[1]{0}', space=sflag, size = 0x4, scoped, tag = 'scoped memory for tpu_custom_call.1']
    #allocation10 [shape = 'u8[1024]{0}', space=vmem, size = 0x400, scoped, tag = 'output window, operand 2, single buffered']
    %13 = vsyncpa [#allocation5], 0
    %14 = vsyncpa [#allocation6], 0
    %15 = vsyncpa [#allocation9], 0
    // Predicated region
    $region2: #{tpu_custom_call.1} parent=1 // pred_check
      _
    $region3: #{tpu_custom_call.1} parent=1 // pred_check_branch
      %17 = sbr.rel (0) target = $region5
    $region4: #{tpu_custom_call.1} parent=1 // pred_region
      _
    $region5: #{tpu_custom_call.1} parent=1 // pred_fallthru
      _
    // Predicated region
    $region6: #{tpu_custom_call.1} parent=1 // pred_check
      _
    $region7: #{tpu_custom_call.1} parent=1 // pred_check_branch
      %19 = sbr.rel (0) target = $region9
    $region8: #{tpu_custom_call.1} parent=1 // pred_region
      _
    $region9: #{tpu_custom_call.1} parent=1 // pred_fallthru
      _
    // Predicated region
    $region10: #{tpu_custom_call.1} parent=1 // pred_check
      _
    $region11: #{tpu_custom_call.1} parent=1 // pred_check_branch
      %21 = sbr.rel (0) target = $region13
    $region12: #{tpu_custom_call.1} parent=1 // pred_region
      %s23 = ssub.s32 256, 256
      %24 = vsyncadd [#allocation5], %s23
      %s25 = sshll.u32 [#allocation4], 4
      %s26 = int_to_ptr.vmem [resolvable:$true] %s25
      %31 = dma.hbm_to_vmem [thread:$0]  %s2, 256, %s26, [#allocation5], 128, 128, 8
    $region13: #{tpu_custom_call.1} parent=1 // pred_fallthru
      _
    // Predicated region
    $region14: #{tpu_custom_call.1} parent=1 // pred_check
      _
    $region15: #{tpu_custom_call.1} parent=1 // pred_check_branch
      %33 = sbr.rel (0) target = $region17
    $region16: #{tpu_custom_call.1} parent=1 // pred_region
      _
    $region17: #{tpu_custom_call.1} parent=1 // pred_fallthru
      _
    // Predicated region
    $region18: #{tpu_custom_call.1} parent=1 // pred_check
      _
    $region19: #{tpu_custom_call.1} parent=1 // pred_check_branch
      %35 = sbr.rel (0) target = $region21
    $region20: #{tpu_custom_call.1} parent=1 // pred_region
      _
    $region21: #{tpu_custom_call.1} parent=1 // pred_fallthru
      _
    // Predicated region
    $region22: #{tpu_custom_call.1} parent=1 // pred_check
      _
    $region23: #{tpu_custom_call.1} parent=1 // pred_check_branch
      %37 = sbr.rel (0) target = $region25
    $region24: #{tpu_custom_call.1} parent=1 // pred_region
      %38 = dma.done [#allocation5], 256
    $region25: #{tpu_custom_call.1} parent=1 // pred_fallthru
      _
    %p39 = scmp.eq.s32.totalorder 0, 0
    // Predicated region
    $region26: #{tpu_custom_call.1} parent=1 // pred_check
      %p40 = pneg %p39
    $region27: #{tpu_custom_call.1} parent=1 // pred_check_branch
      %42 = sbr.rel (%p40) target = $region29
    $region28: #{tpu_custom_call.1} parent=1 // pred_region
      %vm43 = vcmask 254976
      %44 = vst.msk [vmem:[#allocation2] sm:$0x3] %vm43, 0.0
      %45 = vst.msk [vmem:[#allocation3] sm:$0x3] %vm43, 0.0
    $region29: #{tpu_custom_call.1} parent=1 // pred_fallthru
      _
    %v46 = vld [vmem:[%s1] sm:$0xff]
    %v47 = vld [vmem:[%s1 + $0x8] sm:$0xff]
    %v48 = vld [vmem:[%s1 + $0x10] sm:$0xff]
    %v49 = vld [vmem:[%s1 + $0x18] sm:$0xff]
    %v50 = vld [vmem:[#allocation4] sm:$0xff]
    %v51 = vld [vmem:[#allocation4 + $0x8] sm:$0xff]
    %v52 = vld [vmem:[%s3] sm:$0xff]
    %v53 = vld [vmem:[%s3 + $0x8] sm:$0xff]
    %v54 = vld [vmem:[%s3 + $0x10] sm:$0xff]
    %v55 = vld [vmem:[%s3 + $0x18] sm:$0xff]
    %v56 = vld [vmem:[%s3 + $0x20] sm:$0xff]
    %v57 = vld [vmem:[%s3 + $0x28] sm:$0xff]
    %v58 = vld [vmem:[%s3 + $0x30] sm:$0xff]
    %v59 = vld [vmem:[%s3 + $0x38] sm:$0xff]
    %v60 = vld [vmem:[%s4] sm:$0x1]
    %v61 = vlaneseq
    %v62 = vand.u32 %v61, 127
    %v63 = vand.u32 %v62, 8
    %vm64 = vcmp.gt.s32.totalorder %v63, 0
    %v65 = vsel %vm64, 1, 0
    %v66 = vcvt.s32.f32 %v65
    %v67 = vand.u32 %v62, 4
    %vm68 = vcmp.gt.s32.totalorder %v67, 0
    %v69 = vsel %vm68, 1, 0
    %v70 = vcvt.s32.f32 %v69
    %v71 = vand.u32 %v62, 2
    %vm72 = vcmp.gt.s32.totalorder %v71, 0
    %v73 = vsel %vm72, 1, 0
    %v74 = vcvt.s32.f32 %v73
    %v75 = vand.u32 %v62, 1
    %vm76 = vcmp.gt.s32.totalorder %v75, 0
    %v77 = vsel %vm76, 1, 0
    %v78 = vcvt.s32.f32 %v77
    %v79 = vsub.f32 1.0, %v66
    %v80 = vsub.f32 1.0, %v70
    %v81 = vsub.f32 1.0, %v74
    %v82 = vsub.f32 1.0, %v78
    %v83 = vld [vmem:[#allocation2] sm:$0x3]
    %v84 = vld [vmem:[#allocation3] sm:$0x3]
    %v85 = vld [vmem:[%s0] sm:$0x3]
    %vm86 = vcmask 261120
    %v88 = vsel %vm86, %v83, 0
    %90 = vmatprep.subr.mxu0 0.0
    %91 = vmatpush1.msra.mxu0 %v46
    %92 = vmatprep.subr.mxu0 0.0
    %93 = vmatpush1.msra.mxu0 %v47
    %94 = vmatprep.subr.mxu0 0.0
    %95 = vmatpush1.msra.mxu0 %v48
    %96 = vmatprep.subr.mxu0 0.0
    %97 = vmatpush1.msra.mxu0 %v49
    %98 = vmatprep.subr.mxu0 0.0
    %99 = vmatpush1.msra.mxu0 0.0
    %100 = vmatprep.subr.mxu0 0.0
    %101 = vmatpush1.msra.mxu0 0.0
    %102 = vmatprep.subr.mxu0 0.0
    %103 = vmatpush1.msra.mxu0 0.0
    %104 = vmatprep.subr.mxu0 0.0
    %105 = vmatpush1.msra.mxu0 0.0
    %106 = vmatprep.subr.mxu0 0.0
    %107 = vmatpush1.msra.mxu0 0.0
    %108 = vmatprep.subr.mxu0 0.0
    %109 = vmatpush1.msra.mxu0 0.0
    %110 = vmatprep.subr.mxu0 0.0
    %111 = vmatpush1.msra.mxu0 0.0
    %112 = vmatprep.subr.mxu0 0.0
    %113 = vmatpush1.msra.mxu0 0.0
    %114 = vmatprep.subr.mxu0 0.0
    %115 = vmatpush1.msra.mxu0 0.0
    %116 = vmatprep.subr.mxu0 0.0
    %117 = vmatpush1.msra.mxu0 0.0
    %118 = vmatprep.subr.mxu0 0.0
    %119 = vmatpush1.msra.mxu0 0.0
    %120 = vmatprep.subr.mxu0 0.0
    %121 = vmatpush1.msra.mxu0 0.0
    %122 = vmatprep.subr.mxu0 0.0
    %123 = vmatpush1.msra.mxu0 0.0
    %124 = vmatprep.subr.mxu0 0.0
    %125 = vmatpush1.msra.mxu0 0.0
    %126 = vmatprep.subr.mxu0 0.0
    %127 = vmatpush1.msra.mxu0 0.0
    %128 = vmatprep.subr.mxu0 0.0
    %129 = vmatpush1.msra.mxu0 0.0
    %130 = vmatprep.subr.mxu0 0.0
    %131 = vmatpush1.msra.mxu0 0.0
    %132 = vmatprep.subr.mxu0 0.0
    %133 = vmatpush1.msra.mxu0 0.0
    %134 = vmatprep.subr.mxu0 0.0
    %135 = vmatpush1.msra.mxu0 0.0
    %136 = vmatprep.subr.mxu0 0.0
    %137 = vmatpush1.msra.mxu0 0.0
    %138 = vmatprep.subr.mxu0 0.0
    %139 = vmatpush1.msra.mxu0 0.0
    %140 = vmatprep.subr.mxu0 0.0
    %141 = vmatpush1.msra.mxu0 0.0
    %142 = vmatprep.subr.mxu0 0.0
    %143 = vmatpush1.msra.mxu0 0.0
    %144 = vmatprep.subr.mxu0 0.0
    %145 = vmatpush1.msra.mxu0 0.0
    %146 = vmatprep.subr.mxu0 0.0
    %147 = vmatpush1.msra.mxu0 0.0
    %148 = vmatprep.subr.mxu0 0.0
    %149 = vmatpush1.msra.mxu0 0.0
    %150 = vmatprep.subr.mxu0 0.0
    %151 = vmatpush1.msra.mxu0 0.0
    %152 = vmatprep.subr.mxu0 0.0
    %153 = vmatpush1.msra.mxu0 0.0
    %154 = vmatprep.mubr.f32.mxu0 0.0
    %155 = vmatmul.mubr.f32.gmra.mrb[0].mxu0 %v88
    %v156 = vpop.f32.mrb[0].mxu0
    %v157 = vadd.f32 %v85, %v156
    %v158 = vpop.f32.mrb[0].mxu0
    %159 = vdwg.mxu0
    %v160 = vmul.f32 %v157, 0.5
    %v161 = vand.u32 2147483647, %v160
    %vm162 = vcmp.le.f32.partialorder %v161, 0.7853982
    %vm163 = vcmp.lt.s32.totalorder %v160, 0
    %v164 = vand.u32 %v160, 2139095040
    %v165 = vshrl.u32 %v164, 23
    %v166 = vsub.s32 %v165, 127
    %v167 = vand.u32 2147483647, %v160
    %v168 = vand.u32 %v167, 8388607
    %v169 = vor.u32 %v168, 8388608
    %v170 = vsub.s32 0, %v169
    %v171 = vadd.s32 %v166, 1
    %vm172 = vcmp.gt.s32.totalorder %v171, 0
    %v173 = vsel %vm172, %v171, 0
    %v174 = vshrl.u32 %v173, 5
    %v175 = vand.u32 %v173, 31
    %v176 = vsub.s32 32, %v175
    %v177 = vshrl.u32 683565275, %v176
    %v178 = vshll.u32 683565275, %v175
    %v179 = vshrl.u32 2475754826, %v176
    %v180 = vor.u32 %v178, %v179
    %v181 = vshll.u32 2475754826, %v175
    %v182 = vshrl.u32 2131351028, %v176
    %v183 = vor.u32 %v181, %v182
    %v184 = vshll.u32 2131351028, %v175
    %v185 = vshrl.u32 2102212464, %v176
    %v186 = vor.u32 %v184, %v185
    %v187 = vshll.u32 2102212464, %v175
    %v188 = vshrl.u32 920167782, %v176
    %v189 = vor.u32 %v187, %v188
    %v190 = vshll.u32 920167782, %v175
    %v191 = vshrl.u32 1326507024, %v176
    %v192 = vor.u32 %v190, %v191
    %vm193 = vcmp.lt.s32.totalorder %v174, 1
    %vm194 = vcmp.lt.s32.totalorder %v174, 2
    %vm195 = vcmp.lt.s32.totalorder %v174, 3
    %vm196 = vcmp.lt.s32.totalorder %v174, 4
    %v197 = vsel %vm193, %v177, %v180
    %v198 = vsel %vm196, %v186, 2102212464
    %v199 = vsel %vm195, %v183, %v198
    %v200 = vsel %vm194, %v197, %v199
    %v201 = vsel %vm193, %v180, %v183
    %v202 = vsel %vm196, %v189, 920167782
    %v203 = vsel %vm195, %v186, %v202
    %v204 = vsel %vm194, %v201, %v203
    %v205 = vsel %vm193, %v183, %v186
    %v206 = vsel %vm196, %v192, 1326507024
    %v207 = vsel %vm195, %v189, %v206
    %v208 = vsel %vm194, %v205, %v207
    %v209 = vshll.u32 %v169, 8
    %v210 = vmul.u32.u64.compose %v209, %v208
    %v211 = vextract.low.u32 %v210
    %v212 = vextract.high.u32 %v210
    %v213 = vmul.u32.u64.compose %v209, %v204
    %v214 = vextract.low.u32 %v213
    %v215 = vextract.high.u32 %v213
    %v216 = vmul.u32 %v209, %v200
    %v217 = vadd.s32 %v212, %v214
    %vm218 = vc.u32 %v212, %v214
    %v219 = vadd.s32 %v215, 1
    %v220 = vsel %vm218, %v219, %v215
    %v221 = vadd.s32 %v216, %v220
    %v222 = vadd.s32 %v221, 536870912
    %v223 = vshrl.u32 %v222, 30
    %v224 = vshll.u32 %v223, 30
    %v225 = vsub.s32 %v221, %v224
    %vm226 = vcmp.lt.s32.totalorder %v225, 0
    %v227 = vsub.s32 0, %v225
    %v228 = vsel %vm226, %v227, %v225
    %v229 = vclz %v228
    %v230 = vsub.s32 %v229, 2
    %vm231 = vcmp.gt.s32.totalorder 0, %v230
    %v232 = vsel %vm231, 0, %v230
    %v233 = vsub.s32 32, %v232
    %v234 = vshll.u32 %v225, %v232
    %v235 = vshrl.u32 %v217, %v233
    %v236 = vor.u32 %v234, %v235
    %v237 = vsub.s32 4294967266, %v232
    %v238 = vadd.s32 %v237, 127
    %v239 = vshll.u32 %v238, 23
    %v240 = vor.u32 4788187, %v239
    %v241 = vand.u32 2147483647, %v240
    %v243 = vcvt.s32.f32 %v236
    %v244 = vmul.f32 %v243, %v241
    %v245 = vxor.u32 %v244, 2147483648
    %v246 = vsel %vm163, %v245, %v244
    %v247 = vsub.s32 4, %v223
    %v248 = vsel %vm163, %v247, %v223
    %v249 = vsel %vm162, %v160, %v246
    %v250 = vsel %vm162, 0, %v248
    %v251 = vcosq.f32.pop %v249
    %v252 = vsinq.f32.pop %v249
    %vm253 = vweird.f32 %v160
    %v254 = vand.u32 %v250, 3
    %vm255 = vcmp.lt.s32.totalorder %v254, 2
    %vm256 = vcmp.eq.s32.totalorder %v254, 0
    %v257 = vxor.u32 %v252, 2147483648
    %v258 = vsel %vm256, %v251, %v257
    %vm259 = vcmp.eq.s32.totalorder %v254, 2
    %v260 = vxor.u32 %v251, 2147483648
    %v261 = vsel %vm259, %v260, %v252
    %v262 = vsel %vm255, %v258, %v261
    %v263 = vsel %vm253, nan, %v262
    %v264 = vand.u32 2147483647, %v160
    %vm265 = vcmp.le.f32.partialorder %v264, 0.7853982
    %vm266 = vcmp.lt.s32.totalorder %v160, 0
    %v267 = vand.u32 %v160, 2139095040
    %v268 = vshrl.u32 %v267, 23
    %v269 = vsub.s32 %v268, 127
    %v270 = vand.u32 2147483647, %v160
    %v271 = vand.u32 %v270, 8388607
    %v272 = vor.u32 %v271, 8388608
    %v273 = vsub.s32 0, %v272
    %v274 = vadd.s32 %v269, 1
    %vm275 = vcmp.gt.s32.totalorder %v274, 0
    %v276 = vsel %vm275, %v274, 0
    %v277 = vshrl.u32 %v276, 5
    %v278 = vand.u32 %v276, 31
    %v279 = vsub.s32 32, %v278
    %v280 = vshrl.u32 683565275, %v279
    %v281 = vshll.u32 683565275, %v278
    %v282 = vshrl.u32 2475754826, %v279
    %v283 = vor.u32 %v281, %v282
    %v284 = vshll.u32 2475754826, %v278
    %v285 = vshrl.u32 2131351028, %v279
    %v286 = vor.u32 %v284, %v285
    %v287 = vshll.u32 2131351028, %v278
    %v288 = vshrl.u32 2102212464, %v279
    %v289 = vor.u32 %v287, %v288
    %v290 = vshll.u32 2102212464, %v278
    %v291 = vshrl.u32 920167782, %v279
    %v292 = vor.u32 %v290, %v291
    %v293 = vshll.u32 920167782, %v278
    %v294 = vshrl.u32 1326507024, %v279
    %v295 = vor.u32 %v293, %v294
    %vm296 = vcmp.lt.s32.totalorder %v277, 1
    %vm297 = vcmp.lt.s32.totalorder %v277, 2
    %vm298 = vcmp.lt.s32.totalorder %v277, 3
    %vm299 = vcmp.lt.s32.totalorder %v277, 4
    %v300 = vsel %vm296, %v280, %v283
    %v301 = vsel %vm299, %v289, 2102212464
    %v302 = vsel %vm298, %v286, %v301
    %v303 = vsel %vm297, %v300, %v302
    %v304 = vsel %vm296, %v283, %v286
    %v305 = vsel %vm299, %v292, 920167782
    %v306 = vsel %vm298, %v289, %v305
    %v307 = vsel %vm297, %v304, %v306
    %v308 = vsel %vm296, %v286, %v289
    %v309 = vsel %vm299, %v295, 1326507024
    %v310 = vsel %vm298, %v292, %v309
    %v311 = vsel %vm297, %v308, %v310
    %v312 = vshll.u32 %v272, 8
    %v313 = vmul.u32.u64.compose %v312, %v311
    %v314 = vextract.low.u32 %v313
    %v315 = vextract.high.u32 %v313
    %v316 = vmul.u32.u64.compose %v312, %v307
    %v317 = vextract.low.u32 %v316
    %v318 = vextract.high.u32 %v316
    %v319 = vmul.u32 %v312, %v303
    %v320 = vadd.s32 %v315, %v317
    %vm321 = vc.u32 %v315, %v317
    %v322 = vadd.s32 %v318, 1
    %v323 = vsel %vm321, %v322, %v318
    %v324 = vadd.s32 %v319, %v323
    %v325 = vadd.s32 %v324, 536870912
    %v326 = vshrl.u32 %v325, 30
    %v327 = vshll.u32 %v326, 30
    %v328 = vsub.s32 %v324, %v327
    %vm329 = vcmp.lt.s32.totalorder %v328, 0
    %v330 = vsub.s32 0, %v328
    %v331 = vsel %vm329, %v330, %v328
    %v332 = vclz %v331
    %v333 = vsub.s32 %v332, 2
    %vm334 = vcmp.gt.s32.totalorder 0, %v333
    %v335 = vsel %vm334, 0, %v333
    %v336 = vsub.s32 32, %v335
    %v337 = vshll.u32 %v328, %v335
    %v338 = vshrl.u32 %v320, %v336
    %v339 = vor.u32 %v337, %v338
    %v340 = vsub.s32 4294967266, %v335
    %v341 = vadd.s32 %v340, 127
    %v342 = vshll.u32 %v341, 23
    %v343 = vor.u32 4788187, %v342
    %v344 = vand.u32 2147483647, %v343
    %v346 = vcvt.s32.f32 %v339
    %v347 = vmul.f32 %v346, %v344
    %v348 = vxor.u32 %v347, 2147483648
    %v349 = vsel %vm266, %v348, %v347
    %v350 = vsub.s32 4, %v326
    %v351 = vsel %vm266, %v350, %v326
    %v352 = vsel %vm265, %v160, %v349
    %v353 = vsel %vm265, 0, %v351
    %v354 = vcosq.f32.pop %v352
    %v355 = vsinq.f32.pop %v352
    %vm356 = vweird.f32 %v160
    %v357 = vadd.s32 %v353, 3
    %v358 = vand.u32 %v357, 3
    %vm359 = vcmp.lt.s32.totalorder %v358, 2
    %vm360 = vcmp.eq.s32.totalorder %v358, 0
    %v361 = vxor.u32 %v355, 2147483648
    %v362 = vsel %vm360, %v354, %v361
    %vm363 = vcmp.eq.s32.totalorder %v358, 2
    %v364 = vxor.u32 %v354, 2147483648
    %v365 = vsel %vm363, %v364, %v355
    %v366 = vsel %vm359, %v362, %v365
    %v367 = vsel %vm356, nan, %v366
    %369 = vset.pattern.permute.xlu0 0
    %370 = vperm.xlu0 %369, %v263
    %v371 = vpop.permute.xlu0 %370
    %v373 = vmul.f32 %v371, %v79
    %375 = vset.pattern.permute.xlu0 0
    %376 = vperm.xlu0 %375, %v367
    %v377 = vpop.permute.xlu0 %376
    %v379 = vmul.f32 %v377, %v66
    %v380 = vadd.f32 %v373, %v379
    %381 = vset.pattern.permute.xlu0 1
    %382 = vperm.xlu0 %381, %v263
    %v383 = vpop.permute.xlu0 %382
    %v385 = vmul.f32 %v383, %v80
    %386 = vset.pattern.permute.xlu0 1
    %387 = vperm.xlu0 %386, %v367
    %v388 = vpop.permute.xlu0 %387
    %v390 = vmul.f32 %v388, %v70
    %v391 = vadd.f32 %v385, %v390
    %392 = vset.pattern.permute.xlu0 2
    %393 = vperm.xlu0 %392, %v263
    %v394 = vpop.permute.xlu0 %393
    %v396 = vmul.f32 %v394, %v81
    %397 = vset.pattern.permute.xlu0 2
    %398 = vperm.xlu0 %397, %v367
    %v399 = vpop.permute.xlu0 %398
    %v401 = vmul.f32 %v399, %v74
    %v402 = vadd.f32 %v396, %v401
    %403 = vset.pattern.permute.xlu0 3
    %404 = vperm.xlu0 %403, %v263
    %v405 = vpop.permute.xlu0 %404
    %v407 = vmul.f32 %v405, %v82
    %408 = vset.pattern.permute.xlu0 3
    %409 = vperm.xlu0 %408, %v367
    %v410 = vpop.permute.xlu0 %409
    %v412 = vmul.f32 %v410, %v78
    %v413 = vadd.f32 %v407, %v412
    %v414 = vmul.f32 %v380, %v391
    %v415 = vmul.f32 %v402, %v413
    %v416 = vmul.f32 %v414, %v415
    %vm417 = vcmask 130048
    %v419 = vsel %vm417, %v416, 0
    %421 = vmatprep.subr.mxu0 0.0
    %422 = vmatpush1.msra.mxu0 %v50
    %423 = vmatprep.subr.mxu0 0.0
    %424 = vmatpush1.msra.mxu0 %v51
    %425 = vmatprep.subr.mxu0 0.0
    %426 = vmatpush1.msra.mxu0 0.0
    %427 = vmatprep.subr.mxu0 0.0
    %428 = vmatpush1.msra.mxu0 0.0
    %429 = vmatprep.subr.mxu0 0.0
    %430 = vmatpush1.msra.mxu0 0.0
    %431 = vmatprep.subr.mxu0 0.0
    %432 = vmatpush1.msra.mxu0 0.0
    %433 = vmatprep.subr.mxu0 0.0
    %434 = vmatpush1.msra.mxu0 0.0
    %435 = vmatprep.subr.mxu0 0.0
    %436 = vmatpush1.msra.mxu0 0.0
    %437 = vmatprep.subr.mxu0 0.0
    %438 = vmatpush1.msra.mxu0 0.0
    %439 = vmatprep.subr.mxu0 0.0
    %440 = vmatpush1.msra.mxu0 0.0
    %441 = vmatprep.subr.mxu0 0.0
    %442 = vmatpush1.msra.mxu0 0.0
    %443 = vmatprep.subr.mxu0 0.0
    %444 = vmatpush1.msra.mxu0 0.0
    %445 = vmatprep.subr.mxu0 0.0
    %446 = vmatpush1.msra.mxu0 0.0
    %447 = vmatprep.subr.mxu0 0.0
    %448 = vmatpush1.msra.mxu0 0.0
    %449 = vmatprep.subr.mxu0 0.0
    %450 = vmatpush1.msra.mxu0 0.0
    %451 = vmatprep.subr.mxu0 0.0
    %452 = vmatpush1.msra.mxu0 0.0
    %453 = vmatprep.subr.mxu0 0.0
    %454 = vmatpush1.msra.mxu0 0.0
    %455 = vmatprep.subr.mxu0 0.0
    %456 = vmatpush1.msra.mxu0 0.0
    %457 = vmatprep.subr.mxu0 0.0
    %458 = vmatpush1.msra.mxu0 0.0
    %459 = vmatprep.subr.mxu0 0.0
    %460 = vmatpush1.msra.mxu0 0.0
    %461 = vmatprep.subr.mxu0 0.0
    %462 = vmatpush1.msra.mxu0 0.0
    %463 = vmatprep.subr.mxu0 0.0
    %464 = vmatpush1.msra.mxu0 0.0
    %465 = vmatprep.subr.mxu0 0.0
    %466 = vmatpush1.msra.mxu0 0.0
    %467 = vmatprep.subr.mxu0 0.0
    %468 = vmatpush1.msra.mxu0 0.0
    %469 = vmatprep.subr.mxu0 0.0
    %470 = vmatpush1.msra.mxu0 0.0
    %471 = vmatprep.subr.mxu0 0.0
    %472 = vmatpush1.msra.mxu0 0.0
    %473 = vmatprep.subr.mxu0 0.0
    %474 = vmatpush1.msra.mxu0 0.0
    %475 = vmatprep.subr.mxu0 0.0
    %476 = vmatpush1.msra.mxu0 0.0
    %477 = vmatprep.subr.mxu0 0.0
    %478 = vmatpush1.msra.mxu0 0.0
    %479 = vmatprep.subr.mxu0 0.0
    %480 = vmatpush1.msra.mxu0 0.0
    %481 = vmatprep.subr.mxu0 0.0
    %482 = vmatpush1.msra.mxu0 0.0
    %483 = vmatprep.subr.mxu0 0.0
    %484 = vmatpush1.msra.mxu0 0.0
    %485 = vmatprep.mubr.f32.mxu0 0.0
    %486 = vmatmul.mubr.f32.gmra.mrb[0].mxu0 %v419
    %v487 = vpop.f32.mrb[0].mxu0
    %v488 = vadd.f32 0.0, %v487
    %v489 = vpop.f32.mrb[0].mxu0
    %490 = vdwg.mxu0
    %v491 = vmul.f32 %v488, %v488
    %493 = vrot.lane.b32.xlu0 %v491, 64
    %v494 = vpop.permute.xlu0 %493
    %v496 = vadd.f32 %v491, %v494
    %v498 = vlaneseq
    %v499 = vshrl.u32 %v498, 7
    %v500 = vsub.s32 0, %v499
    %v501 = vrot.slane %v60, %v500
    %vm503 = vcmask 523264
    %v505 = vsel %vm503, %v496, 0
    %507 = vmatprep.subr.mxu0 0.0
    %508 = vmatpush1.msra.mxu0 %v52
    %509 = vmatprep.subr.mxu0 0.0
    %510 = vmatpush1.msra.mxu0 %v53
    %511 = vmatprep.subr.mxu0 0.0
    %512 = vmatpush1.msra.mxu0 %v54
    %513 = vmatprep.subr.mxu0 0.0
    %514 = vmatpush1.msra.mxu0 %v55
    %515 = vmatprep.subr.mxu0 0.0
    %516 = vmatpush1.msra.mxu0 %v56
    %517 = vmatprep.subr.mxu0 0.0
    %518 = vmatpush1.msra.mxu0 %v57
    %519 = vmatprep.subr.mxu0 0.0
    %520 = vmatpush1.msra.mxu0 %v58
    %521 = vmatprep.subr.mxu0 0.0
    %522 = vmatpush1.msra.mxu0 %v59
    %523 = vmatprep.subr.mxu0 0.0
    %524 = vmatpush1.msra.mxu0 0.0
    %525 = vmatprep.subr.mxu0 0.0
    %526 = vmatpush1.msra.mxu0 0.0
    %527 = vmatprep.subr.mxu0 0.0
    %528 = vmatpush1.msra.mxu0 0.0
    %529 = vmatprep.subr.mxu0 0.0
    %530 = vmatpush1.msra.mxu0 0.0
    %531 = vmatprep.subr.mxu0 0.0
    %532 = vmatpush1.msra.mxu0 0.0
    %533 = vmatprep.subr.mxu0 0.0
    %534 = vmatpush1.msra.mxu0 0.0
    %535 = vmatprep.subr.mxu0 0.0
    %536 = vmatpush1.msra.mxu0 0.0
    %537 = vmatprep.subr.mxu0 0.0
    %538 = vmatpush1.msra.mxu0 0.0
    %539 = vmatprep.subr.mxu0 0.0
    %540 = vmatpush1.msra.mxu0 0.0
    %541 = vmatprep.subr.mxu0 0.0
    %542 = vmatpush1.msra.mxu0 0.0
    %543 = vmatprep.subr.mxu0 0.0
    %544 = vmatpush1.msra.mxu0 0.0
    %545 = vmatprep.subr.mxu0 0.0
    %546 = vmatpush1.msra.mxu0 0.0
    %547 = vmatprep.subr.mxu0 0.0
    %548 = vmatpush1.msra.mxu0 0.0
    %549 = vmatprep.subr.mxu0 0.0
    %550 = vmatpush1.msra.mxu0 0.0
    %551 = vmatprep.subr.mxu0 0.0
    %552 = vmatpush1.msra.mxu0 0.0
    %553 = vmatprep.subr.mxu0 0.0
    %554 = vmatpush1.msra.mxu0 0.0
    %555 = vmatprep.subr.mxu0 0.0
    %556 = vmatpush1.msra.mxu0 0.0
    %557 = vmatprep.subr.mxu0 0.0
    %558 = vmatpush1.msra.mxu0 0.0
    %559 = vmatprep.subr.mxu0 0.0
    %560 = vmatpush1.msra.mxu0 0.0
    %561 = vmatprep.subr.mxu0 0.0
    %562 = vmatpush1.msra.mxu0 0.0
    %563 = vmatprep.subr.mxu0 0.0
    %564 = vmatpush1.msra.mxu0 0.0
    %565 = vmatprep.subr.mxu0 0.0
    %566 = vmatpush1.msra.mxu0 0.0
    %567 = vmatprep.subr.mxu0 0.0
    %568 = vmatpush1.msra.mxu0 0.0
    %569 = vmatprep.subr.mxu0 0.0
    %570 = vmatpush1.msra.mxu0 0.0
    %571 = vmatprep.mubr.f32.mxu0 0.0
    %572 = vmatmul.mubr.f32.gmra.mrb[0].mxu0 %v505
    %v573 = vpop.f32.mrb[0].mxu0
    %v574 = vadd.f32 %v501, %v573
    %v575 = vpop.f32.mrb[0].mxu0
    %576 = vdwg.mxu0
    %v577 = vxor.u32 %v574, 2147483648
    %v578 = vmul.f32 %v577, 1.442695
    %v579 = vpow.pop %v578
    %v580 = vadd.f32 %v579, 1.0
    %v581 = vrcp.pop %v580
    %v582 = vmul.f32 1.0, %v581
    %v583 = vtanh.pop %v574
    %v584 = vmul.f32 %v582, %v84
    %586 = vrot.lane.b32.xlu0 %v583, 96
    %v587 = vpop.permute.xlu0 %586
    %v589 = vmul.f32 %v582, %v587
    %591 = vrot.lane.b32.xlu0 %v589, 96
    %v592 = vpop.permute.xlu0 %591
    %v594 = vadd.f32 %v584, %v592
    %v595 = vtanh.pop %v594
    %597 = vrot.lane.b32.xlu0 %v595, 96
    %v598 = vpop.permute.xlu0 %597
    %v600 = vmul.f32 %v582, %v598
    %602 = vrot.lane.b32.xlu0 %v600, 32
    %v603 = vpop.permute.xlu0 %602
    %vm605 = vcmask 254976
    %606 = vst.msk [vmem:[#allocation7] sm:$0x3] %vm605, %v603
    %s607 = scalar_lea.vmem %s0, 2
    %v608 = vld [vmem:[%s607] sm:$0x3]
    %v609 = vsel %vm86, %v603, 0
    %611 = vmatprep.subr.mxu0 0.0
    %612 = vmatpush1.msra.mxu0 %v46
    %613 = vmatprep.subr.mxu0 0.0
    %614 = vmatpush1.msra.mxu0 %v47
    %615 = vmatprep.subr.mxu0 0.0
    %616 = vmatpush1.msra.mxu0 %v48
    %617 = vmatprep.subr.mxu0 0.0
    %618 = vmatpush1.msra.mxu0 %v49
    %619 = vmatprep.subr.mxu0 0.0
    %620 = vmatpush1.msra.mxu0 0.0
    %621 = vmatprep.subr.mxu0 0.0
    %622 = vmatpush1.msra.mxu0 0.0
    %623 = vmatprep.subr.mxu0 0.0
    %624 = vmatpush1.msra.mxu0 0.0
    %625 = vmatprep.subr.mxu0 0.0
    %626 = vmatpush1.msra.mxu0 0.0
    %627 = vmatprep.subr.mxu0 0.0
    %628 = vmatpush1.msra.mxu0 0.0
    %629 = vmatprep.subr.mxu0 0.0
    %630 = vmatpush1.msra.mxu0 0.0
    %631 = vmatprep.subr.mxu0 0.0
    %632 = vmatpush1.msra.mxu0 0.0
    %633 = vmatprep.subr.mxu0 0.0
    %634 = vmatpush1.msra.mxu0 0.0
    %635 = vmatprep.subr.mxu0 0.0
    %636 = vmatpush1.msra.mxu0 0.0
    %637 = vmatprep.subr.mxu0 0.0
    %638 = vmatpush1.msra.mxu0 0.0
    %639 = vmatprep.subr.mxu0 0.0
    %640 = vmatpush1.msra.mxu0 0.0
    %641 = vmatprep.subr.mxu0 0.0
    %642 = vmatpush1.msra.mxu0 0.0
    %643 = vmatprep.subr.mxu0 0.0
    %644 = vmatpush1.msra.mxu0 0.0
    %645 = vmatprep.subr.mxu0 0.0
    %646 = vmatpush1.msra.mxu0 0.0
    %647 = vmatprep.subr.mxu0 0.0
    %648 = vmatpush1.msra.mxu0 0.0
    %649 = vmatprep.subr.mxu0 0.0
    %650 = vmatpush1.msra.mxu0 0.0
    %651 = vmatprep.subr.mxu0 0.0
    %652 = vmatpush1.msra.mxu0 0.0
    %653 = vmatprep.subr.mxu0 0.0
    %654 = vmatpush1.msra.mxu0 0.0
    %655 = vmatprep.subr.mxu0 0.0
    %656 = vmatpush1.msra.mxu0 0.0
    %657 = vmatprep.subr.mxu0 0.0
    %658 = vmatpush1.msra.mxu0 0.0
    %659 = vmatprep.subr.mxu0 0.0
    %660 = vmatpush1.msra.mxu0 0.0
    %661 = vmatprep.subr.mxu0 0.0
    %662 = vmatpush1.msra.mxu0 0.0
    %663 = vmatprep.subr.mxu0 0.0
    %664 = vmatpush1.msra.mxu0 0.0
    %665 = vmatprep.subr.mxu0 0.0
    %666 = vmatpush1.msra.mxu0 0.0
    %667 = vmatprep.subr.mxu0 0.0
    %668 = vmatpush1.msra.mxu0 0.0
    %669 = vmatprep.subr.mxu0 0.0
    %670 = vmatpush1.msra.mxu0 0.0
    %671 = vmatprep.subr.mxu0 0.0
    %672 = vmatpush1.msra.mxu0 0.0
    %673 = vmatprep.subr.mxu0 0.0
    %674 = vmatpush1.msra.mxu0 0.0
    %675 = vmatprep.mubr.f32.mxu0 0.0
    %676 = vmatmul.mubr.f32.gmra.mrb[0].mxu0 %v609
    %v677 = vpop.f32.mrb[0].mxu0
    %v678 = vadd.f32 %v608, %v677
    %v679 = vpop.f32.mrb[0].mxu0
    %680 = vdwg.mxu0
    %v681 = vmul.f32 %v678, 0.5
    %v682 = vand.u32 2147483647, %v681
    %vm683 = vcmp.le.f32.partialorder %v682, 0.7853982
    %vm684 = vcmp.lt.s32.totalorder %v681, 0
    %v685 = vand.u32 %v681, 2139095040
    %v686 = vshrl.u32 %v685, 23
    %v687 = vsub.s32 %v686, 127
    %v688 = vand.u32 2147483647, %v681
    %v689 = vand.u32 %v688, 8388607
    %v690 = vor.u32 %v689, 8388608
    %v691 = vsub.s32 0, %v690
    %v692 = vadd.s32 %v687, 1
    %vm693 = vcmp.gt.s32.totalorder %v692, 0
    %v694 = vsel %vm693, %v692, 0
    %v695 = vshrl.u32 %v694, 5
    %v696 = vand.u32 %v694, 31
    %v697 = vsub.s32 32, %v696
    %v698 = vshrl.u32 683565275, %v697
    %v699 = vshll.u32 683565275, %v696
    %v700 = vshrl.u32 2475754826, %v697
    %v701 = vor.u32 %v699, %v700
    %v702 = vshll.u32 2475754826, %v696
    %v703 = vshrl.u32 2131351028, %v697
    %v704 = vor.u32 %v702, %v703
    %v705 = vshll.u32 2131351028, %v696
    %v706 = vshrl.u32 2102212464, %v697
    %v707 = vor.u32 %v705, %v706
    %v708 = vshll.u32 2102212464, %v696
    %v709 = vshrl.u32 920167782, %v697
    %v710 = vor.u32 %v708, %v709
    %v711 = vshll.u32 920167782, %v696
    %v712 = vshrl.u32 1326507024, %v697
    %v713 = vor.u32 %v711, %v712
    %vm714 = vcmp.lt.s32.totalorder %v695, 1
    %vm715 = vcmp.lt.s32.totalorder %v695, 2
    %vm716 = vcmp.lt.s32.totalorder %v695, 3
    %vm717 = vcmp.lt.s32.totalorder %v695, 4
    %v718 = vsel %vm714, %v698, %v701
    %v719 = vsel %vm717, %v707, 2102212464
    %v720 = vsel %vm716, %v704, %v719
    %v721 = vsel %vm715, %v718, %v720
    %v722 = vsel %vm714, %v701, %v704
    %v723 = vsel %vm717, %v710, 920167782
    %v724 = vsel %vm716, %v707, %v723
    %v725 = vsel %vm715, %v722, %v724
    %v726 = vsel %vm714, %v704, %v707
    %v727 = vsel %vm717, %v713, 1326507024
    %v728 = vsel %vm716, %v710, %v727
    %v729 = vsel %vm715, %v726, %v728
    %v730 = vshll.u32 %v690, 8
    %v731 = vmul.u32.u64.compose %v730, %v729
    %v732 = vextract.low.u32 %v731
    %v733 = vextract.high.u32 %v731
    %v734 = vmul.u32.u64.compose %v730, %v725
    %v735 = vextract.low.u32 %v734
    %v736 = vextract.high.u32 %v734
    %v737 = vmul.u32 %v730, %v721
    %v738 = vadd.s32 %v733, %v735
    %vm739 = vc.u32 %v733, %v735
    %v740 = vadd.s32 %v736, 1
    %v741 = vsel %vm739, %v740, %v736
    %v742 = vadd.s32 %v737, %v741
    %v743 = vadd.s32 %v742, 536870912
    %v744 = vshrl.u32 %v743, 30
    %v745 = vshll.u32 %v744, 30
    %v746 = vsub.s32 %v742, %v745
    %vm747 = vcmp.lt.s32.totalorder %v746, 0
    %v748 = vsub.s32 0, %v746
    %v749 = vsel %vm747, %v748, %v746
    %v750 = vclz %v749
    %v751 = vsub.s32 %v750, 2
    %vm752 = vcmp.gt.s32.totalorder 0, %v751
    %v753 = vsel %vm752, 0, %v751
    %v754 = vsub.s32 32, %v753
    %v755 = vshll.u32 %v746, %v753
    %v756 = vshrl.u32 %v738, %v754
    %v757 = vor.u32 %v755, %v756
    %v758 = vsub.s32 4294967266, %v753
    %v759 = vadd.s32 %v758, 127
    %v760 = vshll.u32 %v759, 23
    %v761 = vor.u32 4788187, %v760
    %v762 = vand.u32 2147483647, %v761
    %v764 = vcvt.s32.f32 %v757
    %v765 = vmul.f32 %v764, %v762
    %v766 = vxor.u32 %v765, 2147483648
    %v767 = vsel %vm684, %v766, %v765
    %v768 = vsub.s32 4, %v744
    %v769 = vsel %vm684, %v768, %v744
    %v770 = vsel %vm683, %v681, %v767
    %v771 = vsel %vm683, 0, %v769
    %v772 = vcosq.f32.pop %v770
    %v773 = vsinq.f32.pop %v770
    %vm774 = vweird.f32 %v681
    %v775 = vand.u32 %v771, 3
    %vm776 = vcmp.lt.s32.totalorder %v775, 2
    %vm777 = vcmp.eq.s32.totalorder %v775, 0
    %v778 = vxor.u32 %v773, 2147483648
    %v779 = vsel %vm777, %v772, %v778
    %vm780 = vcmp.eq.s32.totalorder %v775, 2
    %v781 = vxor.u32 %v772, 2147483648
    %v782 = vsel %vm780, %v781, %v773
    %v783 = vsel %vm776, %v779, %v782
    %v784 = vsel %vm774, nan, %v783
    %v785 = vand.u32 2147483647, %v681
    %vm786 = vcmp.le.f32.partialorder %v785, 0.7853982
    %vm787 = vcmp.lt.s32.totalorder %v681, 0
    %v788 = vand.u32 %v681, 2139095040
    %v789 = vshrl.u32 %v788, 23
    %v790 = vsub.s32 %v789, 127
    %v791 = vand.u32 2147483647, %v681
    %v792 = vand.u32 %v791, 8388607
    %v793 = vor.u32 %v792, 8388608
    %v794 = vsub.s32 0, %v793
    %v795 = vadd.s32 %v790, 1
    %vm796 = vcmp.gt.s32.totalorder %v795, 0
    %v797 = vsel %vm796, %v795, 0
    %v798 = vshrl.u32 %v797, 5
    %v799 = vand.u32 %v797, 31
    %v800 = vsub.s32 32, %v799
    %v801 = vshrl.u32 683565275, %v800
    %v802 = vshll.u32 683565275, %v799
    %v803 = vshrl.u32 2475754826, %v800
    %v804 = vor.u32 %v802, %v803
    %v805 = vshll.u32 2475754826, %v799
    %v806 = vshrl.u32 2131351028, %v800
    %v807 = vor.u32 %v805, %v806
    %v808 = vshll.u32 2131351028, %v799
    %v809 = vshrl.u32 2102212464, %v800
    %v810 = vor.u32 %v808, %v809
    %v811 = vshll.u32 2102212464, %v799
    %v812 = vshrl.u32 920167782, %v800
    %v813 = vor.u32 %v811, %v812
    %v814 = vshll.u32 920167782, %v799
    %v815 = vshrl.u32 1326507024, %v800
    %v816 = vor.u32 %v814, %v815
    %vm817 = vcmp.lt.s32.totalorder %v798, 1
    %vm818 = vcmp.lt.s32.totalorder %v798, 2
    %vm819 = vcmp.lt.s32.totalorder %v798, 3
    %vm820 = vcmp.lt.s32.totalorder %v798, 4
    %v821 = vsel %vm817, %v801, %v804
    %v822 = vsel %vm820, %v810, 2102212464
    %v823 = vsel %vm819, %v807, %v822
    %v824 = vsel %vm818, %v821, %v823
    %v825 = vsel %vm817, %v804, %v807
    %v826 = vsel %vm820, %v813, 920167782
    %v827 = vsel %vm819, %v810, %v826
    %v828 = vsel %vm818, %v825, %v827
    %v829 = vsel %vm817, %v807, %v810
    %v830 = vsel %vm820, %v816, 1326507024
    %v831 = vsel %vm819, %v813, %v830
    %v832 = vsel %vm818, %v829, %v831
    %v833 = vshll.u32 %v793, 8
    %v834 = vmul.u32.u64.compose %v833, %v832
    %v835 = vextract.low.u32 %v834
    %v836 = vextract.high.u32 %v834
    %v837 = vmul.u32.u64.compose %v833, %v828
    %v838 = vextract.low.u32 %v837
    %v839 = vextract.high.u32 %v837
    %v840 = vmul.u32 %v833, %v824
    %v841 = vadd.s32 %v836, %v838
    %vm842 = vc.u32 %v836, %v838
    %v843 = vadd.s32 %v839, 1
    %v844 = vsel %vm842, %v843, %v839
    %v845 = vadd.s32 %v840, %v844
    %v846 = vadd.s32 %v845, 536870912
    %v847 = vshrl.u32 %v846, 30
    %v848 = vshll.u32 %v847, 30
    %v849 = vsub.s32 %v845, %v848
    %vm850 = vcmp.lt.s32.totalorder %v849, 0
    %v851 = vsub.s32 0, %v849
    %v852 = vsel %vm850, %v851, %v849
    %v853 = vclz %v852
    %v854 = vsub.s32 %v853, 2
    %vm855 = vcmp.gt.s32.totalorder 0, %v854
    %v856 = vsel %vm855, 0, %v854
    %v857 = vsub.s32 32, %v856
    %v858 = vshll.u32 %v849, %v856
    %v859 = vshrl.u32 %v841, %v857
    %v860 = vor.u32 %v858, %v859
    %v861 = vsub.s32 4294967266, %v856
    %v862 = vadd.s32 %v861, 127
    %v863 = vshll.u32 %v862, 23
    %v864 = vor.u32 4788187, %v863
    %v865 = vand.u32 2147483647, %v864
    %v867 = vcvt.s32.f32 %v860
    %v868 = vmul.f32 %v867, %v865
    %v869 = vxor.u32 %v868, 2147483648
    %v870 = vsel %vm787, %v869, %v868
    %v871 = vsub.s32 4, %v847
    %v872 = vsel %vm787, %v871, %v847
    %v873 = vsel %vm786, %v681, %v870
    %v874 = vsel %vm786, 0, %v872
    %v875 = vcosq.f32.pop %v873
    %v876 = vsinq.f32.pop %v873
    %vm877 = vweird.f32 %v681
    %v878 = vadd.s32 %v874, 3
    %v879 = vand.u32 %v878, 3
    %vm880 = vcmp.lt.s32.totalorder %v879, 2
    %vm881 = vcmp.eq.s32.totalorder %v879, 0
    %v882 = vxor.u32 %v876, 2147483648
    %v883 = vsel %vm881, %v875, %v882
    %vm884 = vcmp.eq.s32.totalorder %v879, 2
    %v885 = vxor.u32 %v875, 2147483648
    %v886 = vsel %vm884, %v885, %v876
    %v887 = vsel %vm880, %v883, %v886
    %v888 = vsel %vm877, nan, %v887
    %890 = vset.pattern.permute.xlu0 0
    %891 = vperm.xlu0 %890, %v784
    %v892 = vpop.permute.xlu0 %891
    %v894 = vmul.f32 %v892, %v79
    %896 = vset.pattern.permute.xlu0 0
    %897 = vperm.xlu0 %896, %v888
    %v898 = vpop.permute.xlu0 %897
    %v900 = vmul.f32 %v898, %v66
    %v901 = vadd.f32 %v894, %v900
    %902 = vset.pattern.permute.xlu0 1
    %903 = vperm.xlu0 %902, %v784
    %v904 = vpop.permute.xlu0 %903
    %v906 = vmul.f32 %v904, %v80
    %907 = vset.pattern.permute.xlu0 1
    %908 = vperm.xlu0 %907, %v888
    %v909 = vpop.permute.xlu0 %908
    %v911 = vmul.f32 %v909, %v70
    %v912 = vadd.f32 %v906, %v911
    %913 = vset.pattern.permute.xlu0 2
    %914 = vperm.xlu0 %913, %v784
    %v915 = vpop.permute.xlu0 %914
    %v917 = vmul.f32 %v915, %v81
    %918 = vset.pattern.permute.xlu0 2
    %919 = vperm.xlu0 %918, %v888
    %v920 = vpop.permute.xlu0 %919
    %v922 = vmul.f32 %v920, %v74
    %v923 = vadd.f32 %v917, %v922
    %924 = vset.pattern.permute.xlu0 3
    %925 = vperm.xlu0 %924, %v784
    %v926 = vpop.permute.xlu0 %925
    %v928 = vmul.f32 %v926, %v82
    %929 = vset.pattern.permute.xlu0 3
    %930 = vperm.xlu0 %929, %v888
    %v931 = vpop.permute.xlu0 %930
    %v933 = vmul.f32 %v931, %v78
    %v934 = vadd.f32 %v928, %v933
    %v935 = vmul.f32 %v901, %v912
    %v936 = vmul.f32 %v923, %v934
    %v937 = vmul.f32 %v935, %v936
    %v939 = vsel %vm417, %v937, 0
    %941 = vmatprep.subr.mxu0 0.0
    %942 = vmatpush1.msra.mxu0 %v50
    %943 = vmatprep.subr.mxu0 0.0
    %944 = vmatpush1.msra.mxu0 %v51
    %945 = vmatprep.subr.mxu0 0.0
    %946 = vmatpush1.msra.mxu0 0.0
    %947 = vmatprep.subr.mxu0 0.0
    %948 = vmatpush1.msra.mxu0 0.0
    %949 = vmatprep.subr.mxu0 0.0
    %950 = vmatpush1.msra.mxu0 0.0
    %951 = vmatprep.subr.mxu0 0.0
    %952 = vmatpush1.msra.mxu0 0.0
    %953 = vmatprep.subr.mxu0 0.0
    %954 = vmatpush1.msra.mxu0 0.0
    %955 = vmatprep.subr.mxu0 0.0
    %956 = vmatpush1.msra.mxu0 0.0
    %957 = vmatprep.subr.mxu0 0.0
    %958 = vmatpush1.msra.mxu0 0.0
    %959 = vmatprep.subr.mxu0 0.0
    %960 = vmatpush1.msra.mxu0 0.0
    %961 = vmatprep.subr.mxu0 0.0
    %962 = vmatpush1.msra.mxu0 0.0
    %963 = vmatprep.subr.mxu0 0.0
    %964 = vmatpush1.msra.mxu0 0.0
    %965 = vmatprep.subr.mxu0 0.0
    %966 = vmatpush1.msra.mxu0 0.0
    %967 = vmatprep.subr.mxu0 0.0
    %968 = vmatpush1.msra.mxu0 0.0
    %969 = vmatprep.subr.mxu0 0.0
    %970 = vmatpush1.msra.mxu0 0.0
    %971 = vmatprep.subr.mxu0 0.0
    %972 = vmatpush1.msra.mxu0 0.0
    %973 = vmatprep.subr.mxu0 0.0
    %974 = vmatpush1.msra.mxu0 0.0
    %975 = vmatprep.subr.mxu0 0.0
    %976 = vmatpush1.msra.mxu0 0.0
    %977 = vmatprep.subr.mxu0 0.0
    %978 = vmatpush1.msra.mxu0 0.0
    %979 = vmatprep.subr.mxu0 0.0
    %980 = vmatpush1.msra.mxu0 0.0
    %981 = vmatprep.subr.mxu0 0.0
    %982 = vmatpush1.msra.mxu0 0.0
    %983 = vmatprep.subr.mxu0 0.0
    %984 = vmatpush1.msra.mxu0 0.0
    %985 = vmatprep.subr.mxu0 0.0
    %986 = vmatpush1.msra.mxu0 0.0
    %987 = vmatprep.subr.mxu0 0.0
    %988 = vmatpush1.msra.mxu0 0.0
    %989 = vmatprep.subr.mxu0 0.0
    %990 = vmatpush1.msra.mxu0 0.0
    %991 = vmatprep.subr.mxu0 0.0
    %992 = vmatpush1.msra.mxu0 0.0
    %993 = vmatprep.subr.mxu0 0.0
    %994 = vmatpush1.msra.mxu0 0.0
    %995 = vmatprep.subr.mxu0 0.0
    %996 = vmatpush1.msra.mxu0 0.0
    %997 = vmatprep.subr.mxu0 0.0
    %998 = vmatpush1.msra.mxu0 0.0
    %999 = vmatprep.subr.mxu0 0.0
    %1000 = vmatpush1.msra.mxu0 0.0
    %1001 = vmatprep.subr.mxu0 0.0
    %1002 = vmatpush1.msra.mxu0 0.0
    %1003 = vmatprep.subr.mxu0 0.0
    %1004 = vmatpush1.msra.mxu0 0.0
    %1005 = vmatprep.mubr.f32.mxu0 0.0
    %1006 = vmatmul.mubr.f32.gmra.mrb[0].mxu0 %v939
    %v1007 = vpop.f32.mrb[0].mxu0
    %v1008 = vadd.f32 0.0, %v1007
    %v1009 = vpop.f32.mrb[0].mxu0
    %1010 = vdwg.mxu0
    %v1011 = vmul.f32 %v1008, %v1008
    %1013 = vrot.lane.b32.xlu0 %v1011, 64
    %v1014 = vpop.permute.xlu0 %1013
    %v1016 = vadd.f32 %v1011, %v1014
    %v1018 = vsel %vm503, %v1016, 0
    %1020 = vmatprep.subr.mxu0 0.0
    %1021 = vmatpush1.msra.mxu0 %v52
    %1022 = vmatprep.subr.mxu0 0.0
    %1023 = vmatpush1.msra.mxu0 %v53
    %1024 = vmatprep.subr.mxu0 0.0
    %1025 = vmatpush1.msra.mxu0 %v54
    %1026 = vmatprep.subr.mxu0 0.0
    %1027 = vmatpush1.msra.mxu0 %v55
    %1028 = vmatprep.subr.mxu0 0.0
    %1029 = vmatpush1.msra.mxu0 %v56
    %1030 = vmatprep.subr.mxu0 0.0
    %1031 = vmatpush1.msra.mxu0 %v57
    %1032 = vmatprep.subr.mxu0 0.0
    %1033 = vmatpush1.msra.mxu0 %v58
    %1034 = vmatprep.subr.mxu0 0.0
    %1035 = vmatpush1.msra.mxu0 %v59
    %1036 = vmatprep.subr.mxu0 0.0
    %1037 = vmatpush1.msra.mxu0 0.0
    %1038 = vmatprep.subr.mxu0 0.0
    %1039 = vmatpush1.msra.mxu0 0.0
    %1040 = vmatprep.subr.mxu0 0.0
    %1041 = vmatpush1.msra.mxu0 0.0
    %1042 = vmatprep.subr.mxu0 0.0
    %1043 = vmatpush1.msra.mxu0 0.0
    %1044 = vmatprep.subr.mxu0 0.0
    %1045 = vmatpush1.msra.mxu0 0.0
    %1046 = vmatprep.subr.mxu0 0.0
    %1047 = vmatpush1.msra.mxu0 0.0
    %1048 = vmatprep.subr.mxu0 0.0
    %1049 = vmatpush1.msra.mxu0 0.0
    %1050 = vmatprep.subr.mxu0 0.0
    %1051 = vmatpush1.msra.mxu0 0.0
    %1052 = vmatprep.subr.mxu0 0.0
    %1053 = vmatpush1.msra.mxu0 0.0
    %1054 = vmatprep.subr.mxu0 0.0
    %1055 = vmatpush1.msra.mxu0 0.0
    %1056 = vmatprep.subr.mxu0 0.0
    %1057 = vmatpush1.msra.mxu0 0.0
    %1058 = vmatprep.subr.mxu0 0.0
    %1059 = vmatpush1.msra.mxu0 0.0
    %1060 = vmatprep.subr.mxu0 0.0
    %1061 = vmatpush1.msra.mxu0 0.0
    %1062 = vmatprep.subr.mxu0 0.0
    %1063 = vmatpush1.msra.mxu0 0.0
    %1064 = vmatprep.subr.mxu0 0.0
    %1065 = vmatpush1.msra.mxu0 0.0
    %1066 = vmatprep.subr.mxu0 0.0
    %1067 = vmatpush1.msra.mxu0 0.0
    %1068 = vmatprep.subr.mxu0 0.0
    %1069 = vmatpush1.msra.mxu0 0.0
    %1070 = vmatprep.subr.mxu0 0.0
    %1071 = vmatpush1.msra.mxu0 0.0
    %1072 = vmatprep.subr.mxu0 0.0
    %1073 = vmatpush1.msra.mxu0 0.0
    %1074 = vmatprep.subr.mxu0 0.0
    %1075 = vmatpush1.msra.mxu0 0.0
    %1076 = vmatprep.subr.mxu0 0.0
    %1077 = vmatpush1.msra.mxu0 0.0
    %1078 = vmatprep.subr.mxu0 0.0
    %1079 = vmatpush1.msra.mxu0 0.0
    %1080 = vmatprep.subr.mxu0 0.0
    %1081 = vmatpush1.msra.mxu0 0.0
    %1082 = vmatprep.subr.mxu0 0.0
    %1083 = vmatpush1.msra.mxu0 0.0
    %1084 = vmatprep.mubr.f32.mxu0 0.0
    %1085 = vmatmul.mubr.f32.gmra.mrb[0].mxu0 %v1018
    %v1086 = vpop.f32.mrb[0].mxu0
    %v1087 = vadd.f32 %v501, %v1086
    %v1088 = vpop.f32.mrb[0].mxu0
    %1089 = vdwg.mxu0
    %v1090 = vxor.u32 %v1087, 2147483648
    %v1091 = vmul.f32 %v1090, 1.442695
    %v1092 = vpow.pop %v1091
    %v1093 = vadd.f32 %v1092, 1.0
    %v1094 = vrcp.pop %v1093
    %v1095 = vmul.f32 1.0, %v1094
    %v1096 = vtanh.pop %v1087
    %v1097 = vmul.f32 %v1095, %v594
    %1099 = vrot.lane.b32.xlu0 %v1096, 96
    %v1100 = vpop.permute.xlu0 %1099
    %v1102 = vmul.f32 %v1095, %v1100
    %1104 = vrot.lane.b32.xlu0 %v1102, 96
    %v1105 = vpop.permute.xlu0 %1104
    %v1107 = vadd.f32 %v1097, %v1105
    %v1108 = vtanh.pop %v1107
    %1110 = vrot.lane.b32.xlu0 %v1108, 96
    %v1111 = vpop.permute.xlu0 %1110
    %v1113 = vmul.f32 %v1095, %v1111
    %1115 = vrot.lane.b32.xlu0 %v1113, 32
    %v1116 = vpop.permute.xlu0 %1115
    %s1118 = scalar_lea.vmem [#allocation7], 2
    %1119 = vst.msk [vmem:[%s1118] sm:$0x3] %vm605, %v1116
    %s1120 = scalar_lea.vmem %s0, 4
    %v1121 = vld [vmem:[%s1120] sm:$0x3]
    %v1122 = vsel %vm86, %v1116, 0
    %1124 = vmatprep.subr.mxu0 0.0
    %1125 = vmatpush1.msra.mxu0 %v46
    %1126 = vmatprep.subr.mxu0 0.0
    %1127 = vmatpush1.msra.mxu0 %v47
    %1128 = vmatprep.subr.mxu0 0.0
    %1129 = vmatpush1.msra.mxu0 %v48
    %1130 = vmatprep.subr.mxu0 0.0
    %1131 = vmatpush1.msra.mxu0 %v49
    %1132 = vmatprep.subr.mxu0 0.0
    %1133 = vmatpush1.msra.mxu0 0.0
    %1134 = vmatprep.subr.mxu0 0.0
    %1135 = vmatpush1.msra.mxu0 0.0
    %1136 = vmatprep.subr.mxu0 0.0
    %1137 = vmatpush1.msra.mxu0 0.0
    %1138 = vmatprep.subr.mxu0 0.0
    %1139 = vmatpush1.msra.mxu0 0.0
    %1140 = vmatprep.subr.mxu0 0.0
    %1141 = vmatpush1.msra.mxu0 0.0
    %1142 = vmatprep.subr.mxu0 0.0
    %1143 = vmatpush1.msra.mxu0 0.0
    %1144 = vmatprep.subr.mxu0 0.0
    %1145 = vmatpush1.msra.mxu0 0.0
    %1146 = vmatprep.subr.mxu0 0.0
    %1147 = vmatpush1.msra.mxu0 0.0
    %1148 = vmatprep.subr.mxu0 0.0
    %1149 = vmatpush1.msra.mxu0 0.0
    %1150 = vmatprep.subr.mxu0 0.0
    %1151 = vmatpush1.msra.mxu0 0.0
    %1152 = vmatprep.subr.mxu0 0.0
    %1153 = vmatpush1.msra.mxu0 0.0
    %1154 = vmatprep.subr.mxu0 0.0
    %1155 = vmatpush1.msra.mxu0 0.0
    %1156 = vmatprep.subr.mxu0 0.0
    %1157 = vmatpush1.msra.mxu0 0.0
    %1158 = vmatprep.subr.mxu0 0.0
    %1159 = vmatpush1.msra.mxu0 0.0
    %1160 = vmatprep.subr.mxu0 0.0
    %1161 = vmatpush1.msra.mxu0 0.0
    %1162 = vmatprep.subr.mxu0 0.0
    %1163 = vmatpush1.msra.mxu0 0.0
    %1164 = vmatprep.subr.mxu0 0.0
    %1165 = vmatpush1.msra.mxu0 0.0
    %1166 = vmatprep.subr.mxu0 0.0
    %1167 = vmatpush1.msra.mxu0 0.0
    %1168 = vmatprep.subr.mxu0 0.0
    %1169 = vmatpush1.msra.mxu0 0.0
    %1170 = vmatprep.subr.mxu0 0.0
    %1171 = vmatpush1.msra.mxu0 0.0
    %1172 = vmatprep.subr.mxu0 0.0
    %1173 = vmatpush1.msra.mxu0 0.0
    %1174 = vmatprep.subr.mxu0 0.0
    %1175 = vmatpush1.msra.mxu0 0.0
    %1176 = vmatprep.subr.mxu0 0.0
    %1177 = vmatpush1.msra.mxu0 0.0
    %1178 = vmatprep.subr.mxu0 0.0
    %1179 = vmatpush1.msra.mxu0 0.0
    %1180 = vmatprep.subr.mxu0 0.0
    %1181 = vmatpush1.msra.mxu0 0.0
    %1182 = vmatprep.subr.mxu0 0.0
    %1183 = vmatpush1.msra.mxu0 0.0
    %1184 = vmatprep.subr.mxu0 0.0
    %1185 = vmatpush1.msra.mxu0 0.0
    %1186 = vmatprep.subr.mxu0 0.0
    %1187 = vmatpush1.msra.mxu0 0.0
    %1188 = vmatprep.mubr.f32.mxu0 0.0
    %1189 = vmatmul.mubr.f32.gmra.mrb[0].mxu0 %v1122
    %v1190 = vpop.f32.mrb[0].mxu0
    %v1191 = vadd.f32 %v1121, %v1190
    %v1192 = vpop.f32.mrb[0].mxu0
    %1193 = vdwg.mxu0
    %v1194 = vmul.f32 %v1191, 0.5
    %v1195 = vand.u32 2147483647, %v1194
    %vm1196 = vcmp.le.f32.partialorder %v1195, 0.7853982
    %vm1197 = vcmp.lt.s32.totalorder %v1194, 0
    %v1198 = vand.u32 %v1194, 2139095040
    %v1199 = vshrl.u32 %v1198, 23
    %v1200 = vsub.s32 %v1199, 127
    %v1201 = vand.u32 2147483647, %v1194
    %v1202 = vand.u32 %v1201, 8388607
    %v1203 = vor.u32 %v1202, 8388608
    %v1204 = vsub.s32 0, %v1203
    %v1205 = vadd.s32 %v1200, 1
    %vm1206 = vcmp.gt.s32.totalorder %v1205, 0
    %v1207 = vsel %vm1206, %v1205, 0
    %v1208 = vshrl.u32 %v1207, 5
    %v1209 = vand.u32 %v1207, 31
    %v1210 = vsub.s32 32, %v1209
    %v1211 = vshrl.u32 683565275, %v1210
    %v1212 = vshll.u32 683565275, %v1209
    %v1213 = vshrl.u32 2475754826, %v1210
    %v1214 = vor.u32 %v1212, %v1213
    %v1215 = vshll.u32 2475754826, %v1209
    %v1216 = vshrl.u32 2131351028, %v1210
    %v1217 = vor.u32 %v1215, %v1216
    %v1218 = vshll.u32 2131351028, %v1209
    %v1219 = vshrl.u32 2102212464, %v1210
    %v1220 = vor.u32 %v1218, %v1219
    %v1221 = vshll.u32 2102212464, %v1209
    %v1222 = vshrl.u32 920167782, %v1210
    %v1223 = vor.u32 %v1221, %v1222
    %v1224 = vshll.u32 920167782, %v1209
    %v1225 = vshrl.u32 1326507024, %v1210
    %v1226 = vor.u32 %v1224, %v1225
    %vm1227 = vcmp.lt.s32.totalorder %v1208, 1
    %vm1228 = vcmp.lt.s32.totalorder %v1208, 2
    %vm1229 = vcmp.lt.s32.totalorder %v1208, 3
    %vm1230 = vcmp.lt.s32.totalorder %v1208, 4
    %v1231 = vsel %vm1227, %v1211, %v1214
    %v1232 = vsel %vm1230, %v1220, 2102212464
    %v1233 = vsel %vm1229, %v1217, %v1232
    %v1234 = vsel %vm1228, %v1231, %v1233
    %v1235 = vsel %vm1227, %v1214, %v1217
    %v1236 = vsel %vm1230, %v1223, 920167782
    %v1237 = vsel %vm1229, %v1220, %v1236
    %v1238 = vsel %vm1228, %v1235, %v1237
    %v1239 = vsel %vm1227, %v1217, %v1220
    %v1240 = vsel %vm1230, %v1226, 1326507024
    %v1241 = vsel %vm1229, %v1223, %v1240
    %v1242 = vsel %vm1228, %v1239, %v1241
    %v1243 = vshll.u32 %v1203, 8
    %v1244 = vmul.u32.u64.compose %v1243, %v1242
    %v1245 = vextract.low.u32 %v1244
    %v1246 = vextract.high.u32 %v1244
    %v1247 = vmul.u32.u64.compose %v1243, %v1238
    %v1248 = vextract.low.u32 %v1247
    %v1249 = vextract.high.u32 %v1247
    %v1250 = vmul.u32 %v1243, %v1234
    %v1251 = vadd.s32 %v1246, %v1248
    %vm1252 = vc.u32 %v1246, %v1248
    %v1253 = vadd.s32 %v1249, 1
    %v1254 = vsel %vm1252, %v1253, %v1249
    %v1255 = vadd.s32 %v1250, %v1254
    %v1256 = vadd.s32 %v1255, 536870912
    %v1257 = vshrl.u32 %v1256, 30
    %v1258 = vshll.u32 %v1257, 30
    %v1259 = vsub.s32 %v1255, %v1258
    %vm1260 = vcmp.lt.s32.totalorder %v1259, 0
    %v1261 = vsub.s32 0, %v1259
    %v1262 = vsel %vm1260, %v1261, %v1259
    %v1263 = vclz %v1262
    %v1264 = vsub.s32 %v1263, 2
    %vm1265 = vcmp.gt.s32.totalorder 0, %v1264
    %v1266 = vsel %vm1265, 0, %v1264
    %v1267 = vsub.s32 32, %v1266
    %v1268 = vshll.u32 %v1259, %v1266
    %v1269 = vshrl.u32 %v1251, %v1267
    %v1270 = vor.u32 %v1268, %v1269
    %v1271 = vsub.s32 4294967266, %v1266
    %v1272 = vadd.s32 %v1271, 127
    %v1273 = vshll.u32 %v1272, 23
    %v1274 = vor.u32 4788187, %v1273
    %v1275 = vand.u32 2147483647, %v1274
    %v1277 = vcvt.s32.f32 %v1270
    %v1278 = vmul.f32 %v1277, %v1275
    %v1279 = vxor.u32 %v1278, 2147483648
    %v1280 = vsel %vm1197, %v1279, %v1278
    %v1281 = vsub.s32 4, %v1257
    %v1282 = vsel %vm1197, %v1281, %v1257
    %v1283 = vsel %vm1196, %v1194, %v1280
    %v1284 = vsel %vm1196, 0, %v1282
    %v1285 = vcosq.f32.pop %v1283
    %v1286 = vsinq.f32.pop %v1283
    %vm1287 = vweird.f32 %v1194
    %v1288 = vand.u32 %v1284, 3
    %vm1289 = vcmp.lt.s32.totalorder %v1288, 2
    %vm1290 = vcmp.eq.s32.totalorder %v1288, 0
    %v1291 = vxor.u32 %v1286, 2147483648
    %v1292 = vsel %vm1290, %v1285, %v1291
    %vm1293 = vcmp.eq.s32.totalorder %v1288, 2
    %v1294 = vxor.u32 %v1285, 2147483648
    %v1295 = vsel %vm1293, %v1294, %v1286
    %v1296 = vsel %vm1289, %v1292, %v1295
    %v1297 = vsel %vm1287, nan, %v1296
    %v1298 = vand.u32 2147483647, %v1194
    %vm1299 = vcmp.le.f32.partialorder %v1298, 0.7853982
    %vm1300 = vcmp.lt.s32.totalorder %v1194, 0
    %v1301 = vand.u32 %v1194, 2139095040
    %v1302 = vshrl.u32 %v1301, 23
    %v1303 = vsub.s32 %v1302, 127
    %v1304 = vand.u32 2147483647, %v1194
    %v1305 = vand.u32 %v1304, 8388607
    %v1306 = vor.u32 %v1305, 8388608
    %v1307 = vsub.s32 0, %v1306
    %v1308 = vadd.s32 %v1303, 1
    %vm1309 = vcmp.gt.s32.totalorder %v1308, 0
    %v1310 = vsel %vm1309, %v1308, 0
    %v1311 = vshrl.u32 %v1310, 5
    %v1312 = vand.u32 %v1310, 31
    %v1313 = vsub.s32 32, %v1312
    %v1314 = vshrl.u32 683565275, %v1313
    %v1315 = vshll.u32 683565275, %v1312
    %v1316 = vshrl.u32 2475754826, %v1313
    %v1317 = vor.u32 %v1315, %v1316
    %v1318 = vshll.u32 2475754826, %v1312
    %v1319 = vshrl.u32 2131351028, %v1313
    %v1320 = vor.u32 %v1318, %v1319
    %v1321 = vshll.u32 2131351028, %v1312
    %v1322 = vshrl.u32 2102212464, %v1313
    %v1323 = vor.u32 %v1321, %v1322
    %v1324 = vshll.u32 2102212464, %v1312
    %v1325 = vshrl.u32 920167782, %v1313
    %v1326 = vor.u32 %v1324, %v1325
    %v1327 = vshll.u32 920167782, %v1312
    %v1328 = vshrl.u32 1326507024, %v1313
    %v1329 = vor.u32 %v1327, %v1328
    %vm1330 = vcmp.lt.s32.totalorder %v1311, 1
    %vm1331 = vcmp.lt.s32.totalorder %v1311, 2
    %vm1332 = vcmp.lt.s32.totalorder %v1311, 3
    %vm1333 = vcmp.lt.s32.totalorder %v1311, 4
    %v1334 = vsel %vm1330, %v1314, %v1317
    %v1335 = vsel %vm1333, %v1323, 2102212464
    %v1336 = vsel %vm1332, %v1320, %v1335
    %v1337 = vsel %vm1331, %v1334, %v1336
    %v1338 = vsel %vm1330, %v1317, %v1320
    %v1339 = vsel %vm1333, %v1326, 920167782
    %v1340 = vsel %vm1332, %v1323, %v1339
    %v1341 = vsel %vm1331, %v1338, %v1340
    %v1342 = vsel %vm1330, %v1320, %v1323
    %v1343 = vsel %vm1333, %v1329, 1326507024
    %v1344 = vsel %vm1332, %v1326, %v1343
    %v1345 = vsel %vm1331, %v1342, %v1344
    %v1346 = vshll.u32 %v1306, 8
    %v1347 = vmul.u32.u64.compose %v1346, %v1345
    %v1348 = vextract.low.u32 %v1347
    %v1349 = vextract.high.u32 %v1347
    %v1350 = vmul.u32.u64.compose %v1346, %v1341
    %v1351 = vextract.low.u32 %v1350
    %v1352 = vextract.high.u32 %v1350
    %v1353 = vmul.u32 %v1346, %v1337
    %v1354 = vadd.s32 %v1349, %v1351
    %vm1355 = vc.u32 %v1349, %v1351
    %v1356 = vadd.s32 %v1352, 1
    %v1357 = vsel %vm1355, %v1356, %v1352
    %v1358 = vadd.s32 %v1353, %v1357
    %v1359 = vadd.s32 %v1358, 536870912
    %v1360 = vshrl.u32 %v1359, 30
    %v1361 = vshll.u32 %v1360, 30
    %v1362 = vsub.s32 %v1358, %v1361
    %vm1363 = vcmp.lt.s32.totalorder %v1362, 0
    %v1364 = vsub.s32 0, %v1362
    %v1365 = vsel %vm1363, %v1364, %v1362
    %v1366 = vclz %v1365
    %v1367 = vsub.s32 %v1366, 2
    %vm1368 = vcmp.gt.s32.totalorder 0, %v1367
    %v1369 = vsel %vm1368, 0, %v1367
    %v1370 = vsub.s32 32, %v1369
    %v1371 = vshll.u32 %v1362, %v1369
    %v1372 = vshrl.u32 %v1354, %v1370
    %v1373 = vor.u32 %v1371, %v1372
    %v1374 = vsub.s32 4294967266, %v1369
    %v1375 = vadd.s32 %v1374, 127
    %v1376 = vshll.u32 %v1375, 23
    %v1377 = vor.u32 4788187, %v1376
    %v1378 = vand.u32 2147483647, %v1377
    %v1380 = vcvt.s32.f32 %v1373
    %v1381 = vmul.f32 %v1380, %v1378
    %v1382 = vxor.u32 %v1381, 2147483648
    %v1383 = vsel %vm1300, %v1382, %v1381
    %v1384 = vsub.s32 4, %v1360
    %v1385 = vsel %vm1300, %v1384, %v1360
    %v1386 = vsel %vm1299, %v1194, %v1383
    %v1387 = vsel %vm1299, 0, %v1385
    %v1388 = vcosq.f32.pop %v1386
    %v1389 = vsinq.f32.pop %v1386
    %vm1390 = vweird.f32 %v1194
    %v1391 = vadd.s32 %v1387, 3
    %v1392 = vand.u32 %v1391, 3
    %vm1393 = vcmp.lt.s32.totalorder %v1392, 2
    %vm1394 = vcmp.eq.s32.totalorder %v1392, 0
    %v1395 = vxor.u32 %v1389, 2147483648
    %v1396 = vsel %vm1394, %v1388, %v1395
    %vm1397 = vcmp.eq.s32.totalorder %v1392, 2
    %v1398 = vxor.u32 %v1388, 2147483648
    %v1399 = vsel %vm1397, %v1398, %v1389
    %v1400 = vsel %vm1393, %v1396, %v1399
    %v1401 = vsel %vm1390, nan, %v1400
    %1403 = vset.pattern.permute.xlu0 0
    %1404 = vperm.xlu0 %1403, %v1297
    %v1405 = vpop.permute.xlu0 %1404
    %v1407 = vmul.f32 %v1405, %v79
    %1409 = vset.pattern.permute.xlu0 0
    %1410 = vperm.xlu0 %1409, %v1401
    %v1411 = vpop.permute.xlu0 %1410
    %v1413 = vmul.f32 %v1411, %v66
    %v1414 = vadd.f32 %v1407, %v1413
    %1415 = vset.pattern.permute.xlu0 1
    %1416 = vperm.xlu0 %1415, %v1297
    %v1417 = vpop.permute.xlu0 %1416
    %v1419 = vmul.f32 %v1417, %v80
    %1420 = vset.pattern.permute.xlu0 1
    %1421 = vperm.xlu0 %1420, %v1401
    %v1422 = vpop.permute.xlu0 %1421
    %v1424 = vmul.f32 %v1422, %v70
    %v1425 = vadd.f32 %v1419, %v1424
    %1426 = vset.pattern.permute.xlu0 2
    %1427 = vperm.xlu0 %1426, %v1297
    %v1428 = vpop.permute.xlu0 %1427
    %v1430 = vmul.f32 %v1428, %v81
    %1431 = vset.pattern.permute.xlu0 2
    %1432 = vperm.xlu0 %1431, %v1401
    %v1433 = vpop.permute.xlu0 %1432
    %v1435 = vmul.f32 %v1433, %v74
    %v1436 = vadd.f32 %v1430, %v1435
    %1437 = vset.pattern.permute.xlu0 3
    %1438 = vperm.xlu0 %1437, %v1297
    %v1439 = vpop.permute.xlu0 %1438
    %v1441 = vmul.f32 %v1439, %v82
    %1442 = vset.pattern.permute.xlu0 3
    %1443 = vperm.xlu0 %1442, %v1401
    %v1444 = vpop.permute.xlu0 %1443
    %v1446 = vmul.f32 %v1444, %v78
    %v1447 = vadd.f32 %v1441, %v1446
    %v1448 = vmul.f32 %v1414, %v1425
    %v1449 = vmul.f32 %v1436, %v1447
    %v1450 = vmul.f32 %v1448, %v1449
    %v1452 = vsel %vm417, %v1450, 0
    %1454 = vmatprep.subr.mxu0 0.0
    %1455 = vmatpush1.msra.mxu0 %v50
    %1456 = vmatprep.subr.mxu0 0.0
    %1457 = vmatpush1.msra.mxu0 %v51
    %1458 = vmatprep.subr.mxu0 0.0
    %1459 = vmatpush1.msra.mxu0 0.0
    %1460 = vmatprep.subr.mxu0 0.0
    %1461 = vmatpush1.msra.mxu0 0.0
    %1462 = vmatprep.subr.mxu0 0.0
    %1463 = vmatpush1.msra.mxu0 0.0
    %1464 = vmatprep.subr.mxu0 0.0
    %1465 = vmatpush1.msra.mxu0 0.0
    %1466 = vmatprep.subr.mxu0 0.0
    %1467 = vmatpush1.msra.mxu0 0.0
    %1468 = vmatprep.subr.mxu0 0.0
    %1469 = vmatpush1.msra.mxu0 0.0
    %1470 = vmatprep.subr.mxu0 0.0
    %1471 = vmatpush1.msra.mxu0 0.0
    %1472 = vmatprep.subr.mxu0 0.0
    %1473 = vmatpush1.msra.mxu0 0.0
    %1474 = vmatprep.subr.mxu0 0.0
    %1475 = vmatpush1.msra.mxu0 0.0
    %1476 = vmatprep.subr.mxu0 0.0
    %1477 = vmatpush1.msra.mxu0 0.0
    %1478 = vmatprep.subr.mxu0 0.0
    %1479 = vmatpush1.msra.mxu0 0.0
    %1480 = vmatprep.subr.mxu0 0.0
    %1481 = vmatpush1.msra.mxu0 0.0
    %1482 = vmatprep.subr.mxu0 0.0
    %1483 = vmatpush1.msra.mxu0 0.0
    %1484 = vmatprep.subr.mxu0 0.0
    %1485 = vmatpush1.msra.mxu0 0.0
    %1486 = vmatprep.subr.mxu0 0.0
    %1487 = vmatpush1.msra.mxu0 0.0
    %1488 = vmatprep.subr.mxu0 0.0
    %1489 = vmatpush1.msra.mxu0 0.0
    %1490 = vmatprep.subr.mxu0 0.0
    %1491 = vmatpush1.msra.mxu0 0.0
    %1492 = vmatprep.subr.mxu0 0.0
    %1493 = vmatpush1.msra.mxu0 0.0
    %1494 = vmatprep.subr.mxu0 0.0
    %1495 = vmatpush1.msra.mxu0 0.0
    %1496 = vmatprep.subr.mxu0 0.0
    %1497 = vmatpush1.msra.mxu0 0.0
    %1498 = vmatprep.subr.mxu0 0.0
    %1499 = vmatpush1.msra.mxu0 0.0
    %1500 = vmatprep.subr.mxu0 0.0
    %1501 = vmatpush1.msra.mxu0 0.0
    %1502 = vmatprep.subr.mxu0 0.0
    %1503 = vmatpush1.msra.mxu0 0.0
    %1504 = vmatprep.subr.mxu0 0.0
    %1505 = vmatpush1.msra.mxu0 0.0
    %1506 = vmatprep.subr.mxu0 0.0
    %1507 = vmatpush1.msra.mxu0 0.0
    %1508 = vmatprep.subr.mxu0 0.0
    %1509 = vmatpush1.msra.mxu0 0.0
    %1510 = vmatprep.subr.mxu0 0.0
    %1511 = vmatpush1.msra.mxu0 0.0
    %1512 = vmatprep.subr.mxu0 0.0
    %1513 = vmatpush1.msra.mxu0 0.0
    %1514 = vmatprep.subr.mxu0 0.0
    %1515 = vmatpush1.msra.mxu0 0.0
    %1516 = vmatprep.subr.mxu0 0.0
    %1517 = vmatpush1.msra.mxu0 0.0
    %1518 = vmatprep.mubr.f32.mxu0 0.0
    %1519 = vmatmul.mubr.f32.gmra.mrb[0].mxu0 %v1452
    %v1520 = vpop.f32.mrb[0].mxu0
    %v1521 = vadd.f32 0.0, %v1520
    %v1522 = vpop.f32.mrb[0].mxu0
    %1523 = vdwg.mxu0
    %v1524 = vmul.f32 %v1521, %v1521
    %1526 = vrot.lane.b32.xlu0 %v1524, 64
    %v1527 = vpop.permute.xlu0 %1526
    %v1529 = vadd.f32 %v1524, %v1527
    %v1531 = vsel %vm503, %v1529, 0
    %1533 = vmatprep.subr.mxu0 0.0
    %1534 = vmatpush1.msra.mxu0 %v52
    %1535 = vmatprep.subr.mxu0 0.0
    %1536 = vmatpush1.msra.mxu0 %v53
    %1537 = vmatprep.subr.mxu0 0.0
    %1538 = vmatpush1.msra.mxu0 %v54
    %1539 = vmatprep.subr.mxu0 0.0
    %1540 = vmatpush1.msra.mxu0 %v55
    %1541 = vmatprep.subr.mxu0 0.0
    %1542 = vmatpush1.msra.mxu0 %v56
    %1543 = vmatprep.subr.mxu0 0.0
    %1544 = vmatpush1.msra.mxu0 %v57
    %1545 = vmatprep.subr.mxu0 0.0
    %1546 = vmatpush1.msra.mxu0 %v58
    %1547 = vmatprep.subr.mxu0 0.0
    %1548 = vmatpush1.msra.mxu0 %v59
    %1549 = vmatprep.subr.mxu0 0.0
    %1550 = vmatpush1.msra.mxu0 0.0
    %1551 = vmatprep.subr.mxu0 0.0
    %1552 = vmatpush1.msra.mxu0 0.0
    %1553 = vmatprep.subr.mxu0 0.0
    %1554 = vmatpush1.msra.mxu0 0.0
    %1555 = vmatprep.subr.mxu0 0.0
    %1556 = vmatpush1.msra.mxu0 0.0
    %1557 = vmatprep.subr.mxu0 0.0
    %1558 = vmatpush1.msra.mxu0 0.0
    %1559 = vmatprep.subr.mxu0 0.0
    %1560 = vmatpush1.msra.mxu0 0.0
    %1561 = vmatprep.subr.mxu0 0.0
    %1562 = vmatpush1.msra.mxu0 0.0
    %1563 = vmatprep.subr.mxu0 0.0
    %1564 = vmatpush1.msra.mxu0 0.0
    %1565 = vmatprep.subr.mxu0 0.0
    %1566 = vmatpush1.msra.mxu0 0.0
    %1567 = vmatprep.subr.mxu0 0.0
    %1568 = vmatpush1.msra.mxu0 0.0
    %1569 = vmatprep.subr.mxu0 0.0
    %1570 = vmatpush1.msra.mxu0 0.0
    %1571 = vmatprep.subr.mxu0 0.0
    %1572 = vmatpush1.msra.mxu0 0.0
    %1573 = vmatprep.subr.mxu0 0.0
    %1574 = vmatpush1.msra.mxu0 0.0
    %1575 = vmatprep.subr.mxu0 0.0
    %1576 = vmatpush1.msra.mxu0 0.0
    %1577 = vmatprep.subr.mxu0 0.0
    %1578 = vmatpush1.msra.mxu0 0.0
    %1579 = vmatprep.subr.mxu0 0.0
    %1580 = vmatpush1.msra.mxu0 0.0
    %1581 = vmatprep.subr.mxu0 0.0
    %1582 = vmatpush1.msra.mxu0 0.0
    %1583 = vmatprep.subr.mxu0 0.0
    %1584 = vmatpush1.msra.mxu0 0.0
    %1585 = vmatprep.subr.mxu0 0.0
    %1586 = vmatpush1.msra.mxu0 0.0
    %1587 = vmatprep.subr.mxu0 0.0
    %1588 = vmatpush1.msra.mxu0 0.0
    %1589 = vmatprep.subr.mxu0 0.0
    %1590 = vmatpush1.msra.mxu0 0.0
    %1591 = vmatprep.subr.mxu0 0.0
    %1592 = vmatpush1.msra.mxu0 0.0
    %1593 = vmatprep.subr.mxu0 0.0
    %1594 = vmatpush1.msra.mxu0 0.0
    %1595 = vmatprep.subr.mxu0 0.0
    %1596 = vmatpush1.msra.mxu0 0.0
    %1597 = vmatprep.mubr.f32.mxu0 0.0
    %1598 = vmatmul.mubr.f32.gmra.mrb[0].mxu0 %v1531
    %v1599 = vpop.f32.mrb[0].mxu0
    %v1600 = vadd.f32 %v501, %v1599
    %v1601 = vpop.f32.mrb[0].mxu0
    %1602 = vdwg.mxu0
    %v1603 = vxor.u32 %v1600, 2147483648
    %v1604 = vmul.f32 %v1603, 1.442695
    %v1605 = vpow.pop %v1604
    %v1606 = vadd.f32 %v1605, 1.0
    %v1607 = vrcp.pop %v1606
    %v1608 = vmul.f32 1.0, %v1607
    %v1609 = vtanh.pop %v1600
    %v1610 = vmul.f32 %v1608, %v1107
    %1612 = vrot.lane.b32.xlu0 %v1609, 96
    %v1613 = vpop.permute.xlu0 %1612
    %v1615 = vmul.f32 %v1608, %v1613
    %1617 = vrot.lane.b32.xlu0 %v1615, 96
    %v1618 = vpop.permute.xlu0 %1617
    %v1620 = vadd.f32 %v1610, %v1618
    %v1621 = vtanh.pop %v1620
    %1623 = vrot.lane.b32.xlu0 %v1621, 96
    %v1624 = vpop.permute.xlu0 %1623
    %v1626 = vmul.f32 %v1608, %v1624
    %1628 = vrot.lane.b32.xlu0 %v1626, 32
    %v1629 = vpop.permute.xlu0 %1628
    %s1631 = scalar_lea.vmem [#allocation7], 4
    %1632 = vst.msk [vmem:[%s1631] sm:$0x3] %vm605, %v1629
    %s1633 = scalar_lea.vmem %s0, 6
    %v1634 = vld [vmem:[%s1633] sm:$0x3]
    %v1635 = vsel %vm86, %v1629, 0
    %1637 = vmatprep.subr.mxu0 0.0
    %1638 = vmatpush1.msra.mxu0 %v46
    %1639 = vmatprep.subr.mxu0 0.0
    %1640 = vmatpush1.msra.mxu0 %v47
    %1641 = vmatprep.subr.mxu0 0.0
    %1642 = vmatpush1.msra.mxu0 %v48
    %1643 = vmatprep.subr.mxu0 0.0
    %1644 = vmatpush1.msra.mxu0 %v49
    %1645 = vmatprep.subr.mxu0 0.0
    %1646 = vmatpush1.msra.mxu0 0.0
    %1647 = vmatprep.subr.mxu0 0.0
    %1648 = vmatpush1.msra.mxu0 0.0
    %1649 = vmatprep.subr.mxu0 0.0
    %1650 = vmatpush1.msra.mxu0 0.0
    %1651 = vmatprep.subr.mxu0 0.0
    %1652 = vmatpush1.msra.mxu0 0.0
    %1653 = vmatprep.subr.mxu0 0.0
    %1654 = vmatpush1.msra.mxu0 0.0
    %1655 = vmatprep.subr.mxu0 0.0
    %1656 = vmatpush1.msra.mxu0 0.0
    %1657 = vmatprep.subr.mxu0 0.0
    %1658 = vmatpush1.msra.mxu0 0.0
    %1659 = vmatprep.subr.mxu0 0.0
    %1660 = vmatpush1.msra.mxu0 0.0
    %1661 = vmatprep.subr.mxu0 0.0
    %1662 = vmatpush1.msra.mxu0 0.0
    %1663 = vmatprep.subr.mxu0 0.0
    %1664 = vmatpush1.msra.mxu0 0.0
    %1665 = vmatprep.subr.mxu0 0.0
    %1666 = vmatpush1.msra.mxu0 0.0
    %1667 = vmatprep.subr.mxu0 0.0
    %1668 = vmatpush1.msra.mxu0 0.0
    %1669 = vmatprep.subr.mxu0 0.0
    %1670 = vmatpush1.msra.mxu0 0.0
    %1671 = vmatprep.subr.mxu0 0.0
    %1672 = vmatpush1.msra.mxu0 0.0
    %1673 = vmatprep.subr.mxu0 0.0
    %1674 = vmatpush1.msra.mxu0 0.0
    %1675 = vmatprep.subr.mxu0 0.0
    %1676 = vmatpush1.msra.mxu0 0.0
    %1677 = vmatprep.subr.mxu0 0.0
    %1678 = vmatpush1.msra.mxu0 0.0
    %1679 = vmatprep.subr.mxu0 0.0
    %1680 = vmatpush1.msra.mxu0 0.0
    %1681 = vmatprep.subr.mxu0 0.0
    %1682 = vmatpush1.msra.mxu0 0.0
    %1683 = vmatprep.subr.mxu0 0.0
    %1684 = vmatpush1.msra.mxu0 0.0
    %1685 = vmatprep.subr.mxu0 0.0
    %1686 = vmatpush1.msra.mxu0 0.0
    %1687 = vmatprep.subr.mxu0 0.0
    %1688 = vmatpush1.msra.mxu0 0.0
    %1689 = vmatprep.subr.mxu0 0.0
    %1690 = vmatpush1.msra.mxu0 0.0
    %1691 = vmatprep.subr.mxu0 0.0
    %1692 = vmatpush1.msra.mxu0 0.0
    %1693 = vmatprep.subr.mxu0 0.0
    %1694 = vmatpush1.msra.mxu0 0.0
    %1695 = vmatprep.subr.mxu0 0.0
    %1696 = vmatpush1.msra.mxu0 0.0
    %1697 = vmatprep.subr.mxu0 0.0
    %1698 = vmatpush1.msra.mxu0 0.0
    %1699 = vmatprep.subr.mxu0 0.0
    %1700 = vmatpush1.msra.mxu0 0.0
    %1701 = vmatprep.mubr.f32.mxu0 0.0
    %1702 = vmatmul.mubr.f32.gmra.mrb[0].mxu0 %v1635
    %v1703 = vpop.f32.mrb[0].mxu0
    %v1704 = vadd.f32 %v1634, %v1703
    %v1705 = vpop.f32.mrb[0].mxu0
    %1706 = vdwg.mxu0
    %v1707 = vmul.f32 %v1704, 0.5
    %v1708 = vand.u32 2147483647, %v1707
    %vm1709 = vcmp.le.f32.partialorder %v1708, 0.7853982
    %vm1710 = vcmp.lt.s32.totalorder %v1707, 0
    %v1711 = vand.u32 %v1707, 2139095040
    %v1712 = vshrl.u32 %v1711, 23
    %v1713 = vsub.s32 %v1712, 127
    %v1714 = vand.u32 2147483647, %v1707
    %v1715 = vand.u32 %v1714, 8388607
    %v1716 = vor.u32 %v1715, 8388608
    %v1717 = vsub.s32 0, %v1716
    %v1718 = vadd.s32 %v1713, 1
    %vm1719 = vcmp.gt.s32.totalorder %v1718, 0
    %v1720 = vsel %vm1719, %v1718, 0
    %v1721 = vshrl.u32 %v1720, 5
    %v1722 = vand.u32 %v1720, 31
    %v1723 = vsub.s32 32, %v1722
    %v1724 = vshrl.u32 683565275, %v1723
    %v1725 = vshll.u32 683565275, %v1722
    %v1726 = vshrl.u32 2475754826, %v1723
    %v1727 = vor.u32 %v1725, %v1726
    %v1728 = vshll.u32 2475754826, %v1722
    %v1729 = vshrl.u32 2131351028, %v1723
    %v1730 = vor.u32 %v1728, %v1729
    %v1731 = vshll.u32 2131351028, %v1722
    %v1732 = vshrl.u32 2102212464, %v1723
    %v1733 = vor.u32 %v1731, %v1732
    %v1734 = vshll.u32 2102212464, %v1722
    %v1735 = vshrl.u32 920167782, %v1723
    %v1736 = vor.u32 %v1734, %v1735
    %v1737 = vshll.u32 920167782, %v1722
    %v1738 = vshrl.u32 1326507024, %v1723
    %v1739 = vor.u32 %v1737, %v1738
    %vm1740 = vcmp.lt.s32.totalorder %v1721, 1
    %vm1741 = vcmp.lt.s32.totalorder %v1721, 2
    %vm1742 = vcmp.lt.s32.totalorder %v1721, 3
    %vm1743 = vcmp.lt.s32.totalorder %v1721, 4
    %v1744 = vsel %vm1740, %v1724, %v1727
    %v1745 = vsel %vm1743, %v1733, 2102212464
    %v1746 = vsel %vm1742, %v1730, %v1745
    %v1747 = vsel %vm1741, %v1744, %v1746
    %v1748 = vsel %vm1740, %v1727, %v1730
    %v1749 = vsel %vm1743, %v1736, 920167782
    %v1750 = vsel %vm1742, %v1733, %v1749
    %v1751 = vsel %vm1741, %v1748, %v1750
    %v1752 = vsel %vm1740, %v1730, %v1733
    %v1753 = vsel %vm1743, %v1739, 1326507024
    %v1754 = vsel %vm1742, %v1736, %v1753
    %v1755 = vsel %vm1741, %v1752, %v1754
    %v1756 = vshll.u32 %v1716, 8
    %v1757 = vmul.u32.u64.compose %v1756, %v1755
    %v1758 = vextract.low.u32 %v1757
    %v1759 = vextract.high.u32 %v1757
    %v1760 = vmul.u32.u64.compose %v1756, %v1751
    %v1761 = vextract.low.u32 %v1760
    %v1762 = vextract.high.u32 %v1760
    %v1763 = vmul.u32 %v1756, %v1747
    %v1764 = vadd.s32 %v1759, %v1761
    %vm1765 = vc.u32 %v1759, %v1761
    %v1766 = vadd.s32 %v1762, 1
    %v1767 = vsel %vm1765, %v1766, %v1762
    %v1768 = vadd.s32 %v1763, %v1767
    %v1769 = vadd.s32 %v1768, 536870912
    %v1770 = vshrl.u32 %v1769, 30
    %v1771 = vshll.u32 %v1770, 30
    %v1772 = vsub.s32 %v1768, %v1771
    %vm1773 = vcmp.lt.s32.totalorder %v1772, 0
    %v1774 = vsub.s32 0, %v1772
    %v1775 = vsel %vm1773, %v1774, %v1772
    %v1776 = vclz %v1775
    %v1777 = vsub.s32 %v1776, 2
    %vm1778 = vcmp.gt.s32.totalorder 0, %v1777
    %v1779 = vsel %vm1778, 0, %v1777
    %v1780 = vsub.s32 32, %v1779
    %v1781 = vshll.u32 %v1772, %v1779
    %v1782 = vshrl.u32 %v1764, %v1780
    %v1783 = vor.u32 %v1781, %v1782
    %v1784 = vsub.s32 4294967266, %v1779
    %v1785 = vadd.s32 %v1784, 127
    %v1786 = vshll.u32 %v1785, 23
    %v1787 = vor.u32 4788187, %v1786
    %v1788 = vand.u32 2147483647, %v1787
    %v1790 = vcvt.s32.f32 %v1783
    %v1791 = vmul.f32 %v1790, %v1788
    %v1792 = vxor.u32 %v1791, 2147483648
    %v1793 = vsel %vm1710, %v1792, %v1791
    %v1794 = vsub.s32 4, %v1770
    %v1795 = vsel %vm1710, %v1794, %v1770
    %v1796 = vsel %vm1709, %v1707, %v1793
    %v1797 = vsel %vm1709, 0, %v1795
    %v1798 = vcosq.f32.pop %v1796
    %v1799 = vsinq.f32.pop %v1796
    %vm1800 = vweird.f32 %v1707
    %v1801 = vand.u32 %v1797, 3
    %vm1802 = vcmp.lt.s32.totalorder %v1801, 2
    %vm1803 = vcmp.eq.s32.totalorder %v1801, 0
    %v1804 = vxor.u32 %v1799, 2147483648
    %v1805 = vsel %vm1803, %v1798, %v1804
    %vm1806 = vcmp.eq.s32.totalorder %v1801, 2
    %v1807 = vxor.u32 %v1798, 2147483648
    %v1808 = vsel %vm1806, %v1807, %v1799
    %v1809 = vsel %vm1802, %v1805, %v1808
    %v1810 = vsel %vm1800, nan, %v1809
    %v1811 = vand.u32 2147483647, %v1707
    %vm1812 = vcmp.le.f32.partialorder %v1811, 0.7853982
    %vm1813 = vcmp.lt.s32.totalorder %v1707, 0
    %v1814 = vand.u32 %v1707, 2139095040
    %v1815 = vshrl.u32 %v1814, 23
    %v1816 = vsub.s32 %v1815, 127
    %v1817 = vand.u32 2147483647, %v1707
    %v1818 = vand.u32 %v1817, 8388607
    %v1819 = vor.u32 %v1818, 8388608
    %v1820 = vsub.s32 0, %v1819
    %v1821 = vadd.s32 %v1816, 1
    %vm1822 = vcmp.gt.s32.totalorder %v1821, 0
    %v1823 = vsel %vm1822, %v1821, 0
    %v1824 = vshrl.u32 %v1823, 5
    %v1825 = vand.u32 %v1823, 31
    %v1826 = vsub.s32 32, %v1825
    %v1827 = vshrl.u32 683565275, %v1826
    %v1828 = vshll.u32 683565275, %v1825
    %v1829 = vshrl.u32 2475754826, %v1826
    %v1830 = vor.u32 %v1828, %v1829
    %v1831 = vshll.u32 2475754826, %v1825
    %v1832 = vshrl.u32 2131351028, %v1826
    %v1833 = vor.u32 %v1831, %v1832
    %v1834 = vshll.u32 2131351028, %v1825
    %v1835 = vshrl.u32 2102212464, %v1826
    %v1836 = vor.u32 %v1834, %v1835
    %v1837 = vshll.u32 2102212464, %v1825
    %v1838 = vshrl.u32 920167782, %v1826
    %v1839 = vor.u32 %v1837, %v1838
    %v1840 = vshll.u32 920167782, %v1825
    %v1841 = vshrl.u32 1326507024, %v1826
    %v1842 = vor.u32 %v1840, %v1841
    %vm1843 = vcmp.lt.s32.totalorder %v1824, 1
    %vm1844 = vcmp.lt.s32.totalorder %v1824, 2
    %vm1845 = vcmp.lt.s32.totalorder %v1824, 3
    %vm1846 = vcmp.lt.s32.totalorder %v1824, 4
    %v1847 = vsel %vm1843, %v1827, %v1830
    %v1848 = vsel %vm1846, %v1836, 2102212464
    %v1849 = vsel %vm1845, %v1833, %v1848
    %v1850 = vsel %vm1844, %v1847, %v1849
    %v1851 = vsel %vm1843, %v1830, %v1833
    %v1852 = vsel %vm1846, %v1839, 920167782
    %v1853 = vsel %vm1845, %v1836, %v1852
    %v1854 = vsel %vm1844, %v1851, %v1853
    %v1855 = vsel %vm1843, %v1833, %v1836
    %v1856 = vsel %vm1846, %v1842, 1326507024
    %v1857 = vsel %vm1845, %v1839, %v1856
    %v1858 = vsel %vm1844, %v1855, %v1857
    %v1859 = vshll.u32 %v1819, 8
    %v1860 = vmul.u32.u64.compose %v1859, %v1858
    %v1861 = vextract.low.u32 %v1860
    %v1862 = vextract.high.u32 %v1860
    %v1863 = vmul.u32.u64.compose %v1859, %v1854
    %v1864 = vextract.low.u32 %v1863
    %v1865 = vextract.high.u32 %v1863
    %v1866 = vmul.u32 %v1859, %v1850
    %v1867 = vadd.s32 %v1862, %v1864
    %vm1868 = vc.u32 %v1862, %v1864
    %v1869 = vadd.s32 %v1865, 1
    %v1870 = vsel %vm1868, %v1869, %v1865
    %v1871 = vadd.s32 %v1866, %v1870
    %v1872 = vadd.s32 %v1871, 536870912
    %v1873 = vshrl.u32 %v1872, 30
    %v1874 = vshll.u32 %v1873, 30
    %v1875 = vsub.s32 %v1871, %v1874
    %vm1876 = vcmp.lt.s32.totalorder %v1875, 0
    %v1877 = vsub.s32 0, %v1875
    %v1878 = vsel %vm1876, %v1877, %v1875
    %v1879 = vclz %v1878
    %v1880 = vsub.s32 %v1879, 2
    %vm1881 = vcmp.gt.s32.totalorder 0, %v1880
    %v1882 = vsel %vm1881, 0, %v1880
    %v1883 = vsub.s32 32, %v1882
    %v1884 = vshll.u32 %v1875, %v1882
    %v1885 = vshrl.u32 %v1867, %v1883
    %v1886 = vor.u32 %v1884, %v1885
    %v1887 = vsub.s32 4294967266, %v1882
    %v1888 = vadd.s32 %v1887, 127
    %v1889 = vshll.u32 %v1888, 23
    %v1890 = vor.u32 4788187, %v1889
    %v1891 = vand.u32 2147483647, %v1890
    %v1893 = vcvt.s32.f32 %v1886
    %v1894 = vmul.f32 %v1893, %v1891
    %v1895 = vxor.u32 %v1894, 2147483648
    %v1896 = vsel %vm1813, %v1895, %v1894
    %v1897 = vsub.s32 4, %v1873
    %v1898 = vsel %vm1813, %v1897, %v1873
    %v1899 = vsel %vm1812, %v1707, %v1896
    %v1900 = vsel %vm1812, 0, %v1898
    %v1901 = vcosq.f32.pop %v1899
    %v1902 = vsinq.f32.pop %v1899
    %vm1903 = vweird.f32 %v1707
    %v1904 = vadd.s32 %v1900, 3
    %v1905 = vand.u32 %v1904, 3
    %vm1906 = vcmp.lt.s32.totalorder %v1905, 2
    %vm1907 = vcmp.eq.s32.totalorder %v1905, 0
    %v1908 = vxor.u32 %v1902, 2147483648
    %v1909 = vsel %vm1907, %v1901, %v1908
    %vm1910 = vcmp.eq.s32.totalorder %v1905, 2
    %v1911 = vxor.u32 %v1901, 2147483648
    %v1912 = vsel %vm1910, %v1911, %v1902
    %v1913 = vsel %vm1906, %v1909, %v1912
    %v1914 = vsel %vm1903, nan, %v1913
    %1916 = vset.pattern.permute.xlu0 0
    %1917 = vperm.xlu0 %1916, %v1810
    %v1918 = vpop.permute.xlu0 %1917
    %v1920 = vmul.f32 %v1918, %v79
    %1922 = vset.pattern.permute.xlu0 0
    %1923 = vperm.xlu0 %1922, %v1914
    %v1924 = vpop.permute.xlu0 %1923
    %v1926 = vmul.f32 %v1924, %v66
    %v1927 = vadd.f32 %v1920, %v1926
    %1928 = vset.pattern.permute.xlu0 1
    %1929 = vperm.xlu0 %1928, %v1810
    %v1930 = vpop.permute.xlu0 %1929
    %v1932 = vmul.f32 %v1930, %v80
    %1933 = vset.pattern.permute.xlu0 1
    %1934 = vperm.xlu0 %1933, %v1914
    %v1935 = vpop.permute.xlu0 %1934
    %v1937 = vmul.f32 %v1935, %v70
    %v1938 = vadd.f32 %v1932, %v1937
    %1939 = vset.pattern.permute.xlu0 2
    %1940 = vperm.xlu0 %1939, %v1810
    %v1941 = vpop.permute.xlu0 %1940
    %v1943 = vmul.f32 %v1941, %v81
    %1944 = vset.pattern.permute.xlu0 2
    %1945 = vperm.xlu0 %1944, %v1914
    %v1946 = vpop.permute.xlu0 %1945
    %v1948 = vmul.f32 %v1946, %v74
    %v1949 = vadd.f32 %v1943, %v1948
    %1950 = vset.pattern.permute.xlu0 3
    %1951 = vperm.xlu0 %1950, %v1810
    %v1952 = vpop.permute.xlu0 %1951
    %v1954 = vmul.f32 %v1952, %v82
    %1955 = vset.pattern.permute.xlu0 3
    %1956 = vperm.xlu0 %1955, %v1914
    %v1957 = vpop.permute.xlu0 %1956
    %v1959 = vmul.f32 %v1957, %v78
    %v1960 = vadd.f32 %v1954, %v1959
    %v1961 = vmul.f32 %v1927, %v1938
    %v1962 = vmul.f32 %v1949, %v1960
    %v1963 = vmul.f32 %v1961, %v1962
    %v1965 = vsel %vm417, %v1963, 0
    %1967 = vmatprep.subr.mxu0 0.0
    %1968 = vmatpush1.msra.mxu0 %v50
    %1969 = vmatprep.subr.mxu0 0.0
    %1970 = vmatpush1.msra.mxu0 %v51
    %1971 = vmatprep.subr.mxu0 0.0
    %1972 = vmatpush1.msra.mxu0 0.0
    %1973 = vmatprep.subr.mxu0 0.0
    %1974 = vmatpush1.msra.mxu0 0.0
    %1975 = vmatprep.subr.mxu0 0.0
    %1976 = vmatpush1.msra.mxu0 0.0
    %1977 = vmatprep.subr.mxu0 0.0
    %1978 = vmatpush1.msra.mxu0 0.0
    %1979 = vmatprep.subr.mxu0 0.0
    %1980 = vmatpush1.msra.mxu0 0.0
    %1981 = vmatprep.subr.mxu0 0.0
    %1982 = vmatpush1.msra.mxu0 0.0
    %1983 = vmatprep.subr.mxu0 0.0
    %1984 = vmatpush1.msra.mxu0 0.0
    %1985 = vmatprep.subr.mxu0 0.0
    %1986 = vmatpush1.msra.mxu0 0.0
    %1987 = vmatprep.subr.mxu0 0.0
    %1988 = vmatpush1.msra.mxu0 0.0
    %1989 = vmatprep.subr.mxu0 0.0
    %1990 = vmatpush1.msra.mxu0 0.0
    %1991 = vmatprep.subr.mxu0 0.0
    %1992 = vmatpush1.msra.mxu0 0.0
    %1993 = vmatprep.subr.mxu0 0.0
    %1994 = vmatpush1.msra.mxu0 0.0
    %1995 = vmatprep.subr.mxu0 0.0
    %1996 = vmatpush1.msra.mxu0 0.0
    %1997 = vmatprep.subr.mxu0 0.0
    %1998 = vmatpush1.msra.mxu0 0.0
    %1999 = vmatprep.subr.mxu0 0.0
    %2000 = vmatpush1.msra.mxu0 0.0
    %2001 = vmatprep.subr.mxu0 0.0
    %2002 = vmatpush1.msra.mxu0 0.0
    %2003 = vmatprep.subr.mxu0 0.0
    %2004 = vmatpush1.msra.mxu0 0.0
    %2005 = vmatprep.subr.mxu0 0.0
    %2006 = vmatpush1.msra.mxu0 0.0
    %2007 = vmatprep.subr.mxu0 0.0
    %2008 = vmatpush1.msra.mxu0 0.0
    %2009 = vmatprep.subr.mxu0 0.0
    %2010 = vmatpush1.msra.mxu0 0.0
    %2011 = vmatprep.subr.mxu0 0.0
    %2012 = vmatpush1.msra.mxu0 0.0
    %2013 = vmatprep.subr.mxu0 0.0
    %2014 = vmatpush1.msra.mxu0 0.0
    %2015 = vmatprep.subr.mxu0 0.0
    %2016 = vmatpush1.msra.mxu0 0.0
    %2017 = vmatprep.subr.mxu0 0.0
    %2018 = vmatpush1.msra.mxu0 0.0
    %2019 = vmatprep.subr.mxu0 0.0
    %2020 = vmatpush1.msra.mxu0 0.0
    %2021 = vmatprep.subr.mxu0 0.0
    %2022 = vmatpush1.msra.mxu0 0.0
    %2023 = vmatprep.subr.mxu0 0.0
    %2024 = vmatpush1.msra.mxu0 0.0
    %2025 = vmatprep.subr.mxu0 0.0
    %2026 = vmatpush1.msra.mxu0 0.0
    %2027 = vmatprep.subr.mxu0 0.0
    %2028 = vmatpush1.msra.mxu0 0.0
    %2029 = vmatprep.subr.mxu0 0.0
    %2030 = vmatpush1.msra.mxu0 0.0
    %2031 = vmatprep.mubr.f32.mxu0 0.0
    %2032 = vmatmul.mubr.f32.gmra.mrb[0].mxu0 %v1965
    %v2033 = vpop.f32.mrb[0].mxu0
    %v2034 = vadd.f32 0.0, %v2033
    %v2035 = vpop.f32.mrb[0].mxu0
    %2036 = vdwg.mxu0
    %v2037 = vmul.f32 %v2034, %v2034
    %2039 = vrot.lane.b32.xlu0 %v2037, 64
    %v2040 = vpop.permute.xlu0 %2039
    %v2042 = vadd.f32 %v2037, %v2040
    %v2044 = vsel %vm503, %v2042, 0
    %2046 = vmatprep.subr.mxu0 0.0
    %2047 = vmatpush1.msra.mxu0 %v52
    %2048 = vmatprep.subr.mxu0 0.0
    %2049 = vmatpush1.msra.mxu0 %v53
    %2050 = vmatprep.subr.mxu0 0.0
    %2051 = vmatpush1.msra.mxu0 %v54
    %2052 = vmatprep.subr.mxu0 0.0
    %2053 = vmatpush1.msra.mxu0 %v55
    %2054 = vmatprep.subr.mxu0 0.0
    %2055 = vmatpush1.msra.mxu0 %v56
    %2056 = vmatprep.subr.mxu0 0.0
    %2057 = vmatpush1.msra.mxu0 %v57
    %2058 = vmatprep.subr.mxu0 0.0
    %2059 = vmatpush1.msra.mxu0 %v58
    %2060 = vmatprep.subr.mxu0 0.0
    %2061 = vmatpush1.msra.mxu0 %v59
    %2062 = vmatprep.subr.mxu0 0.0
    %2063 = vmatpush1.msra.mxu0 0.0
    %2064 = vmatprep.subr.mxu0 0.0
    %2065 = vmatpush1.msra.mxu0 0.0
    %2066 = vmatprep.subr.mxu0 0.0
    %2067 = vmatpush1.msra.mxu0 0.0
    %2068 = vmatprep.subr.mxu0 0.0
    %2069 = vmatpush1.msra.mxu0 0.0
    %2070 = vmatprep.subr.mxu0 0.0
    %2071 = vmatpush1.msra.mxu0 0.0
    %2072 = vmatprep.subr.mxu0 0.0
    %2073 = vmatpush1.msra.mxu0 0.0
    %2074 = vmatprep.subr.mxu0 0.0
    %2075 = vmatpush1.msra.mxu0 0.0
    %2076 = vmatprep.subr.mxu0 0.0
    %2077 = vmatpush1.msra.mxu0 0.0
    %2078 = vmatprep.subr.mxu0 0.0
    %2079 = vmatpush1.msra.mxu0 0.0
    %2080 = vmatprep.subr.mxu0 0.0
    %2081 = vmatpush1.msra.mxu0 0.0
    %2082 = vmatprep.subr.mxu0 0.0
    %2083 = vmatpush1.msra.mxu0 0.0
    %2084 = vmatprep.subr.mxu0 0.0
    %2085 = vmatpush1.msra.mxu0 0.0
    %2086 = vmatprep.subr.mxu0 0.0
    %2087 = vmatpush1.msra.mxu0 0.0
    %2088 = vmatprep.subr.mxu0 0.0
    %2089 = vmatpush1.msra.mxu0 0.0
    %2090 = vmatprep.subr.mxu0 0.0
    %2091 = vmatpush1.msra.mxu0 0.0
    %2092 = vmatprep.subr.mxu0 0.0
    %2093 = vmatpush1.msra.mxu0 0.0
    %2094 = vmatprep.subr.mxu0 0.0
    %2095 = vmatpush1.msra.mxu0 0.0
    %2096 = vmatprep.subr.mxu0 0.0
    %2097 = vmatpush1.msra.mxu0 0.0
    %2098 = vmatprep.subr.mxu0 0.0
    %2099 = vmatpush1.msra.mxu0 0.0
    %2100 = vmatprep.subr.mxu0 0.0
    %2101 = vmatpush1.msra.mxu0 0.0
    %2102 = vmatprep.subr.mxu0 0.0
    %2103 = vmatpush1.msra.mxu0 0.0
    %2104 = vmatprep.subr.mxu0 0.0
    %2105 = vmatpush1.msra.mxu0 0.0
    %2106 = vmatprep.subr.mxu0 0.0
    %2107 = vmatpush1.msra.mxu0 0.0
    %2108 = vmatprep.subr.mxu0 0.0
    %2109 = vmatpush1.msra.mxu0 0.0
    %2110 = vmatprep.mubr.f32.mxu0 0.0
    %2111 = vmatmul.mubr.f32.gmra.mrb[0].mxu0 %v2044
    %v2112 = vpop.f32.mrb[0].mxu0
    %v2113 = vadd.f32 %v501, %v2112
    %v2114 = vpop.f32.mrb[0].mxu0
    %2115 = vdwg.mxu0
    %v2116 = vxor.u32 %v2113, 2147483648
    %v2117 = vmul.f32 %v2116, 1.442695
    %v2118 = vpow.pop %v2117
    %v2119 = vadd.f32 %v2118, 1.0
    %v2120 = vrcp.pop %v2119
    %v2121 = vmul.f32 1.0, %v2120
    %v2122 = vtanh.pop %v2113
    %v2123 = vmul.f32 %v2121, %v1620
    %2125 = vrot.lane.b32.xlu0 %v2122, 96
    %v2126 = vpop.permute.xlu0 %2125
    %v2128 = vmul.f32 %v2121, %v2126
    %2130 = vrot.lane.b32.xlu0 %v2128, 96
    %v2131 = vpop.permute.xlu0 %2130
    %v2133 = vadd.f32 %v2123, %v2131
    %v2134 = vtanh.pop %v2133
    %2136 = vrot.lane.b32.xlu0 %v2134, 96
    %v2137 = vpop.permute.xlu0 %2136
    %v2139 = vmul.f32 %v2121, %v2137
    %2141 = vrot.lane.b32.xlu0 %v2139, 32
    %v2142 = vpop.permute.xlu0 %2141
    %s2144 = scalar_lea.vmem [#allocation7], 6
    %2145 = vst.msk [vmem:[%s2144] sm:$0x3] %vm605, %v2142
    %s2146 = scalar_lea.vmem %s0, 8
    %v2147 = vld [vmem:[%s2146] sm:$0x3]
    %v2148 = vsel %vm86, %v2142, 0
    %2150 = vmatprep.subr.mxu0 0.0
    %2151 = vmatpush1.msra.mxu0 %v46
    %2152 = vmatprep.subr.mxu0 0.0
    %2153 = vmatpush1.msra.mxu0 %v47
    %2154 = vmatprep.subr.mxu0 0.0
    %2155 = vmatpush1.msra.mxu0 %v48
    %2156 = vmatprep.subr.mxu0 0.0
    %2157 = vmatpush1.msra.mxu0 %v49
    %2158 = vmatprep.subr.mxu0 0.0
    %2159 = vmatpush1.msra.mxu0 0.0
    %2160 = vmatprep.subr.mxu0 0.0
    %2161 = vmatpush1.msra.mxu0 0.0
    %2162 = vmatprep.subr.mxu0 0.0
    %2163 = vmatpush1.msra.mxu0 0.0
    %2164 = vmatprep.subr.mxu0 0.0
    %2165 = vmatpush1.msra.mxu0 0.0
    %2166 = vmatprep.subr.mxu0 0.0
    %2167 = vmatpush1.msra.mxu0 0.0
    %2168 = vmatprep.subr.mxu0 0.0
    %2169 = vmatpush1.msra.mxu0 0.0
    %2170 = vmatprep.subr.mxu0 0.0
    %2171 = vmatpush1.msra.mxu0 0.0
    %2172 = vmatprep.subr.mxu0 0.0
    %2173 = vmatpush1.msra.mxu0 0.0
    %2174 = vmatprep.subr.mxu0 0.0
    %2175 = vmatpush1.msra.mxu0 0.0
    %2176 = vmatprep.subr.mxu0 0.0
    %2177 = vmatpush1.msra.mxu0 0.0
    %2178 = vmatprep.subr.mxu0 0.0
    %2179 = vmatpush1.msra.mxu0 0.0
    %2180 = vmatprep.subr.mxu0 0.0
    %2181 = vmatpush1.msra.mxu0 0.0
    %2182 = vmatprep.subr.mxu0 0.0
    %2183 = vmatpush1.msra.mxu0 0.0
    %2184 = vmatprep.subr.mxu0 0.0
    %2185 = vmatpush1.msra.mxu0 0.0
    %2186 = vmatprep.subr.mxu0 0.0
    %2187 = vmatpush1.msra.mxu0 0.0
    %2188 = vmatprep.subr.mxu0 0.0
    %2189 = vmatpush1.msra.mxu0 0.0
    %2190 = vmatprep.subr.mxu0 0.0
    %2191 = vmatpush1.msra.mxu0 0.0
    %2192 = vmatprep.subr.mxu0 0.0
    %2193 = vmatpush1.msra.mxu0 0.0
    %2194 = vmatprep.subr.mxu0 0.0
    %2195 = vmatpush1.msra.mxu0 0.0
    %2196 = vmatprep.subr.mxu0 0.0
    %2197 = vmatpush1.msra.mxu0 0.0
    %2198 = vmatprep.subr.mxu0 0.0
    %2199 = vmatpush1.msra.mxu0 0.0
    %2200 = vmatprep.subr.mxu0 0.0
    %2201 = vmatpush1.msra.mxu0 0.0
    %2202 = vmatprep.subr.mxu0 0.0
    %2203 = vmatpush1.msra.mxu0 0.0
    %2204 = vmatprep.subr.mxu0 0.0
    %2205 = vmatpush1.msra.mxu0 0.0
    %2206 = vmatprep.subr.mxu0 0.0
    %2207 = vmatpush1.msra.mxu0 0.0
    %2208 = vmatprep.subr.mxu0 0.0
    %2209 = vmatpush1.msra.mxu0 0.0
    %2210 = vmatprep.subr.mxu0 0.0
    %2211 = vmatpush1.msra.mxu0 0.0
    %2212 = vmatprep.subr.mxu0 0.0
    %2213 = vmatpush1.msra.mxu0 0.0
    %2214 = vmatprep.mubr.f32.mxu0 0.0
    %2215 = vmatmul.mubr.f32.gmra.mrb[0].mxu0 %v2148
    %v2216 = vpop.f32.mrb[0].mxu0
    %v2217 = vadd.f32 %v2147, %v2216
    %v2218 = vpop.f32.mrb[0].mxu0
    %2219 = vdwg.mxu0
    %v2220 = vmul.f32 %v2217, 0.5
    %v2221 = vand.u32 2147483647, %v2220
    %vm2222 = vcmp.le.f32.partialorder %v2221, 0.7853982
    %vm2223 = vcmp.lt.s32.totalorder %v2220, 0
    %v2224 = vand.u32 %v2220, 2139095040
    %v2225 = vshrl.u32 %v2224, 23
    %v2226 = vsub.s32 %v2225, 127
    %v2227 = vand.u32 2147483647, %v2220
    %v2228 = vand.u32 %v2227, 8388607
    %v2229 = vor.u32 %v2228, 8388608
    %v2230 = vsub.s32 0, %v2229
    %v2231 = vadd.s32 %v2226, 1
    %vm2232 = vcmp.gt.s32.totalorder %v2231, 0
    %v2233 = vsel %vm2232, %v2231, 0
    %v2234 = vshrl.u32 %v2233, 5
    %v2235 = vand.u32 %v2233, 31
    %v2236 = vsub.s32 32, %v2235
    %v2237 = vshrl.u32 683565275, %v2236
    %v2238 = vshll.u32 683565275, %v2235
    %v2239 = vshrl.u32 2475754826, %v2236
    %v2240 = vor.u32 %v2238, %v2239
    %v2241 = vshll.u32 2475754826, %v2235
    %v2242 = vshrl.u32 2131351028, %v2236
    %v2243 = vor.u32 %v2241, %v2242
    %v2244 = vshll.u32 2131351028, %v2235
    %v2245 = vshrl.u32 2102212464, %v2236
    %v2246 = vor.u32 %v2244, %v2245
    %v2247 = vshll.u32 2102212464, %v2235
    %v2248 = vshrl.u32 920167782, %v2236
    %v2249 = vor.u32 %v2247, %v2248
    %v2250 = vshll.u32 920167782, %v2235
    %v2251 = vshrl.u32 1326507024, %v2236
    %v2252 = vor.u32 %v2250, %v2251
    %vm2253 = vcmp.lt.s32.totalorder %v2234, 1
    %vm2254 = vcmp.lt.s32.totalorder %v2234, 2
    %vm2255 = vcmp.lt.s32.totalorder %v2234, 3
    %vm2256 = vcmp.lt.s32.totalorder %v2234, 4
    %v2257 = vsel %vm2253, %v2237, %v2240
    %v2258 = vsel %vm2256, %v2246, 2102212464
    %v2259 = vsel %vm2255, %v2243, %v2258
    %v2260 = vsel %vm2254, %v2257, %v2259
    %v2261 = vsel %vm2253, %v2240, %v2243
    %v2262 = vsel %vm2256, %v2249, 920167782
    %v2263 = vsel %vm2255, %v2246, %v2262
    %v2264 = vsel %vm2254, %v2261, %v2263
    %v2265 = vsel %vm2253, %v2243, %v2246
    %v2266 = vsel %vm2256, %v2252, 1326507024
    %v2267 = vsel %vm2255, %v2249, %v2266
    %v2268 = vsel %vm2254, %v2265, %v2267
    %v2269 = vshll.u32 %v2229, 8
    %v2270 = vmul.u32.u64.compose %v2269, %v2268
    %v2271 = vextract.low.u32 %v2270
    %v2272 = vextract.high.u32 %v2270
    %v2273 = vmul.u32.u64.compose %v2269, %v2264
    %v2274 = vextract.low.u32 %v2273
    %v2275 = vextract.high.u32 %v2273
    %v2276 = vmul.u32 %v2269, %v2260
    %v2277 = vadd.s32 %v2272, %v2274
    %vm2278 = vc.u32 %v2272, %v2274
    %v2279 = vadd.s32 %v2275, 1
    %v2280 = vsel %vm2278, %v2279, %v2275
    %v2281 = vadd.s32 %v2276, %v2280
    %v2282 = vadd.s32 %v2281, 536870912
    %v2283 = vshrl.u32 %v2282, 30
    %v2284 = vshll.u32 %v2283, 30
    %v2285 = vsub.s32 %v2281, %v2284
    %vm2286 = vcmp.lt.s32.totalorder %v2285, 0
    %v2287 = vsub.s32 0, %v2285
    %v2288 = vsel %vm2286, %v2287, %v2285
    %v2289 = vclz %v2288
    %v2290 = vsub.s32 %v2289, 2
    %vm2291 = vcmp.gt.s32.totalorder 0, %v2290
    %v2292 = vsel %vm2291, 0, %v2290
    %v2293 = vsub.s32 32, %v2292
    %v2294 = vshll.u32 %v2285, %v2292
    %v2295 = vshrl.u32 %v2277, %v2293
    %v2296 = vor.u32 %v2294, %v2295
    %v2297 = vsub.s32 4294967266, %v2292
    %v2298 = vadd.s32 %v2297, 127
    %v2299 = vshll.u32 %v2298, 23
    %v2300 = vor.u32 4788187, %v2299
    %v2301 = vand.u32 2147483647, %v2300
    %v2303 = vcvt.s32.f32 %v2296
    %v2304 = vmul.f32 %v2303, %v2301
    %v2305 = vxor.u32 %v2304, 2147483648
    %v2306 = vsel %vm2223, %v2305, %v2304
    %v2307 = vsub.s32 4, %v2283
    %v2308 = vsel %vm2223, %v2307, %v2283
    %v2309 = vsel %vm2222, %v2220, %v2306
    %v2310 = vsel %vm2222, 0, %v2308
    %v2311 = vcosq.f32.pop %v2309
    %v2312 = vsinq.f32.pop %v2309
    %vm2313 = vweird.f32 %v2220
    %v2314 = vand.u32 %v2310, 3
    %vm2315 = vcmp.lt.s32.totalorder %v2314, 2
    %vm2316 = vcmp.eq.s32.totalorder %v2314, 0
    %v2317 = vxor.u32 %v2312, 2147483648
    %v2318 = vsel %vm2316, %v2311, %v2317
    %vm2319 = vcmp.eq.s32.totalorder %v2314, 2
    %v2320 = vxor.u32 %v2311, 2147483648
    %v2321 = vsel %vm2319, %v2320, %v2312
    %v2322 = vsel %vm2315, %v2318, %v2321
    %v2323 = vsel %vm2313, nan, %v2322
    %v2324 = vand.u32 2147483647, %v2220
    %vm2325 = vcmp.le.f32.partialorder %v2324, 0.7853982
    %vm2326 = vcmp.lt.s32.totalorder %v2220, 0
    %v2327 = vand.u32 %v2220, 2139095040
    %v2328 = vshrl.u32 %v2327, 23
    %v2329 = vsub.s32 %v2328, 127
    %v2330 = vand.u32 2147483647, %v2220
    %v2331 = vand.u32 %v2330, 8388607
    %v2332 = vor.u32 %v2331, 8388608
    %v2333 = vsub.s32 0, %v2332
    %v2334 = vadd.s32 %v2329, 1
    %vm2335 = vcmp.gt.s32.totalorder %v2334, 0
    %v2336 = vsel %vm2335, %v2334, 0
    %v2337 = vshrl.u32 %v2336, 5
    %v2338 = vand.u32 %v2336, 31
    %v2339 = vsub.s32 32, %v2338
    %v2340 = vshrl.u32 683565275, %v2339
    %v2341 = vshll.u32 683565275, %v2338
    %v2342 = vshrl.u32 2475754826, %v2339
    %v2343 = vor.u32 %v2341, %v2342
    %v2344 = vshll.u32 2475754826, %v2338
    %v2345 = vshrl.u32 2131351028, %v2339
    %v2346 = vor.u32 %v2344, %v2345
    %v2347 = vshll.u32 2131351028, %v2338
    %v2348 = vshrl.u32 2102212464, %v2339
    %v2349 = vor.u32 %v2347, %v2348
    %v2350 = vshll.u32 2102212464, %v2338
    %v2351 = vshrl.u32 920167782, %v2339
    %v2352 = vor.u32 %v2350, %v2351
    %v2353 = vshll.u32 920167782, %v2338
    %v2354 = vshrl.u32 1326507024, %v2339
    %v2355 = vor.u32 %v2353, %v2354
    %vm2356 = vcmp.lt.s32.totalorder %v2337, 1
    %vm2357 = vcmp.lt.s32.totalorder %v2337, 2
    %vm2358 = vcmp.lt.s32.totalorder %v2337, 3
    %vm2359 = vcmp.lt.s32.totalorder %v2337, 4
    %v2360 = vsel %vm2356, %v2340, %v2343
    %v2361 = vsel %vm2359, %v2349, 2102212464
    %v2362 = vsel %vm2358, %v2346, %v2361
    %v2363 = vsel %vm2357, %v2360, %v2362
    %v2364 = vsel %vm2356, %v2343, %v2346
    %v2365 = vsel %vm2359, %v2352, 920167782
    %v2366 = vsel %vm2358, %v2349, %v2365
    %v2367 = vsel %vm2357, %v2364, %v2366
    %v2368 = vsel %vm2356, %v2346, %v2349
    %v2369 = vsel %vm2359, %v2355, 1326507024
    %v2370 = vsel %vm2358, %v2352, %v2369
    %v2371 = vsel %vm2357, %v2368, %v2370
    %v2372 = vshll.u32 %v2332, 8
    %v2373 = vmul.u32.u64.compose %v2372, %v2371
    %v2374 = vextract.low.u32 %v2373
    %v2375 = vextract.high.u32 %v2373
    %v2376 = vmul.u32.u64.compose %v2372, %v2367
    %v2377 = vextract.low.u32 %v2376
    %v2378 = vextract.high.u32 %v2376
    %v2379 = vmul.u32 %v2372, %v2363
    %v2380 = vadd.s32 %v2375, %v2377
    %vm2381 = vc.u32 %v2375, %v2377
    %v2382 = vadd.s32 %v2378, 1
    %v2383 = vsel %vm2381, %v2382, %v2378
    %v2384 = vadd.s32 %v2379, %v2383
    %v2385 = vadd.s32 %v2384, 536870912
    %v2386 = vshrl.u32 %v2385, 30
    %v2387 = vshll.u32 %v2386, 30
    %v2388 = vsub.s32 %v2384, %v2387
    %vm2389 = vcmp.lt.s32.totalorder %v2388, 0
    %v2390 = vsub.s32 0, %v2388
    %v2391 = vsel %vm2389, %v2390, %v2388
    %v2392 = vclz %v2391
    %v2393 = vsub.s32 %v2392, 2
    %vm2394 = vcmp.gt.s32.totalorder 0, %v2393
    %v2395 = vsel %vm2394, 0, %v2393
    %v2396 = vsub.s32 32, %v2395
    %v2397 = vshll.u32 %v2388, %v2395
    %v2398 = vshrl.u32 %v2380, %v2396
    %v2399 = vor.u32 %v2397, %v2398
    %v2400 = vsub.s32 4294967266, %v2395
    %v2401 = vadd.s32 %v2400, 127
    %v2402 = vshll.u32 %v2401, 23
    %v2403 = vor.u32 4788187, %v2402
    %v2404 = vand.u32 2147483647, %v2403
    %v2406 = vcvt.s32.f32 %v2399
    %v2407 = vmul.f32 %v2406, %v2404
    %v2408 = vxor.u32 %v2407, 2147483648
    %v2409 = vsel %vm2326, %v2408, %v2407
    %v2410 = vsub.s32 4, %v2386
    %v2411 = vsel %vm2326, %v2410, %v2386
    %v2412 = vsel %vm2325, %v2220, %v2409
    %v2413 = vsel %vm2325, 0, %v2411
    %v2414 = vcosq.f32.pop %v2412
    %v2415 = vsinq.f32.pop %v2412
    %vm2416 = vweird.f32 %v2220
    %v2417 = vadd.s32 %v2413, 3
    %v2418 = vand.u32 %v2417, 3
    %vm2419 = vcmp.lt.s32.totalorder %v2418, 2
    %vm2420 = vcmp.eq.s32.totalorder %v2418, 0
    %v2421 = vxor.u32 %v2415, 2147483648
    %v2422 = vsel %vm2420, %v2414, %v2421
    %vm2423 = vcmp.eq.s32.totalorder %v2418, 2
    %v2424 = vxor.u32 %v2414, 2147483648
    %v2425 = vsel %vm2423, %v2424, %v2415
    %v2426 = vsel %vm2419, %v2422, %v2425
    %v2427 = vsel %vm2416, nan, %v2426
    %2429 = vset.pattern.permute.xlu0 0
    %2430 = vperm.xlu0 %2429, %v2323
    %v2431 = vpop.permute.xlu0 %2430
    %v2433 = vmul.f32 %v2431, %v79
    %2435 = vset.pattern.permute.xlu0 0
    %2436 = vperm.xlu0 %2435, %v2427
    %v2437 = vpop.permute.xlu0 %2436
    %v2439 = vmul.f32 %v2437, %v66
    %v2440 = vadd.f32 %v2433, %v2439
    %2441 = vset.pattern.permute.xlu0 1
    %2442 = vperm.xlu0 %2441, %v2323
    %v2443 = vpop.permute.xlu0 %2442
    %v2445 = vmul.f32 %v2443, %v80
    %2446 = vset.pattern.permute.xlu0 1
    %2447 = vperm.xlu0 %2446, %v2427
    %v2448 = vpop.permute.xlu0 %2447
    %v2450 = vmul.f32 %v2448, %v70
    %v2451 = vadd.f32 %v2445, %v2450
    %2452 = vset.pattern.permute.xlu0 2
    %2453 = vperm.xlu0 %2452, %v2323
    %v2454 = vpop.permute.xlu0 %2453
    %v2456 = vmul.f32 %v2454, %v81
    %2457 = vset.pattern.permute.xlu0 2
    %2458 = vperm.xlu0 %2457, %v2427
    %v2459 = vpop.permute.xlu0 %2458
    %v2461 = vmul.f32 %v2459, %v74
    %v2462 = vadd.f32 %v2456, %v2461
    %2463 = vset.pattern.permute.xlu0 3
    %2464 = vperm.xlu0 %2463, %v2323
    %v2465 = vpop.permute.xlu0 %2464
    %v2467 = vmul.f32 %v2465, %v82
    %2468 = vset.pattern.permute.xlu0 3
    %2469 = vperm.xlu0 %2468, %v2427
    %v2470 = vpop.permute.xlu0 %2469
    %v2472 = vmul.f32 %v2470, %v78
    %v2473 = vadd.f32 %v2467, %v2472
    %v2474 = vmul.f32 %v2440, %v2451
    %v2475 = vmul.f32 %v2462, %v2473
    %v2476 = vmul.f32 %v2474, %v2475
    %v2478 = vsel %vm417, %v2476, 0
    %2480 = vmatprep.subr.mxu0 0.0
    %2481 = vmatpush1.msra.mxu0 %v50
    %2482 = vmatprep.subr.mxu0 0.0
    %2483 = vmatpush1.msra.mxu0 %v51
    %2484 = vmatprep.subr.mxu0 0.0
    %2485 = vmatpush1.msra.mxu0 0.0
    %2486 = vmatprep.subr.mxu0 0.0
    %2487 = vmatpush1.msra.mxu0 0.0
    %2488 = vmatprep.subr.mxu0 0.0
    %2489 = vmatpush1.msra.mxu0 0.0
    %2490 = vmatprep.subr.mxu0 0.0
    %2491 = vmatpush1.msra.mxu0 0.0
    %2492 = vmatprep.subr.mxu0 0.0
    %2493 = vmatpush1.msra.mxu0 0.0
    %2494 = vmatprep.subr.mxu0 0.0
    %2495 = vmatpush1.msra.mxu0 0.0
    %2496 = vmatprep.subr.mxu0 0.0
    %2497 = vmatpush1.msra.mxu0 0.0
    %2498 = vmatprep.subr.mxu0 0.0
    %2499 = vmatpush1.msra.mxu0 0.0
    %2500 = vmatprep.subr.mxu0 0.0
    %2501 = vmatpush1.msra.mxu0 0.0
    %2502 = vmatprep.subr.mxu0 0.0
    %2503 = vmatpush1.msra.mxu0 0.0
    %2504 = vmatprep.subr.mxu0 0.0
    %2505 = vmatpush1.msra.mxu0 0.0
    %2506 = vmatprep.subr.mxu0 0.0
    %2507 = vmatpush1.msra.mxu0 0.0
    %2508 = vmatprep.subr.mxu0 0.0
    %2509 = vmatpush1.msra.mxu0 0.0
    %2510 = vmatprep.subr.mxu0 0.0
    %2511 = vmatpush1.msra.mxu0 0.0
    %2512 = vmatprep.subr.mxu0 0.0
    %2513 = vmatpush1.msra.mxu0 0.0
    %2514 = vmatprep.subr.mxu0 0.0
    %2515 = vmatpush1.msra.mxu0 0.0
    %2516 = vmatprep.subr.mxu0 0.0
    %2517 = vmatpush1.msra.mxu0 0.0
    %2518 = vmatprep.subr.mxu0 0.0
    %2519 = vmatpush1.msra.mxu0 0.0
    %2520 = vmatprep.subr.mxu0 0.0
    %2521 = vmatpush1.msra.mxu0 0.0
    %2522 = vmatprep.subr.mxu0 0.0
    %2523 = vmatpush1.msra.mxu0 0.0
    %2524 = vmatprep.subr.mxu0 0.0
    %2525 = vmatpush1.msra.mxu0 0.0
    %2526 = vmatprep.subr.mxu0 0.0
    %2527 = vmatpush1.msra.mxu0 0.0
    %2528 = vmatprep.subr.mxu0 0.0
    %2529 = vmatpush1.msra.mxu0 0.0
    %2530 = vmatprep.subr.mxu0 0.0
    %2531 = vmatpush1.msra.mxu0 0.0
    %2532 = vmatprep.subr.mxu0 0.0
    %2533 = vmatpush1.msra.mxu0 0.0
    %2534 = vmatprep.subr.mxu0 0.0
    %2535 = vmatpush1.msra.mxu0 0.0
    %2536 = vmatprep.subr.mxu0 0.0
    %2537 = vmatpush1.msra.mxu0 0.0
    %2538 = vmatprep.subr.mxu0 0.0
    %2539 = vmatpush1.msra.mxu0 0.0
    %2540 = vmatprep.subr.mxu0 0.0
    %2541 = vmatpush1.msra.mxu0 0.0
    %2542 = vmatprep.subr.mxu0 0.0
    %2543 = vmatpush1.msra.mxu0 0.0
    %2544 = vmatprep.mubr.f32.mxu0 0.0
    %2545 = vmatmul.mubr.f32.gmra.mrb[0].mxu0 %v2478
    %v2546 = vpop.f32.mrb[0].mxu0
    %v2547 = vadd.f32 0.0, %v2546
    %v2548 = vpop.f32.mrb[0].mxu0
    %2549 = vdwg.mxu0
    %v2550 = vmul.f32 %v2547, %v2547
    %2552 = vrot.lane.b32.xlu0 %v2550, 64
    %v2553 = vpop.permute.xlu0 %2552
    %v2555 = vadd.f32 %v2550, %v2553
    %v2557 = vsel %vm503, %v2555, 0
    %2559 = vmatprep.subr.mxu0 0.0
    %2560 = vmatpush1.msra.mxu0 %v52
    %2561 = vmatprep.subr.mxu0 0.0
    %2562 = vmatpush1.msra.mxu0 %v53
    %2563 = vmatprep.subr.mxu0 0.0
    %2564 = vmatpush1.msra.mxu0 %v54
    %2565 = vmatprep.subr.mxu0 0.0
    %2566 = vmatpush1.msra.mxu0 %v55
    %2567 = vmatprep.subr.mxu0 0.0
    %2568 = vmatpush1.msra.mxu0 %v56
    %2569 = vmatprep.subr.mxu0 0.0
    %2570 = vmatpush1.msra.mxu0 %v57
    %2571 = vmatprep.subr.mxu0 0.0
    %2572 = vmatpush1.msra.mxu0 %v58
    %2573 = vmatprep.subr.mxu0 0.0
    %2574 = vmatpush1.msra.mxu0 %v59
    %2575 = vmatprep.subr.mxu0 0.0
    %2576 = vmatpush1.msra.mxu0 0.0
    %2577 = vmatprep.subr.mxu0 0.0
    %2578 = vmatpush1.msra.mxu0 0.0
    %2579 = vmatprep.subr.mxu0 0.0
    %2580 = vmatpush1.msra.mxu0 0.0
    %2581 = vmatprep.subr.mxu0 0.0
    %2582 = vmatpush1.msra.mxu0 0.0
    %2583 = vmatprep.subr.mxu0 0.0
    %2584 = vmatpush1.msra.mxu0 0.0
    %2585 = vmatprep.subr.mxu0 0.0
    %2586 = vmatpush1.msra.mxu0 0.0
    %2587 = vmatprep.subr.mxu0 0.0
    %2588 = vmatpush1.msra.mxu0 0.0
    %2589 = vmatprep.subr.mxu0 0.0
    %2590 = vmatpush1.msra.mxu0 0.0
    %2591 = vmatprep.subr.mxu0 0.0
    %2592 = vmatpush1.msra.mxu0 0.0
    %2593 = vmatprep.subr.mxu0 0.0
    %2594 = vmatpush1.msra.mxu0 0.0
    %2595 = vmatprep.subr.mxu0 0.0
    %2596 = vmatpush1.msra.mxu0 0.0
    %2597 = vmatprep.subr.mxu0 0.0
    %2598 = vmatpush1.msra.mxu0 0.0
    %2599 = vmatprep.subr.mxu0 0.0
    %2600 = vmatpush1.msra.mxu0 0.0
    %2601 = vmatprep.subr.mxu0 0.0
    %2602 = vmatpush1.msra.mxu0 0.0
    %2603 = vmatprep.subr.mxu0 0.0
    %2604 = vmatpush1.msra.mxu0 0.0
    %2605 = vmatprep.subr.mxu0 0.0
    %2606 = vmatpush1.msra.mxu0 0.0
    %2607 = vmatprep.subr.mxu0 0.0
    %2608 = vmatpush1.msra.mxu0 0.0
    %2609 = vmatprep.subr.mxu0 0.0
    %2610 = vmatpush1.msra.mxu0 0.0
    %2611 = vmatprep.subr.mxu0 0.0
    %2612 = vmatpush1.msra.mxu0 0.0
    %2613 = vmatprep.subr.mxu0 0.0
    %2614 = vmatpush1.msra.mxu0 0.0
    %2615 = vmatprep.subr.mxu0 0.0
    %2616 = vmatpush1.msra.mxu0 0.0
    %2617 = vmatprep.subr.mxu0 0.0
    %2618 = vmatpush1.msra.mxu0 0.0
    %2619 = vmatprep.subr.mxu0 0.0
    %2620 = vmatpush1.msra.mxu0 0.0
    %2621 = vmatprep.subr.mxu0 0.0
    %2622 = vmatpush1.msra.mxu0 0.0
    %2623 = vmatprep.mubr.f32.mxu0 0.0
    %2624 = vmatmul.mubr.f32.gmra.mrb[0].mxu0 %v2557
    %v2625 = vpop.f32.mrb[0].mxu0
    %v2626 = vadd.f32 %v501, %v2625
    %v2627 = vpop.f32.mrb[0].mxu0
    %2628 = vdwg.mxu0
    %v2629 = vxor.u32 %v2626, 2147483648
    %v2630 = vmul.f32 %v2629, 1.442695
    %v2631 = vpow.pop %v2630
    %v2632 = vadd.f32 %v2631, 1.0
    %v2633 = vrcp.pop %v2632
    %v2634 = vmul.f32 1.0, %v2633
    %v2635 = vtanh.pop %v2626
    %v2636 = vmul.f32 %v2634, %v2133
    %2638 = vrot.lane.b32.xlu0 %v2635, 96
    %v2639 = vpop.permute.xlu0 %2638
    %v2641 = vmul.f32 %v2634, %v2639
    %2643 = vrot.lane.b32.xlu0 %v2641, 96
    %v2644 = vpop.permute.xlu0 %2643
    %v2646 = vadd.f32 %v2636, %v2644
    %v2647 = vtanh.pop %v2646
    %2649 = vrot.lane.b32.xlu0 %v2647, 96
    %v2650 = vpop.permute.xlu0 %2649
    %v2652 = vmul.f32 %v2634, %v2650
    %2654 = vrot.lane.b32.xlu0 %v2652, 32
    %v2655 = vpop.permute.xlu0 %2654
    %s2657 = scalar_lea.vmem [#allocation7], 8
    %2658 = vst.msk [vmem:[%s2657] sm:$0x3] %vm605, %v2655
    %s2659 = scalar_lea.vmem %s0, 10
    %v2660 = vld [vmem:[%s2659] sm:$0x3]
    %v2661 = vsel %vm86, %v2655, 0
    %2663 = vmatprep.subr.mxu0 0.0
    %2664 = vmatpush1.msra.mxu0 %v46
    %2665 = vmatprep.subr.mxu0 0.0
    %2666 = vmatpush1.msra.mxu0 %v47
    %2667 = vmatprep.subr.mxu0 0.0
    %2668 = vmatpush1.msra.mxu0 %v48
    %2669 = vmatprep.subr.mxu0 0.0
    %2670 = vmatpush1.msra.mxu0 %v49
    %2671 = vmatprep.subr.mxu0 0.0
    %2672 = vmatpush1.msra.mxu0 0.0
    %2673 = vmatprep.subr.mxu0 0.0
    %2674 = vmatpush1.msra.mxu0 0.0
    %2675 = vmatprep.subr.mxu0 0.0
    %2676 = vmatpush1.msra.mxu0 0.0
    %2677 = vmatprep.subr.mxu0 0.0
    %2678 = vmatpush1.msra.mxu0 0.0
    %2679 = vmatprep.subr.mxu0 0.0
    %2680 = vmatpush1.msra.mxu0 0.0
    %2681 = vmatprep.subr.mxu0 0.0
    %2682 = vmatpush1.msra.mxu0 0.0
    %2683 = vmatprep.subr.mxu0 0.0
    %2684 = vmatpush1.msra.mxu0 0.0
    %2685 = vmatprep.subr.mxu0 0.0
    %2686 = vmatpush1.msra.mxu0 0.0
    %2687 = vmatprep.subr.mxu0 0.0
    %2688 = vmatpush1.msra.mxu0 0.0
    %2689 = vmatprep.subr.mxu0 0.0
    %2690 = vmatpush1.msra.mxu0 0.0
    %2691 = vmatprep.subr.mxu0 0.0
    %2692 = vmatpush1.msra.mxu0 0.0
    %2693 = vmatprep.subr.mxu0 0.0
    %2694 = vmatpush1.msra.mxu0 0.0
    %2695 = vmatprep.subr.mxu0 0.0
    %2696 = vmatpush1.msra.mxu0 0.0
    %2697 = vmatprep.subr.mxu0 0.0
    %2698 = vmatpush1.msra.mxu0 0.0
    %2699 = vmatprep.subr.mxu0 0.0
    %2700 = vmatpush1.msra.mxu0 0.0
    %2701 = vmatprep.subr.mxu0 0.0
    %2702 = vmatpush1.msra.mxu0 0.0
    %2703 = vmatprep.subr.mxu0 0.0
    %2704 = vmatpush1.msra.mxu0 0.0
    %2705 = vmatprep.subr.mxu0 0.0
    %2706 = vmatpush1.msra.mxu0 0.0
    %2707 = vmatprep.subr.mxu0 0.0
    %2708 = vmatpush1.msra.mxu0 0.0
    %2709 = vmatprep.subr.mxu0 0.0
    %2710 = vmatpush1.msra.mxu0 0.0
    %2711 = vmatprep.subr.mxu0 0.0
    %2712 = vmatpush1.msra.mxu0 0.0
    %2713 = vmatprep.subr.mxu0 0.0
    %2714 = vmatpush1.msra.mxu0 0.0
    %2715 = vmatprep.subr.mxu0 0.0
    %2716 = vmatpush1.msra.mxu0 0.0
    %2717 = vmatprep.subr.mxu0 0.0
    %2718 = vmatpush1.msra.mxu0 0.0
    %2719 = vmatprep.subr.mxu0 0.0
    %2720 = vmatpush1.msra.mxu0 0.0
    %2721 = vmatprep.subr.mxu0 0.0
    %2722 = vmatpush1.msra.mxu0 0.0
    %2723 = vmatprep.subr.mxu0 0.0
    %2724 = vmatpush1.msra.mxu0 0.0
    %2725 = vmatprep.subr.mxu0 0.0
    %2726 = vmatpush1.msra.mxu0 0.0
    %2727 = vmatprep.mubr.f32.mxu0 0.0
    %2728 = vmatmul.mubr.f32.gmra.mrb[0].mxu0 %v2661
    %v2729 = vpop.f32.mrb[0].mxu0
    %v2730 = vadd.f32 %v2660, %v2729
    %v2731 = vpop.f32.mrb[0].mxu0
    %2732 = vdwg.mxu0
    %v2733 = vmul.f32 %v2730, 0.5
    %v2734 = vand.u32 2147483647, %v2733
    %vm2735 = vcmp.le.f32.partialorder %v2734, 0.7853982
    %vm2736 = vcmp.lt.s32.totalorder %v2733, 0
    %v2737 = vand.u32 %v2733, 2139095040
    %v2738 = vshrl.u32 %v2737, 23
    %v2739 = vsub.s32 %v2738, 127
    %v2740 = vand.u32 2147483647, %v2733
    %v2741 = vand.u32 %v2740, 8388607
    %v2742 = vor.u32 %v2741, 8388608
    %v2743 = vsub.s32 0, %v2742
    %v2744 = vadd.s32 %v2739, 1
    %vm2745 = vcmp.gt.s32.totalorder %v2744, 0
    %v2746 = vsel %vm2745, %v2744, 0
    %v2747 = vshrl.u32 %v2746, 5
    %v2748 = vand.u32 %v2746, 31
    %v2749 = vsub.s32 32, %v2748
    %v2750 = vshrl.u32 683565275, %v2749
    %v2751 = vshll.u32 683565275, %v2748
    %v2752 = vshrl.u32 2475754826, %v2749
    %v2753 = vor.u32 %v2751, %v2752
    %v2754 = vshll.u32 2475754826, %v2748
    %v2755 = vshrl.u32 2131351028, %v2749
    %v2756 = vor.u32 %v2754, %v2755
    %v2757 = vshll.u32 2131351028, %v2748
    %v2758 = vshrl.u32 2102212464, %v2749
    %v2759 = vor.u32 %v2757, %v2758
    %v2760 = vshll.u32 2102212464, %v2748
    %v2761 = vshrl.u32 920167782, %v2749
    %v2762 = vor.u32 %v2760, %v2761
    %v2763 = vshll.u32 920167782, %v2748
    %v2764 = vshrl.u32 1326507024, %v2749
    %v2765 = vor.u32 %v2763, %v2764
    %vm2766 = vcmp.lt.s32.totalorder %v2747, 1
    %vm2767 = vcmp.lt.s32.totalorder %v2747, 2
    %vm2768 = vcmp.lt.s32.totalorder %v2747, 3
    %vm2769 = vcmp.lt.s32.totalorder %v2747, 4
    %v2770 = vsel %vm2766, %v2750, %v2753
    %v2771 = vsel %vm2769, %v2759, 2102212464
    %v2772 = vsel %vm2768, %v2756, %v2771
    %v2773 = vsel %vm2767, %v2770, %v2772
    %v2774 = vsel %vm2766, %v2753, %v2756
    %v2775 = vsel %vm2769, %v2762, 920167782
    %v2776 = vsel %vm2768, %v2759, %v2775
    %v2777 = vsel %vm2767, %v2774, %v2776
    %v2778 = vsel %vm2766, %v2756, %v2759
    %v2779 = vsel %vm2769, %v2765, 1326507024
    %v2780 = vsel %vm2768, %v2762, %v2779
    %v2781 = vsel %vm2767, %v2778, %v2780
    %v2782 = vshll.u32 %v2742, 8
    %v2783 = vmul.u32.u64.compose %v2782, %v2781
    %v2784 = vextract.low.u32 %v2783
    %v2785 = vextract.high.u32 %v2783
    %v2786 = vmul.u32.u64.compose %v2782, %v2777
    %v2787 = vextract.low.u32 %v2786
    %v2788 = vextract.high.u32 %v2786
    %v2789 = vmul.u32 %v2782, %v2773
    %v2790 = vadd.s32 %v2785, %v2787
    %vm2791 = vc.u32 %v2785, %v2787
    %v2792 = vadd.s32 %v2788, 1
    %v2793 = vsel %vm2791, %v2792, %v2788
    %v2794 = vadd.s32 %v2789, %v2793
    %v2795 = vadd.s32 %v2794, 536870912
    %v2796 = vshrl.u32 %v2795, 30
    %v2797 = vshll.u32 %v2796, 30
    %v2798 = vsub.s32 %v2794, %v2797
    %vm2799 = vcmp.lt.s32.totalorder %v2798, 0
    %v2800 = vsub.s32 0, %v2798
    %v2801 = vsel %vm2799, %v2800, %v2798
    %v2802 = vclz %v2801
    %v2803 = vsub.s32 %v2802, 2
    %vm2804 = vcmp.gt.s32.totalorder 0, %v2803
    %v2805 = vsel %vm2804, 0, %v2803
    %v2806 = vsub.s32 32, %v2805
    %v2807 = vshll.u32 %v2798, %v2805
    %v2808 = vshrl.u32 %v2790, %v2806
    %v2809 = vor.u32 %v2807, %v2808
    %v2810 = vsub.s32 4294967266, %v2805
    %v2811 = vadd.s32 %v2810, 127
    %v2812 = vshll.u32 %v2811, 23
    %v2813 = vor.u32 4788187, %v2812
    %v2814 = vand.u32 2147483647, %v2813
    %v2816 = vcvt.s32.f32 %v2809
    %v2817 = vmul.f32 %v2816, %v2814
    %v2818 = vxor.u32 %v2817, 2147483648
    %v2819 = vsel %vm2736, %v2818, %v2817
    %v2820 = vsub.s32 4, %v2796
    %v2821 = vsel %vm2736, %v2820, %v2796
    %v2822 = vsel %vm2735, %v2733, %v2819
    %v2823 = vsel %vm2735, 0, %v2821
    %v2824 = vcosq.f32.pop %v2822
    %v2825 = vsinq.f32.pop %v2822
    %vm2826 = vweird.f32 %v2733
    %v2827 = vand.u32 %v2823, 3
    %vm2828 = vcmp.lt.s32.totalorder %v2827, 2
    %vm2829 = vcmp.eq.s32.totalorder %v2827, 0
    %v2830 = vxor.u32 %v2825, 2147483648
    %v2831 = vsel %vm2829, %v2824, %v2830
    %vm2832 = vcmp.eq.s32.totalorder %v2827, 2
    %v2833 = vxor.u32 %v2824, 2147483648
    %v2834 = vsel %vm2832, %v2833, %v2825
    %v2835 = vsel %vm2828, %v2831, %v2834
    %v2836 = vsel %vm2826, nan, %v2835
    %v2837 = vand.u32 2147483647, %v2733
    %vm2838 = vcmp.le.f32.partialorder %v2837, 0.7853982
    %vm2839 = vcmp.lt.s32.totalorder %v2733, 0
    %v2840 = vand.u32 %v2733, 2139095040
    %v2841 = vshrl.u32 %v2840, 23
    %v2842 = vsub.s32 %v2841, 127
    %v2843 = vand.u32 2147483647, %v2733
    %v2844 = vand.u32 %v2843, 8388607
    %v2845 = vor.u32 %v2844, 8388608
    %v2846 = vsub.s32 0, %v2845
    %v2847 = vadd.s32 %v2842, 1
    %vm2848 = vcmp.gt.s32.totalorder %v2847, 0
    %v2849 = vsel %vm2848, %v2847, 0
    %v2850 = vshrl.u32 %v2849, 5
    %v2851 = vand.u32 %v2849, 31
    %v2852 = vsub.s32 32, %v2851
    %v2853 = vshrl.u32 683565275, %v2852
    %v2854 = vshll.u32 683565275, %v2851
    %v2855 = vshrl.u32 2475754826, %v2852
    %v2856 = vor.u32 %v2854, %v2855
    %v2857 = vshll.u32 2475754826, %v2851
    %v2858 = vshrl.u32 2131351028, %v2852
    %v2859 = vor.u32 %v2857, %v2858
    %v2860 = vshll.u32 2131351028, %v2851
    %v2861 = vshrl.u32 2102212464, %v2852
    %v2862 = vor.u32 %v2860, %v2861
    %v2863 = vshll.u32 2102212464, %v2851
    %v2864 = vshrl.u32 920167782, %v2852
    %v2865 = vor.u32 %v2863, %v2864
    %v2866 = vshll.u32 920167782, %v2851
    %v2867 = vshrl.u32 1326507024, %v2852
    %v2868 = vor.u32 %v2866, %v2867
    %vm2869 = vcmp.lt.s32.totalorder %v2850, 1
    %vm2870 = vcmp.lt.s32.totalorder %v2850, 2
    %vm2871 = vcmp.lt.s32.totalorder %v2850, 3
    %vm2872 = vcmp.lt.s32.totalorder %v2850, 4
    %v2873 = vsel %vm2869, %v2853, %v2856
    %v2874 = vsel %vm2872, %v2862, 2102212464
    %v2875 = vsel %vm2871, %v2859, %v2874
    %v2876 = vsel %vm2870, %v2873, %v2875
    %v2877 = vsel %vm2869, %v2856, %v2859
    %v2878 = vsel %vm2872, %v2865, 920167782
    %v2879 = vsel %vm2871, %v2862, %v2878
    %v2880 = vsel %vm2870, %v2877, %v2879
    %v2881 = vsel %vm2869, %v2859, %v2862
    %v2882 = vsel %vm2872, %v2868, 1326507024
    %v2883 = vsel %vm2871, %v2865, %v2882
    %v2884 = vsel %vm2870, %v2881, %v2883
    %v2885 = vshll.u32 %v2845, 8
    %v2886 = vmul.u32.u64.compose %v2885, %v2884
    %v2887 = vextract.low.u32 %v2886
    %v2888 = vextract.high.u32 %v2886
    %v2889 = vmul.u32.u64.compose %v2885, %v2880
    %v2890 = vextract.low.u32 %v2889
    %v2891 = vextract.high.u32 %v2889
    %v2892 = vmul.u32 %v2885, %v2876
    %v2893 = vadd.s32 %v2888, %v2890
    %vm2894 = vc.u32 %v2888, %v2890
    %v2895 = vadd.s32 %v2891, 1
    %v2896 = vsel %vm2894, %v2895, %v2891
    %v2897 = vadd.s32 %v2892, %v2896
    %v2898 = vadd.s32 %v2897, 536870912
    %v2899 = vshrl.u32 %v2898, 30
    %v2900 = vshll.u32 %v2899, 30
    %v2901 = vsub.s32 %v2897, %v2900
    %vm2902 = vcmp.lt.s32.totalorder %v2901, 0
    %v2903 = vsub.s32 0, %v2901
    %v2904 = vsel %vm2902, %v2903, %v2901
    %v2905 = vclz %v2904
    %v2906 = vsub.s32 %v2905, 2
    %vm2907 = vcmp.gt.s32.totalorder 0, %v2906
    %v2908 = vsel %vm2907, 0, %v2906
    %v2909 = vsub.s32 32, %v2908
    %v2910 = vshll.u32 %v2901, %v2908
    %v2911 = vshrl.u32 %v2893, %v2909
    %v2912 = vor.u32 %v2910, %v2911
    %v2913 = vsub.s32 4294967266, %v2908
    %v2914 = vadd.s32 %v2913, 127
    %v2915 = vshll.u32 %v2914, 23
    %v2916 = vor.u32 4788187, %v2915
    %v2917 = vand.u32 2147483647, %v2916
    %v2919 = vcvt.s32.f32 %v2912
    %v2920 = vmul.f32 %v2919, %v2917
    %v2921 = vxor.u32 %v2920, 2147483648
    %v2922 = vsel %vm2839, %v2921, %v2920
    %v2923 = vsub.s32 4, %v2899
    %v2924 = vsel %vm2839, %v2923, %v2899
    %v2925 = vsel %vm2838, %v2733, %v2922
    %v2926 = vsel %vm2838, 0, %v2924
    %v2927 = vcosq.f32.pop %v2925
    %v2928 = vsinq.f32.pop %v2925
    %vm2929 = vweird.f32 %v2733
    %v2930 = vadd.s32 %v2926, 3
    %v2931 = vand.u32 %v2930, 3
    %vm2932 = vcmp.lt.s32.totalorder %v2931, 2
    %vm2933 = vcmp.eq.s32.totalorder %v2931, 0
    %v2934 = vxor.u32 %v2928, 2147483648
    %v2935 = vsel %vm2933, %v2927, %v2934
    %vm2936 = vcmp.eq.s32.totalorder %v2931, 2
    %v2937 = vxor.u32 %v2927, 2147483648
    %v2938 = vsel %vm2936, %v2937, %v2928
    %v2939 = vsel %vm2932, %v2935, %v2938
    %v2940 = vsel %vm2929, nan, %v2939
    %2942 = vset.pattern.permute.xlu0 0
    %2943 = vperm.xlu0 %2942, %v2836
    %v2944 = vpop.permute.xlu0 %2943
    %v2946 = vmul.f32 %v2944, %v79
    %2948 = vset.pattern.permute.xlu0 0
    %2949 = vperm.xlu0 %2948, %v2940
    %v2950 = vpop.permute.xlu0 %2949
    %v2952 = vmul.f32 %v2950, %v66
    %v2953 = vadd.f32 %v2946, %v2952
    %2954 = vset.pattern.permute.xlu0 1
    %2955 = vperm.xlu0 %2954, %v2836
    %v2956 = vpop.permute.xlu0 %2955
    %v2958 = vmul.f32 %v2956, %v80
    %2959 = vset.pattern.permute.xlu0 1
    %2960 = vperm.xlu0 %2959, %v2940
    %v2961 = vpop.permute.xlu0 %2960
    %v2963 = vmul.f32 %v2961, %v70
    %v2964 = vadd.f32 %v2958, %v2963
    %2965 = vset.pattern.permute.xlu0 2
    %2966 = vperm.xlu0 %2965, %v2836
    %v2967 = vpop.permute.xlu0 %2966
    %v2969 = vmul.f32 %v2967, %v81
    %2970 = vset.pattern.permute.xlu0 2
    %2971 = vperm.xlu0 %2970, %v2940
    %v2972 = vpop.permute.xlu0 %2971
    %v2974 = vmul.f32 %v2972, %v74
    %v2975 = vadd.f32 %v2969, %v2974
    %2976 = vset.pattern.permute.xlu0 3
    %2977 = vperm.xlu0 %2976, %v2836
    %v2978 = vpop.permute.xlu0 %2977
    %v2980 = vmul.f32 %v2978, %v82
    %2981 = vset.pattern.permute.xlu0 3
    %2982 = vperm.xlu0 %2981, %v2940
    %v2983 = vpop.permute.xlu0 %2982
    %v2985 = vmul.f32 %v2983, %v78
    %v2986 = vadd.f32 %v2980, %v2985
    %v2987 = vmul.f32 %v2953, %v2964
    %v2988 = vmul.f32 %v2975, %v2986
    %v2989 = vmul.f32 %v2987, %v2988
    %v2991 = vsel %vm417, %v2989, 0
    %2993 = vmatprep.subr.mxu0 0.0
    %2994 = vmatpush1.msra.mxu0 %v50
    %2995 = vmatprep.subr.mxu0 0.0
    %2996 = vmatpush1.msra.mxu0 %v51
    %2997 = vmatprep.subr.mxu0 0.0
    %2998 = vmatpush1.msra.mxu0 0.0
    %2999 = vmatprep.subr.mxu0 0.0
    %3000 = vmatpush1.msra.mxu0 0.0
    %3001 = vmatprep.subr.mxu0 0.0
    %3002 = vmatpush1.msra.mxu0 0.0
    %3003 = vmatprep.subr.mxu0 0.0
    %3004 = vmatpush1.msra.mxu0 0.0
    %3005 = vmatprep.subr.mxu0 0.0
    %3006 = vmatpush1.msra.mxu0 0.0
    %3007 = vmatprep.subr.mxu0 0.0
    %3008 = vmatpush1.msra.mxu0 0.0
    %3009 = vmatprep.subr.mxu0 0.0
    %3010 = vmatpush1.msra.mxu0 0.0
    %3011 = vmatprep.subr.mxu0 0.0
    %3012 = vmatpush1.msra.mxu0 0.0
    %3013 = vmatprep.subr.mxu0 0.0
    %3014 = vmatpush1.msra.mxu0 0.0
    %3015 = vmatprep.subr.mxu0 0.0
    %3016 = vmatpush1.msra.mxu0 0.0
    %3017 = vmatprep.subr.mxu0 0.0
    %3018 = vmatpush1.msra.mxu0 0.0
    %3019 = vmatprep.subr.mxu0 0.0
    %3020 = vmatpush1.msra.mxu0 0.0
    %3021 = vmatprep.subr.mxu0 0.0
    %3022 = vmatpush1.msra.mxu0 0.0
    %3023 = vmatprep.subr.mxu0 0.0
    %3024 = vmatpush1.msra.mxu0 0.0
    %3025 = vmatprep.subr.mxu0 0.0
    %3026 = vmatpush1.msra.mxu0 0.0
    %3027 = vmatprep.subr.mxu0 0.0
    %3028 = vmatpush1.msra.mxu0 0.0
    %3029 = vmatprep.subr.mxu0 0.0
    %3030 = vmatpush1.msra.mxu0 0.0
    %3031 = vmatprep.subr.mxu0 0.0
    %3032 = vmatpush1.msra.mxu0 0.0
    %3033 = vmatprep.subr.mxu0 0.0
    %3034 = vmatpush1.msra.mxu0 0.0
    %3035 = vmatprep.subr.mxu0 0.0
    %3036 = vmatpush1.msra.mxu0 0.0
    %3037 = vmatprep.subr.mxu0 0.0
    %3038 = vmatpush1.msra.mxu0 0.0
    %3039 = vmatprep.subr.mxu0 0.0
    %3040 = vmatpush1.msra.mxu0 0.0
    %3041 = vmatprep.subr.mxu0 0.0
    %3042 = vmatpush1.msra.mxu0 0.0
    %3043 = vmatprep.subr.mxu0 0.0
    %3044 = vmatpush1.msra.mxu0 0.0
    %3045 = vmatprep.subr.mxu0 0.0
    %3046 = vmatpush1.msra.mxu0 0.0
    %3047 = vmatprep.subr.mxu0 0.0
    %3048 = vmatpush1.msra.mxu0 0.0
    %3049 = vmatprep.subr.mxu0 0.0
    %3050 = vmatpush1.msra.mxu0 0.0
    %3051 = vmatprep.subr.mxu0 0.0
    %3052 = vmatpush1.msra.mxu0 0.0
    %3053 = vmatprep.subr.mxu0 0.0
    %3054 = vmatpush1.msra.mxu0 0.0
    %3055 = vmatprep.subr.mxu0 0.0
    %3056 = vmatpush1.msra.mxu0 0.0
    %3057 = vmatprep.mubr.f32.mxu0 0.0
    %3058 = vmatmul.mubr.f32.gmra.mrb[0].mxu0 %v2991
    %v3059 = vpop.f32.mrb[0].mxu0
    %v3060 = vadd.f32 0.0, %v3059
    %v3061 = vpop.f32.mrb[0].mxu0
    %3062 = vdwg.mxu0
    %v3063 = vmul.f32 %v3060, %v3060
    %3065 = vrot.lane.b32.xlu0 %v3063, 64
    %v3066 = vpop.permute.xlu0 %3065
    %v3068 = vadd.f32 %v3063, %v3066
    %v3070 = vsel %vm503, %v3068, 0
    %3072 = vmatprep.subr.mxu0 0.0
    %3073 = vmatpush1.msra.mxu0 %v52
    %3074 = vmatprep.subr.mxu0 0.0
    %3075 = vmatpush1.msra.mxu0 %v53
    %3076 = vmatprep.subr.mxu0 0.0
    %3077 = vmatpush1.msra.mxu0 %v54
    %3078 = vmatprep.subr.mxu0 0.0
    %3079 = vmatpush1.msra.mxu0 %v55
    %3080 = vmatprep.subr.mxu0 0.0
    %3081 = vmatpush1.msra.mxu0 %v56
    %3082 = vmatprep.subr.mxu0 0.0
    %3083 = vmatpush1.msra.mxu0 %v57
    %3084 = vmatprep.subr.mxu0 0.0
    %3085 = vmatpush1.msra.mxu0 %v58
    %3086 = vmatprep.subr.mxu0 0.0
    %3087 = vmatpush1.msra.mxu0 %v59
    %3088 = vmatprep.subr.mxu0 0.0
    %3089 = vmatpush1.msra.mxu0 0.0
    %3090 = vmatprep.subr.mxu0 0.0
    %3091 = vmatpush1.msra.mxu0 0.0
    %3092 = vmatprep.subr.mxu0 0.0
    %3093 = vmatpush1.msra.mxu0 0.0
    %3094 = vmatprep.subr.mxu0 0.0
    %3095 = vmatpush1.msra.mxu0 0.0
    %3096 = vmatprep.subr.mxu0 0.0
    %3097 = vmatpush1.msra.mxu0 0.0
    %3098 = vmatprep.subr.mxu0 0.0
    %3099 = vmatpush1.msra.mxu0 0.0
    %3100 = vmatprep.subr.mxu0 0.0
    %3101 = vmatpush1.msra.mxu0 0.0
    %3102 = vmatprep.subr.mxu0 0.0
    %3103 = vmatpush1.msra.mxu0 0.0
    %3104 = vmatprep.subr.mxu0 0.0
    %3105 = vmatpush1.msra.mxu0 0.0
    %3106 = vmatprep.subr.mxu0 0.0
    %3107 = vmatpush1.msra.mxu0 0.0
    %3108 = vmatprep.subr.mxu0 0.0
    %3109 = vmatpush1.msra.mxu0 0.0
    %3110 = vmatprep.subr.mxu0 0.0
    %3111 = vmatpush1.msra.mxu0 0.0
    %3112 = vmatprep.subr.mxu0 0.0
    %3113 = vmatpush1.msra.mxu0 0.0
    %3114 = vmatprep.subr.mxu0 0.0
    %3115 = vmatpush1.msra.mxu0 0.0
    %3116 = vmatprep.subr.mxu0 0.0
    %3117 = vmatpush1.msra.mxu0 0.0
    %3118 = vmatprep.subr.mxu0 0.0
    %3119 = vmatpush1.msra.mxu0 0.0
    %3120 = vmatprep.subr.mxu0 0.0
    %3121 = vmatpush1.msra.mxu0 0.0
    %3122 = vmatprep.subr.mxu0 0.0
    %3123 = vmatpush1.msra.mxu0 0.0
    %3124 = vmatprep.subr.mxu0 0.0
    %3125 = vmatpush1.msra.mxu0 0.0
    %3126 = vmatprep.subr.mxu0 0.0
    %3127 = vmatpush1.msra.mxu0 0.0
    %3128 = vmatprep.subr.mxu0 0.0
    %3129 = vmatpush1.msra.mxu0 0.0
    %3130 = vmatprep.subr.mxu0 0.0
    %3131 = vmatpush1.msra.mxu0 0.0
    %3132 = vmatprep.subr.mxu0 0.0
    %3133 = vmatpush1.msra.mxu0 0.0
    %3134 = vmatprep.subr.mxu0 0.0
    %3135 = vmatpush1.msra.mxu0 0.0
    %3136 = vmatprep.mubr.f32.mxu0 0.0
    %3137 = vmatmul.mubr.f32.gmra.mrb[0].mxu0 %v3070
    %v3138 = vpop.f32.mrb[0].mxu0
    %v3139 = vadd.f32 %v501, %v3138
    %v3140 = vpop.f32.mrb[0].mxu0
    %3141 = vdwg.mxu0
    %v3142 = vxor.u32 %v3139, 2147483648
    %v3143 = vmul.f32 %v3142, 1.442695
    %v3144 = vpow.pop %v3143
    %v3145 = vadd.f32 %v3144, 1.0
    %v3146 = vrcp.pop %v3145
    %v3147 = vmul.f32 1.0, %v3146
    %v3148 = vtanh.pop %v3139
    %v3149 = vmul.f32 %v3147, %v2646
    %3151 = vrot.lane.b32.xlu0 %v3148, 96
    %v3152 = vpop.permute.xlu0 %3151
    %v3154 = vmul.f32 %v3147, %v3152
    %3156 = vrot.lane.b32.xlu0 %v3154, 96
    %v3157 = vpop.permute.xlu0 %3156
    %v3159 = vadd.f32 %v3149, %v3157
    %v3160 = vtanh.pop %v3159
    %3162 = vrot.lane.b32.xlu0 %v3160, 96
    %v3163 = vpop.permute.xlu0 %3162
    %v3165 = vmul.f32 %v3147, %v3163
    %3167 = vrot.lane.b32.xlu0 %v3165, 32
    %v3168 = vpop.permute.xlu0 %3167
    %s3170 = scalar_lea.vmem [#allocation7], 10
    %3171 = vst.msk [vmem:[%s3170] sm:$0x3] %vm605, %v3168
    %s3172 = scalar_lea.vmem %s0, 12
    %v3173 = vld [vmem:[%s3172] sm:$0x3]
    %v3174 = vsel %vm86, %v3168, 0
    %3176 = vmatprep.subr.mxu0 0.0
    %3177 = vmatpush1.msra.mxu0 %v46
    %3178 = vmatprep.subr.mxu0 0.0
    %3179 = vmatpush1.msra.mxu0 %v47
    %3180 = vmatprep.subr.mxu0 0.0
    %3181 = vmatpush1.msra.mxu0 %v48
    %3182 = vmatprep.subr.mxu0 0.0
    %3183 = vmatpush1.msra.mxu0 %v49
    %3184 = vmatprep.subr.mxu0 0.0
    %3185 = vmatpush1.msra.mxu0 0.0
    %3186 = vmatprep.subr.mxu0 0.0
    %3187 = vmatpush1.msra.mxu0 0.0
    %3188 = vmatprep.subr.mxu0 0.0
    %3189 = vmatpush1.msra.mxu0 0.0
    %3190 = vmatprep.subr.mxu0 0.0
    %3191 = vmatpush1.msra.mxu0 0.0
    %3192 = vmatprep.subr.mxu0 0.0
    %3193 = vmatpush1.msra.mxu0 0.0
    %3194 = vmatprep.subr.mxu0 0.0
    %3195 = vmatpush1.msra.mxu0 0.0
    %3196 = vmatprep.subr.mxu0 0.0
    %3197 = vmatpush1.msra.mxu0 0.0
    %3198 = vmatprep.subr.mxu0 0.0
    %3199 = vmatpush1.msra.mxu0 0.0
    %3200 = vmatprep.subr.mxu0 0.0
    %3201 = vmatpush1.msra.mxu0 0.0
    %3202 = vmatprep.subr.mxu0 0.0
    %3203 = vmatpush1.msra.mxu0 0.0
    %3204 = vmatprep.subr.mxu0 0.0
    %3205 = vmatpush1.msra.mxu0 0.0
    %3206 = vmatprep.subr.mxu0 0.0
    %3207 = vmatpush1.msra.mxu0 0.0
    %3208 = vmatprep.subr.mxu0 0.0
    %3209 = vmatpush1.msra.mxu0 0.0
    %3210 = vmatprep.subr.mxu0 0.0
    %3211 = vmatpush1.msra.mxu0 0.0
    %3212 = vmatprep.subr.mxu0 0.0
    %3213 = vmatpush1.msra.mxu0 0.0
    %3214 = vmatprep.subr.mxu0 0.0
    %3215 = vmatpush1.msra.mxu0 0.0
    %3216 = vmatprep.subr.mxu0 0.0
    %3217 = vmatpush1.msra.mxu0 0.0
    %3218 = vmatprep.subr.mxu0 0.0
    %3219 = vmatpush1.msra.mxu0 0.0
    %3220 = vmatprep.subr.mxu0 0.0
    %3221 = vmatpush1.msra.mxu0 0.0
    %3222 = vmatprep.subr.mxu0 0.0
    %3223 = vmatpush1.msra.mxu0 0.0
    %3224 = vmatprep.subr.mxu0 0.0
    %3225 = vmatpush1.msra.mxu0 0.0
    %3226 = vmatprep.subr.mxu0 0.0
    %3227 = vmatpush1.msra.mxu0 0.0
    %3228 = vmatprep.subr.mxu0 0.0
    %3229 = vmatpush1.msra.mxu0 0.0
    %3230 = vmatprep.subr.mxu0 0.0
    %3231 = vmatpush1.msra.mxu0 0.0
    %3232 = vmatprep.subr.mxu0 0.0
    %3233 = vmatpush1.msra.mxu0 0.0
    %3234 = vmatprep.subr.mxu0 0.0
    %3235 = vmatpush1.msra.mxu0 0.0
    %3236 = vmatprep.subr.mxu0 0.0
    %3237 = vmatpush1.msra.mxu0 0.0
    %3238 = vmatprep.subr.mxu0 0.0
    %3239 = vmatpush1.msra.mxu0 0.0
    %3240 = vmatprep.mubr.f32.mxu0 0.0
    %3241 = vmatmul.mubr.f32.gmra.mrb[0].mxu0 %v3174
    %v3242 = vpop.f32.mrb[0].mxu0
    %v3243 = vadd.f32 %v3173, %v3242
    %v3244 = vpop.f32.mrb[0].mxu0
    %3245 = vdwg.mxu0
    %v3246 = vmul.f32 %v3243, 0.5
    %v3247 = vand.u32 2147483647, %v3246
    %vm3248 = vcmp.le.f32.partialorder %v3247, 0.7853982
    %vm3249 = vcmp.lt.s32.totalorder %v3246, 0
    %v3250 = vand.u32 %v3246, 2139095040
    %v3251 = vshrl.u32 %v3250, 23
    %v3252 = vsub.s32 %v3251, 127
    %v3253 = vand.u32 2147483647, %v3246
    %v3254 = vand.u32 %v3253, 8388607
    %v3255 = vor.u32 %v3254, 8388608
    %v3256 = vsub.s32 0, %v3255
    %v3257 = vadd.s32 %v3252, 1
    %vm3258 = vcmp.gt.s32.totalorder %v3257, 0
    %v3259 = vsel %vm3258, %v3257, 0
    %v3260 = vshrl.u32 %v3259, 5
    %v3261 = vand.u32 %v3259, 31
    %v3262 = vsub.s32 32, %v3261
    %v3263 = vshrl.u32 683565275, %v3262
    %v3264 = vshll.u32 683565275, %v3261
    %v3265 = vshrl.u32 2475754826, %v3262
    %v3266 = vor.u32 %v3264, %v3265
    %v3267 = vshll.u32 2475754826, %v3261
    %v3268 = vshrl.u32 2131351028, %v3262
    %v3269 = vor.u32 %v3267, %v3268
    %v3270 = vshll.u32 2131351028, %v3261
    %v3271 = vshrl.u32 2102212464, %v3262
    %v3272 = vor.u32 %v3270, %v3271
    %v3273 = vshll.u32 2102212464, %v3261
    %v3274 = vshrl.u32 920167782, %v3262
    %v3275 = vor.u32 %v3273, %v3274
    %v3276 = vshll.u32 920167782, %v3261
    %v3277 = vshrl.u32 1326507024, %v3262
    %v3278 = vor.u32 %v3276, %v3277
    %vm3279 = vcmp.lt.s32.totalorder %v3260, 1
    %vm3280 = vcmp.lt.s32.totalorder %v3260, 2
    %vm3281 = vcmp.lt.s32.totalorder %v3260, 3
    %vm3282 = vcmp.lt.s32.totalorder %v3260, 4
    %v3283 = vsel %vm3279, %v3263, %v3266
    %v3284 = vsel %vm3282, %v3272, 2102212464
    %v3285 = vsel %vm3281, %v3269, %v3284
    %v3286 = vsel %vm3280, %v3283, %v3285
    %v3287 = vsel %vm3279, %v3266, %v3269
    %v3288 = vsel %vm3282, %v3275, 920167782
    %v3289 = vsel %vm3281, %v3272, %v3288
    %v3290 = vsel %vm3280, %v3287, %v3289
    %v3291 = vsel %vm3279, %v3269, %v3272
    %v3292 = vsel %vm3282, %v3278, 1326507024
    %v3293 = vsel %vm3281, %v3275, %v3292
    %v3294 = vsel %vm3280, %v3291, %v3293
    %v3295 = vshll.u32 %v3255, 8
    %v3296 = vmul.u32.u64.compose %v3295, %v3294
    %v3297 = vextract.low.u32 %v3296
    %v3298 = vextract.high.u32 %v3296
    %v3299 = vmul.u32.u64.compose %v3295, %v3290
    %v3300 = vextract.low.u32 %v3299
    %v3301 = vextract.high.u32 %v3299
    %v3302 = vmul.u32 %v3295, %v3286
    %v3303 = vadd.s32 %v3298, %v3300
    %vm3304 = vc.u32 %v3298, %v3300
    %v3305 = vadd.s32 %v3301, 1
    %v3306 = vsel %vm3304, %v3305, %v3301
    %v3307 = vadd.s32 %v3302, %v3306
    %v3308 = vadd.s32 %v3307, 536870912
    %v3309 = vshrl.u32 %v3308, 30
    %v3310 = vshll.u32 %v3309, 30
    %v3311 = vsub.s32 %v3307, %v3310
    %vm3312 = vcmp.lt.s32.totalorder %v3311, 0
    %v3313 = vsub.s32 0, %v3311
    %v3314 = vsel %vm3312, %v3313, %v3311
    %v3315 = vclz %v3314
    %v3316 = vsub.s32 %v3315, 2
    %vm3317 = vcmp.gt.s32.totalorder 0, %v3316
    %v3318 = vsel %vm3317, 0, %v3316
    %v3319 = vsub.s32 32, %v3318
    %v3320 = vshll.u32 %v3311, %v3318
    %v3321 = vshrl.u32 %v3303, %v3319
    %v3322 = vor.u32 %v3320, %v3321
    %v3323 = vsub.s32 4294967266, %v3318
    %v3324 = vadd.s32 %v3323, 127
    %v3325 = vshll.u32 %v3324, 23
    %v3326 = vor.u32 4788187, %v3325
    %v3327 = vand.u32 2147483647, %v3326
    %v3329 = vcvt.s32.f32 %v3322
    %v3330 = vmul.f32 %v3329, %v3327
    %v3331 = vxor.u32 %v3330, 2147483648
    %v3332 = vsel %vm3249, %v3331, %v3330
    %v3333 = vsub.s32 4, %v3309
    %v3334 = vsel %vm3249, %v3333, %v3309
    %v3335 = vsel %vm3248, %v3246, %v3332
    %v3336 = vsel %vm3248, 0, %v3334
    %v3337 = vcosq.f32.pop %v3335
    %v3338 = vsinq.f32.pop %v3335
    %vm3339 = vweird.f32 %v3246
    %v3340 = vand.u32 %v3336, 3
    %vm3341 = vcmp.lt.s32.totalorder %v3340, 2
    %vm3342 = vcmp.eq.s32.totalorder %v3340, 0
    %v3343 = vxor.u32 %v3338, 2147483648
    %v3344 = vsel %vm3342, %v3337, %v3343
    %vm3345 = vcmp.eq.s32.totalorder %v3340, 2
    %v3346 = vxor.u32 %v3337, 2147483648
    %v3347 = vsel %vm3345, %v3346, %v3338
    %v3348 = vsel %vm3341, %v3344, %v3347
    %v3349 = vsel %vm3339, nan, %v3348
    %v3350 = vand.u32 2147483647, %v3246
    %vm3351 = vcmp.le.f32.partialorder %v3350, 0.7853982
    %vm3352 = vcmp.lt.s32.totalorder %v3246, 0
    %v3353 = vand.u32 %v3246, 2139095040
    %v3354 = vshrl.u32 %v3353, 23
    %v3355 = vsub.s32 %v3354, 127
    %v3356 = vand.u32 2147483647, %v3246
    %v3357 = vand.u32 %v3356, 8388607
    %v3358 = vor.u32 %v3357, 8388608
    %v3359 = vsub.s32 0, %v3358
    %v3360 = vadd.s32 %v3355, 1
    %vm3361 = vcmp.gt.s32.totalorder %v3360, 0
    %v3362 = vsel %vm3361, %v3360, 0
    %v3363 = vshrl.u32 %v3362, 5
    %v3364 = vand.u32 %v3362, 31
    %v3365 = vsub.s32 32, %v3364
    %v3366 = vshrl.u32 683565275, %v3365
    %v3367 = vshll.u32 683565275, %v3364
    %v3368 = vshrl.u32 2475754826, %v3365
    %v3369 = vor.u32 %v3367, %v3368
    %v3370 = vshll.u32 2475754826, %v3364
    %v3371 = vshrl.u32 2131351028, %v3365
    %v3372 = vor.u32 %v3370, %v3371
    %v3373 = vshll.u32 2131351028, %v3364
    %v3374 = vshrl.u32 2102212464, %v3365
    %v3375 = vor.u32 %v3373, %v3374
    %v3376 = vshll.u32 2102212464, %v3364
    %v3377 = vshrl.u32 920167782, %v3365
    %v3378 = vor.u32 %v3376, %v3377
    %v3379 = vshll.u32 920167782, %v3364
    %v3380 = vshrl.u32 1326507024, %v3365
    %v3381 = vor.u32 %v3379, %v3380
    %vm3382 = vcmp.lt.s32.totalorder %v3363, 1
    %vm3383 = vcmp.lt.s32.totalorder %v3363, 2
    %vm3384 = vcmp.lt.s32.totalorder %v3363, 3
    %vm3385 = vcmp.lt.s32.totalorder %v3363, 4
    %v3386 = vsel %vm3382, %v3366, %v3369
    %v3387 = vsel %vm3385, %v3375, 2102212464
    %v3388 = vsel %vm3384, %v3372, %v3387
    %v3389 = vsel %vm3383, %v3386, %v3388
    %v3390 = vsel %vm3382, %v3369, %v3372
    %v3391 = vsel %vm3385, %v3378, 920167782
    %v3392 = vsel %vm3384, %v3375, %v3391
    %v3393 = vsel %vm3383, %v3390, %v3392
    %v3394 = vsel %vm3382, %v3372, %v3375
    %v3395 = vsel %vm3385, %v3381, 1326507024
    %v3396 = vsel %vm3384, %v3378, %v3395
    %v3397 = vsel %vm3383, %v3394, %v3396
    %v3398 = vshll.u32 %v3358, 8
    %v3399 = vmul.u32.u64.compose %v3398, %v3397
    %v3400 = vextract.low.u32 %v3399
    %v3401 = vextract.high.u32 %v3399
    %v3402 = vmul.u32.u64.compose %v3398, %v3393
    %v3403 = vextract.low.u32 %v3402
    %v3404 = vextract.high.u32 %v3402
    %v3405 = vmul.u32 %v3398, %v3389
    %v3406 = vadd.s32 %v3401, %v3403
    %vm3407 = vc.u32 %v3401, %v3403
    %v3408 = vadd.s32 %v3404, 1
    %v3409 = vsel %vm3407, %v3408, %v3404
    %v3410 = vadd.s32 %v3405, %v3409
    %v3411 = vadd.s32 %v3410, 536870912
    %v3412 = vshrl.u32 %v3411, 30
    %v3413 = vshll.u32 %v3412, 30
    %v3414 = vsub.s32 %v3410, %v3413
    %vm3415 = vcmp.lt.s32.totalorder %v3414, 0
    %v3416 = vsub.s32 0, %v3414
    %v3417 = vsel %vm3415, %v3416, %v3414
    %v3418 = vclz %v3417
    %v3419 = vsub.s32 %v3418, 2
    %vm3420 = vcmp.gt.s32.totalorder 0, %v3419
    %v3421 = vsel %vm3420, 0, %v3419
    %v3422 = vsub.s32 32, %v3421
    %v3423 = vshll.u32 %v3414, %v3421
    %v3424 = vshrl.u32 %v3406, %v3422
    %v3425 = vor.u32 %v3423, %v3424
    %v3426 = vsub.s32 4294967266, %v3421
    %v3427 = vadd.s32 %v3426, 127
    %v3428 = vshll.u32 %v3427, 23
    %v3429 = vor.u32 4788187, %v3428
    %v3430 = vand.u32 2147483647, %v3429
    %v3432 = vcvt.s32.f32 %v3425
    %v3433 = vmul.f32 %v3432, %v3430
    %v3434 = vxor.u32 %v3433, 2147483648
    %v3435 = vsel %vm3352, %v3434, %v3433
    %v3436 = vsub.s32 4, %v3412
    %v3437 = vsel %vm3352, %v3436, %v3412
    %v3438 = vsel %vm3351, %v3246, %v3435
    %v3439 = vsel %vm3351, 0, %v3437
    %v3440 = vcosq.f32.pop %v3438
    %v3441 = vsinq.f32.pop %v3438
    %vm3442 = vweird.f32 %v3246
    %v3443 = vadd.s32 %v3439, 3
    %v3444 = vand.u32 %v3443, 3
    %vm3445 = vcmp.lt.s32.totalorder %v3444, 2
    %vm3446 = vcmp.eq.s32.totalorder %v3444, 0
    %v3447 = vxor.u32 %v3441, 2147483648
    %v3448 = vsel %vm3446, %v3440, %v3447
    %vm3449 = vcmp.eq.s32.totalorder %v3444, 2
    %v3450 = vxor.u32 %v3440, 2147483648
    %v3451 = vsel %vm3449, %v3450, %v3441
    %v3452 = vsel %vm3445, %v3448, %v3451
    %v3453 = vsel %vm3442, nan, %v3452
    %3455 = vset.pattern.permute.xlu0 0
    %3456 = vperm.xlu0 %3455, %v3349
    %v3457 = vpop.permute.xlu0 %3456
    %v3459 = vmul.f32 %v3457, %v79
    %3461 = vset.pattern.permute.xlu0 0
    %3462 = vperm.xlu0 %3461, %v3453
    %v3463 = vpop.permute.xlu0 %3462
    %v3465 = vmul.f32 %v3463, %v66
    %v3466 = vadd.f32 %v3459, %v3465
    %3467 = vset.pattern.permute.xlu0 1
    %3468 = vperm.xlu0 %3467, %v3349
    %v3469 = vpop.permute.xlu0 %3468
    %v3471 = vmul.f32 %v3469, %v80
    %3472 = vset.pattern.permute.xlu0 1
    %3473 = vperm.xlu0 %3472, %v3453
    %v3474 = vpop.permute.xlu0 %3473
    %v3476 = vmul.f32 %v3474, %v70
    %v3477 = vadd.f32 %v3471, %v3476
    %3478 = vset.pattern.permute.xlu0 2
    %3479 = vperm.xlu0 %3478, %v3349
    %v3480 = vpop.permute.xlu0 %3479
    %v3482 = vmul.f32 %v3480, %v81
    %3483 = vset.pattern.permute.xlu0 2
    %3484 = vperm.xlu0 %3483, %v3453
    %v3485 = vpop.permute.xlu0 %3484
    %v3487 = vmul.f32 %v3485, %v74
    %v3488 = vadd.f32 %v3482, %v3487
    %3489 = vset.pattern.permute.xlu0 3
    %3490 = vperm.xlu0 %3489, %v3349
    %v3491 = vpop.permute.xlu0 %3490
    %v3493 = vmul.f32 %v3491, %v82
    %3494 = vset.pattern.permute.xlu0 3
    %3495 = vperm.xlu0 %3494, %v3453
    %v3496 = vpop.permute.xlu0 %3495
    %v3498 = vmul.f32 %v3496, %v78
    %v3499 = vadd.f32 %v3493, %v3498
    %v3500 = vmul.f32 %v3466, %v3477
    %v3501 = vmul.f32 %v3488, %v3499
    %v3502 = vmul.f32 %v3500, %v3501
    %v3504 = vsel %vm417, %v3502, 0
    %3506 = vmatprep.subr.mxu0 0.0
    %3507 = vmatpush1.msra.mxu0 %v50
    %3508 = vmatprep.subr.mxu0 0.0
    %3509 = vmatpush1.msra.mxu0 %v51
    %3510 = vmatprep.subr.mxu0 0.0
    %3511 = vmatpush1.msra.mxu0 0.0
    %3512 = vmatprep.subr.mxu0 0.0
    %3513 = vmatpush1.msra.mxu0 0.0
    %3514 = vmatprep.subr.mxu0 0.0
    %3515 = vmatpush1.msra.mxu0 0.0
    %3516 = vmatprep.subr.mxu0 0.0
    %3517 = vmatpush1.msra.mxu0 0.0
    %3518 = vmatprep.subr.mxu0 0.0
    %3519 = vmatpush1.msra.mxu0 0.0
    %3520 = vmatprep.subr.mxu0 0.0
    %3521 = vmatpush1.msra.mxu0 0.0
    %3522 = vmatprep.subr.mxu0 0.0
    %3523 = vmatpush1.msra.mxu0 0.0
    %3524 = vmatprep.subr.mxu0 0.0
    %3525 = vmatpush1.msra.mxu0 0.0
    %3526 = vmatprep.subr.mxu0 0.0
    %3527 = vmatpush1.msra.mxu0 0.0
    %3528 = vmatprep.subr.mxu0 0.0
    %3529 = vmatpush1.msra.mxu0 0.0
    %3530 = vmatprep.subr.mxu0 0.0
    %3531 = vmatpush1.msra.mxu0 0.0
    %3532 = vmatprep.subr.mxu0 0.0
    %3533 = vmatpush1.msra.mxu0 0.0
    %3534 = vmatprep.subr.mxu0 0.0
    %3535 = vmatpush1.msra.mxu0 0.0
    %3536 = vmatprep.subr.mxu0 0.0
    %3537 = vmatpush1.msra.mxu0 0.0
    %3538 = vmatprep.subr.mxu0 0.0
    %3539 = vmatpush1.msra.mxu0 0.0
    %3540 = vmatprep.subr.mxu0 0.0
    %3541 = vmatpush1.msra.mxu0 0.0
    %3542 = vmatprep.subr.mxu0 0.0
    %3543 = vmatpush1.msra.mxu0 0.0
    %3544 = vmatprep.subr.mxu0 0.0
    %3545 = vmatpush1.msra.mxu0 0.0
    %3546 = vmatprep.subr.mxu0 0.0
    %3547 = vmatpush1.msra.mxu0 0.0
    %3548 = vmatprep.subr.mxu0 0.0
    %3549 = vmatpush1.msra.mxu0 0.0
    %3550 = vmatprep.subr.mxu0 0.0
    %3551 = vmatpush1.msra.mxu0 0.0
    %3552 = vmatprep.subr.mxu0 0.0
    %3553 = vmatpush1.msra.mxu0 0.0
    %3554 = vmatprep.subr.mxu0 0.0
    %3555 = vmatpush1.msra.mxu0 0.0
    %3556 = vmatprep.subr.mxu0 0.0
    %3557 = vmatpush1.msra.mxu0 0.0
    %3558 = vmatprep.subr.mxu0 0.0
    %3559 = vmatpush1.msra.mxu0 0.0
    %3560 = vmatprep.subr.mxu0 0.0
    %3561 = vmatpush1.msra.mxu0 0.0
    %3562 = vmatprep.subr.mxu0 0.0
    %3563 = vmatpush1.msra.mxu0 0.0
    %3564 = vmatprep.subr.mxu0 0.0
    %3565 = vmatpush1.msra.mxu0 0.0
    %3566 = vmatprep.subr.mxu0 0.0
    %3567 = vmatpush1.msra.mxu0 0.0
    %3568 = vmatprep.subr.mxu0 0.0
    %3569 = vmatpush1.msra.mxu0 0.0
    %3570 = vmatprep.mubr.f32.mxu0 0.0
    %3571 = vmatmul.mubr.f32.gmra.mrb[0].mxu0 %v3504
    %v3572 = vpop.f32.mrb[0].mxu0
    %v3573 = vadd.f32 0.0, %v3572
    %v3574 = vpop.f32.mrb[0].mxu0
    %3575 = vdwg.mxu0
    %v3576 = vmul.f32 %v3573, %v3573
    %3578 = vrot.lane.b32.xlu0 %v3576, 64
    %v3579 = vpop.permute.xlu0 %3578
    %v3581 = vadd.f32 %v3576, %v3579
    %v3583 = vsel %vm503, %v3581, 0
    %3585 = vmatprep.subr.mxu0 0.0
    %3586 = vmatpush1.msra.mxu0 %v52
    %3587 = vmatprep.subr.mxu0 0.0
    %3588 = vmatpush1.msra.mxu0 %v53
    %3589 = vmatprep.subr.mxu0 0.0
    %3590 = vmatpush1.msra.mxu0 %v54
    %3591 = vmatprep.subr.mxu0 0.0
    %3592 = vmatpush1.msra.mxu0 %v55
    %3593 = vmatprep.subr.mxu0 0.0
    %3594 = vmatpush1.msra.mxu0 %v56
    %3595 = vmatprep.subr.mxu0 0.0
    %3596 = vmatpush1.msra.mxu0 %v57
    %3597 = vmatprep.subr.mxu0 0.0
    %3598 = vmatpush1.msra.mxu0 %v58
    %3599 = vmatprep.subr.mxu0 0.0
    %3600 = vmatpush1.msra.mxu0 %v59
    %3601 = vmatprep.subr.mxu0 0.0
    %3602 = vmatpush1.msra.mxu0 0.0
    %3603 = vmatprep.subr.mxu0 0.0
    %3604 = vmatpush1.msra.mxu0 0.0
    %3605 = vmatprep.subr.mxu0 0.0
    %3606 = vmatpush1.msra.mxu0 0.0
    %3607 = vmatprep.subr.mxu0 0.0
    %3608 = vmatpush1.msra.mxu0 0.0
    %3609 = vmatprep.subr.mxu0 0.0
    %3610 = vmatpush1.msra.mxu0 0.0
    %3611 = vmatprep.subr.mxu0 0.0
    %3612 = vmatpush1.msra.mxu0 0.0
    %3613 = vmatprep.subr.mxu0 0.0
    %3614 = vmatpush1.msra.mxu0 0.0
    %3615 = vmatprep.subr.mxu0 0.0
    %3616 = vmatpush1.msra.mxu0 0.0
    %3617 = vmatprep.subr.mxu0 0.0
    %3618 = vmatpush1.msra.mxu0 0.0
    %3619 = vmatprep.subr.mxu0 0.0
    %3620 = vmatpush1.msra.mxu0 0.0
    %3621 = vmatprep.subr.mxu0 0.0
    %3622 = vmatpush1.msra.mxu0 0.0
    %3623 = vmatprep.subr.mxu0 0.0
    %3624 = vmatpush1.msra.mxu0 0.0
    %3625 = vmatprep.subr.mxu0 0.0
    %3626 = vmatpush1.msra.mxu0 0.0
    %3627 = vmatprep.subr.mxu0 0.0
    %3628 = vmatpush1.msra.mxu0 0.0
    %3629 = vmatprep.subr.mxu0 0.0
    %3630 = vmatpush1.msra.mxu0 0.0
    %3631 = vmatprep.subr.mxu0 0.0
    %3632 = vmatpush1.msra.mxu0 0.0
    %3633 = vmatprep.subr.mxu0 0.0
    %3634 = vmatpush1.msra.mxu0 0.0
    %3635 = vmatprep.subr.mxu0 0.0
    %3636 = vmatpush1.msra.mxu0 0.0
    %3637 = vmatprep.subr.mxu0 0.0
    %3638 = vmatpush1.msra.mxu0 0.0
    %3639 = vmatprep.subr.mxu0 0.0
    %3640 = vmatpush1.msra.mxu0 0.0
    %3641 = vmatprep.subr.mxu0 0.0
    %3642 = vmatpush1.msra.mxu0 0.0
    %3643 = vmatprep.subr.mxu0 0.0
    %3644 = vmatpush1.msra.mxu0 0.0
    %3645 = vmatprep.subr.mxu0 0.0
    %3646 = vmatpush1.msra.mxu0 0.0
    %3647 = vmatprep.subr.mxu0 0.0
    %3648 = vmatpush1.msra.mxu0 0.0
    %3649 = vmatprep.mubr.f32.mxu0 0.0
    %3650 = vmatmul.mubr.f32.gmra.mrb[0].mxu0 %v3583
    %v3651 = vpop.f32.mrb[0].mxu0
    %v3652 = vadd.f32 %v501, %v3651
    %v3653 = vpop.f32.mrb[0].mxu0
    %3654 = vdwg.mxu0
    %v3655 = vxor.u32 %v3652, 2147483648
    %v3656 = vmul.f32 %v3655, 1.442695
    %v3657 = vpow.pop %v3656
    %v3658 = vadd.f32 %v3657, 1.0
    %v3659 = vrcp.pop %v3658
    %v3660 = vmul.f32 1.0, %v3659
    %v3661 = vtanh.pop %v3652
    %v3662 = vmul.f32 %v3660, %v3159
    %3664 = vrot.lane.b32.xlu0 %v3661, 96
    %v3665 = vpop.permute.xlu0 %3664
    %v3667 = vmul.f32 %v3660, %v3665
    %3669 = vrot.lane.b32.xlu0 %v3667, 96
    %v3670 = vpop.permute.xlu0 %3669
    %v3672 = vadd.f32 %v3662, %v3670
    %v3673 = vtanh.pop %v3672
    %3675 = vrot.lane.b32.xlu0 %v3673, 96
    %v3676 = vpop.permute.xlu0 %3675
    %v3678 = vmul.f32 %v3660, %v3676
    %3680 = vrot.lane.b32.xlu0 %v3678, 32
    %v3681 = vpop.permute.xlu0 %3680
    %s3683 = scalar_lea.vmem [#allocation7], 12
    %3684 = vst.msk [vmem:[%s3683] sm:$0x3] %vm605, %v3681
    %s3685 = scalar_lea.vmem %s0, 14
    %v3686 = vld [vmem:[%s3685] sm:$0x3]
    %v3687 = vsel %vm86, %v3681, 0
    %3689 = vmatprep.subr.mxu0 0.0
    %3690 = vmatpush1.msra.mxu0 %v46
    %3691 = vmatprep.subr.mxu0 0.0
    %3692 = vmatpush1.msra.mxu0 %v47
    %3693 = vmatprep.subr.mxu0 0.0
    %3694 = vmatpush1.msra.mxu0 %v48
    %3695 = vmatprep.subr.mxu0 0.0
    %3696 = vmatpush1.msra.mxu0 %v49
    %3697 = vmatprep.subr.mxu0 0.0
    %3698 = vmatpush1.msra.mxu0 0.0
    %3699 = vmatprep.subr.mxu0 0.0
    %3700 = vmatpush1.msra.mxu0 0.0
    %3701 = vmatprep.subr.mxu0 0.0
    %3702 = vmatpush1.msra.mxu0 0.0
    %3703 = vmatprep.subr.mxu0 0.0
    %3704 = vmatpush1.msra.mxu0 0.0
    %3705 = vmatprep.subr.mxu0 0.0
    %3706 = vmatpush1.msra.mxu0 0.0
    %3707 = vmatprep.subr.mxu0 0.0
    %3708 = vmatpush1.msra.mxu0 0.0
    %3709 = vmatprep.subr.mxu0 0.0
    %3710 = vmatpush1.msra.mxu0 0.0
    %3711 = vmatprep.subr.mxu0 0.0
    %3712 = vmatpush1.msra.mxu0 0.0
    %3713 = vmatprep.subr.mxu0 0.0
    %3714 = vmatpush1.msra.mxu0 0.0
    %3715 = vmatprep.subr.mxu0 0.0
    %3716 = vmatpush1.msra.mxu0 0.0
    %3717 = vmatprep.subr.mxu0 0.0
    %3718 = vmatpush1.msra.mxu0 0.0
    %3719 = vmatprep.subr.mxu0 0.0
    %3720 = vmatpush1.msra.mxu0 0.0
    %3721 = vmatprep.subr.mxu0 0.0
    %3722 = vmatpush1.msra.mxu0 0.0
    %3723 = vmatprep.subr.mxu0 0.0
    %3724 = vmatpush1.msra.mxu0 0.0
    %3725 = vmatprep.subr.mxu0 0.0
    %3726 = vmatpush1.msra.mxu0 0.0
    %3727 = vmatprep.subr.mxu0 0.0
    %3728 = vmatpush1.msra.mxu0 0.0
    %3729 = vmatprep.subr.mxu0 0.0
    %3730 = vmatpush1.msra.mxu0 0.0
    %3731 = vmatprep.subr.mxu0 0.0
    %3732 = vmatpush1.msra.mxu0 0.0
    %3733 = vmatprep.subr.mxu0 0.0
    %3734 = vmatpush1.msra.mxu0 0.0
    %3735 = vmatprep.subr.mxu0 0.0
    %3736 = vmatpush1.msra.mxu0 0.0
    %3737 = vmatprep.subr.mxu0 0.0
    %3738 = vmatpush1.msra.mxu0 0.0
    %3739 = vmatprep.subr.mxu0 0.0
    %3740 = vmatpush1.msra.mxu0 0.0
    %3741 = vmatprep.subr.mxu0 0.0
    %3742 = vmatpush1.msra.mxu0 0.0
    %3743 = vmatprep.subr.mxu0 0.0
    %3744 = vmatpush1.msra.mxu0 0.0
    %3745 = vmatprep.subr.mxu0 0.0
    %3746 = vmatpush1.msra.mxu0 0.0
    %3747 = vmatprep.subr.mxu0 0.0
    %3748 = vmatpush1.msra.mxu0 0.0
    %3749 = vmatprep.subr.mxu0 0.0
    %3750 = vmatpush1.msra.mxu0 0.0
    %3751 = vmatprep.subr.mxu0 0.0
    %3752 = vmatpush1.msra.mxu0 0.0
    %3753 = vmatprep.mubr.f32.mxu0 0.0
    %3754 = vmatmul.mubr.f32.gmra.mrb[0].mxu0 %v3687
    %v3755 = vpop.f32.mrb[0].mxu0
    %v3756 = vadd.f32 %v3686, %v3755
    %v3757 = vpop.f32.mrb[0].mxu0
    %3758 = vdwg.mxu0
    %v3759 = vmul.f32 %v3756, 0.5
    %v3760 = vand.u32 2147483647, %v3759
    %vm3761 = vcmp.le.f32.partialorder %v3760, 0.7853982
    %vm3762 = vcmp.lt.s32.totalorder %v3759, 0
    %v3763 = vand.u32 %v3759, 2139095040
    %v3764 = vshrl.u32 %v3763, 23
    %v3765 = vsub.s32 %v3764, 127
    %v3766 = vand.u32 2147483647, %v3759
    %v3767 = vand.u32 %v3766, 8388607
    %v3768 = vor.u32 %v3767, 8388608
    %v3769 = vsub.s32 0, %v3768
    %v3770 = vadd.s32 %v3765, 1
    %vm3771 = vcmp.gt.s32.totalorder %v3770, 0
    %v3772 = vsel %vm3771, %v3770, 0
    %v3773 = vshrl.u32 %v3772, 5
    %v3774 = vand.u32 %v3772, 31
    %v3775 = vsub.s32 32, %v3774
    %v3776 = vshrl.u32 683565275, %v3775
    %v3777 = vshll.u32 683565275, %v3774
    %v3778 = vshrl.u32 2475754826, %v3775
    %v3779 = vor.u32 %v3777, %v3778
    %v3780 = vshll.u32 2475754826, %v3774
    %v3781 = vshrl.u32 2131351028, %v3775
    %v3782 = vor.u32 %v3780, %v3781
    %v3783 = vshll.u32 2131351028, %v3774
    %v3784 = vshrl.u32 2102212464, %v3775
    %v3785 = vor.u32 %v3783, %v3784
    %v3786 = vshll.u32 2102212464, %v3774
    %v3787 = vshrl.u32 920167782, %v3775
    %v3788 = vor.u32 %v3786, %v3787
    %v3789 = vshll.u32 920167782, %v3774
    %v3790 = vshrl.u32 1326507024, %v3775
    %v3791 = vor.u32 %v3789, %v3790
    %vm3792 = vcmp.lt.s32.totalorder %v3773, 1
    %vm3793 = vcmp.lt.s32.totalorder %v3773, 2
    %vm3794 = vcmp.lt.s32.totalorder %v3773, 3
    %vm3795 = vcmp.lt.s32.totalorder %v3773, 4
    %v3796 = vsel %vm3792, %v3776, %v3779
    %v3797 = vsel %vm3795, %v3785, 2102212464
    %v3798 = vsel %vm3794, %v3782, %v3797
    %v3799 = vsel %vm3793, %v3796, %v3798
    %v3800 = vsel %vm3792, %v3779, %v3782
    %v3801 = vsel %vm3795, %v3788, 920167782
    %v3802 = vsel %vm3794, %v3785, %v3801
    %v3803 = vsel %vm3793, %v3800, %v3802
    %v3804 = vsel %vm3792, %v3782, %v3785
    %v3805 = vsel %vm3795, %v3791, 1326507024
    %v3806 = vsel %vm3794, %v3788, %v3805
    %v3807 = vsel %vm3793, %v3804, %v3806
    %v3808 = vshll.u32 %v3768, 8
    %v3809 = vmul.u32.u64.compose %v3808, %v3807
    %v3810 = vextract.low.u32 %v3809
    %v3811 = vextract.high.u32 %v3809
    %v3812 = vmul.u32.u64.compose %v3808, %v3803
    %v3813 = vextract.low.u32 %v3812
    %v3814 = vextract.high.u32 %v3812
    %v3815 = vmul.u32 %v3808, %v3799
    %v3816 = vadd.s32 %v3811, %v3813
    %vm3817 = vc.u32 %v3811, %v3813
    %v3818 = vadd.s32 %v3814, 1
    %v3819 = vsel %vm3817, %v3818, %v3814
    %v3820 = vadd.s32 %v3815, %v3819
    %v3821 = vadd.s32 %v3820, 536870912
    %v3822 = vshrl.u32 %v3821, 30
    %v3823 = vshll.u32 %v3822, 30
    %v3824 = vsub.s32 %v3820, %v3823
    %vm3825 = vcmp.lt.s32.totalorder %v3824, 0
    %v3826 = vsub.s32 0, %v3824
    %v3827 = vsel %vm3825, %v3826, %v3824
    %v3828 = vclz %v3827
    %v3829 = vsub.s32 %v3828, 2
    %vm3830 = vcmp.gt.s32.totalorder 0, %v3829
    %v3831 = vsel %vm3830, 0, %v3829
    %v3832 = vsub.s32 32, %v3831
    %v3833 = vshll.u32 %v3824, %v3831
    %v3834 = vshrl.u32 %v3816, %v3832
    %v3835 = vor.u32 %v3833, %v3834
    %v3836 = vsub.s32 4294967266, %v3831
    %v3837 = vadd.s32 %v3836, 127
    %v3838 = vshll.u32 %v3837, 23
    %v3839 = vor.u32 4788187, %v3838
    %v3840 = vand.u32 2147483647, %v3839
    %v3842 = vcvt.s32.f32 %v3835
    %v3843 = vmul.f32 %v3842, %v3840
    %v3844 = vxor.u32 %v3843, 2147483648
    %v3845 = vsel %vm3762, %v3844, %v3843
    %v3846 = vsub.s32 4, %v3822
    %v3847 = vsel %vm3762, %v3846, %v3822
    %v3848 = vsel %vm3761, %v3759, %v3845
    %v3849 = vsel %vm3761, 0, %v3847
    %v3850 = vcosq.f32.pop %v3848
    %v3851 = vsinq.f32.pop %v3848
    %vm3852 = vweird.f32 %v3759
    %v3853 = vand.u32 %v3849, 3
    %vm3854 = vcmp.lt.s32.totalorder %v3853, 2
    %vm3855 = vcmp.eq.s32.totalorder %v3853, 0
    %v3856 = vxor.u32 %v3851, 2147483648
    %v3857 = vsel %vm3855, %v3850, %v3856
    %vm3858 = vcmp.eq.s32.totalorder %v3853, 2
    %v3859 = vxor.u32 %v3850, 2147483648
    %v3860 = vsel %vm3858, %v3859, %v3851
    %v3861 = vsel %vm3854, %v3857, %v3860
    %v3862 = vsel %vm3852, nan, %v3861
    %v3863 = vand.u32 2147483647, %v3759
    %vm3864 = vcmp.le.f32.partialorder %v3863, 0.7853982
    %vm3865 = vcmp.lt.s32.totalorder %v3759, 0
    %v3866 = vand.u32 %v3759, 2139095040
    %v3867 = vshrl.u32 %v3866, 23
    %v3868 = vsub.s32 %v3867, 127
    %v3869 = vand.u32 2147483647, %v3759
    %v3870 = vand.u32 %v3869, 8388607
    %v3871 = vor.u32 %v3870, 8388608
    %v3872 = vsub.s32 0, %v3871
    %v3873 = vadd.s32 %v3868, 1
    %vm3874 = vcmp.gt.s32.totalorder %v3873, 0
    %v3875 = vsel %vm3874, %v3873, 0
    %v3876 = vshrl.u32 %v3875, 5
    %v3877 = vand.u32 %v3875, 31
    %v3878 = vsub.s32 32, %v3877
    %v3879 = vshrl.u32 683565275, %v3878
    %v3880 = vshll.u32 683565275, %v3877
    %v3881 = vshrl.u32 2475754826, %v3878
    %v3882 = vor.u32 %v3880, %v3881
    %v3883 = vshll.u32 2475754826, %v3877
    %v3884 = vshrl.u32 2131351028, %v3878
    %v3885 = vor.u32 %v3883, %v3884
    %v3886 = vshll.u32 2131351028, %v3877
    %v3887 = vshrl.u32 2102212464, %v3878
    %v3888 = vor.u32 %v3886, %v3887
    %v3889 = vshll.u32 2102212464, %v3877
    %v3890 = vshrl.u32 920167782, %v3878
    %v3891 = vor.u32 %v3889, %v3890
    %v3892 = vshll.u32 920167782, %v3877
    %v3893 = vshrl.u32 1326507024, %v3878
    %v3894 = vor.u32 %v3892, %v3893
    %vm3895 = vcmp.lt.s32.totalorder %v3876, 1
    %vm3896 = vcmp.lt.s32.totalorder %v3876, 2
    %vm3897 = vcmp.lt.s32.totalorder %v3876, 3
    %vm3898 = vcmp.lt.s32.totalorder %v3876, 4
    %v3899 = vsel %vm3895, %v3879, %v3882
    %v3900 = vsel %vm3898, %v3888, 2102212464
    %v3901 = vsel %vm3897, %v3885, %v3900
    %v3902 = vsel %vm3896, %v3899, %v3901
    %v3903 = vsel %vm3895, %v3882, %v3885
    %v3904 = vsel %vm3898, %v3891, 920167782
    %v3905 = vsel %vm3897, %v3888, %v3904
    %v3906 = vsel %vm3896, %v3903, %v3905
    %v3907 = vsel %vm3895, %v3885, %v3888
    %v3908 = vsel %vm3898, %v3894, 1326507024
    %v3909 = vsel %vm3897, %v3891, %v3908
    %v3910 = vsel %vm3896, %v3907, %v3909
    %v3911 = vshll.u32 %v3871, 8
    %v3912 = vmul.u32.u64.compose %v3911, %v3910
    %v3913 = vextract.low.u32 %v3912
    %v3914 = vextract.high.u32 %v3912
    %v3915 = vmul.u32.u64.compose %v3911, %v3906
    %v3916 = vextract.low.u32 %v3915
    %v3917 = vextract.high.u32 %v3915
    %v3918 = vmul.u32 %v3911, %v3902
    %v3919 = vadd.s32 %v3914, %v3916
    %vm3920 = vc.u32 %v3914, %v3916
    %v3921 = vadd.s32 %v3917, 1
    %v3922 = vsel %vm3920, %v3921, %v3917
    %v3923 = vadd.s32 %v3918, %v3922
    %v3924 = vadd.s32 %v3923, 536870912
    %v3925 = vshrl.u32 %v3924, 30
    %v3926 = vshll.u32 %v3925, 30
    %v3927 = vsub.s32 %v3923, %v3926
    %vm3928 = vcmp.lt.s32.totalorder %v3927, 0
    %v3929 = vsub.s32 0, %v3927
    %v3930 = vsel %vm3928, %v3929, %v3927
    %v3931 = vclz %v3930
    %v3932 = vsub.s32 %v3931, 2
    %vm3933 = vcmp.gt.s32.totalorder 0, %v3932
    %v3934 = vsel %vm3933, 0, %v3932
    %v3935 = vsub.s32 32, %v3934
    %v3936 = vshll.u32 %v3927, %v3934
    %v3937 = vshrl.u32 %v3919, %v3935
    %v3938 = vor.u32 %v3936, %v3937
    %v3939 = vsub.s32 4294967266, %v3934
    %v3940 = vadd.s32 %v3939, 127
    %v3941 = vshll.u32 %v3940, 23
    %v3942 = vor.u32 4788187, %v3941
    %v3943 = vand.u32 2147483647, %v3942
    %v3945 = vcvt.s32.f32 %v3938
    %v3946 = vmul.f32 %v3945, %v3943
    %v3947 = vxor.u32 %v3946, 2147483648
    %v3948 = vsel %vm3865, %v3947, %v3946
    %v3949 = vsub.s32 4, %v3925
    %v3950 = vsel %vm3865, %v3949, %v3925
    %v3951 = vsel %vm3864, %v3759, %v3948
    %v3952 = vsel %vm3864, 0, %v3950
    %v3953 = vcosq.f32.pop %v3951
    %v3954 = vsinq.f32.pop %v3951
    %vm3955 = vweird.f32 %v3759
    %v3956 = vadd.s32 %v3952, 3
    %v3957 = vand.u32 %v3956, 3
    %vm3958 = vcmp.lt.s32.totalorder %v3957, 2
    %vm3959 = vcmp.eq.s32.totalorder %v3957, 0
    %v3960 = vxor.u32 %v3954, 2147483648
    %v3961 = vsel %vm3959, %v3953, %v3960
    %vm3962 = vcmp.eq.s32.totalorder %v3957, 2
    %v3963 = vxor.u32 %v3953, 2147483648
    %v3964 = vsel %vm3962, %v3963, %v3954
    %v3965 = vsel %vm3958, %v3961, %v3964
    %v3966 = vsel %vm3955, nan, %v3965
    %3968 = vset.pattern.permute.xlu0 0
    %3969 = vperm.xlu0 %3968, %v3862
    %v3970 = vpop.permute.xlu0 %3969
    %v3972 = vmul.f32 %v3970, %v79
    %3974 = vset.pattern.permute.xlu0 0
    %3975 = vperm.xlu0 %3974, %v3966
    %v3976 = vpop.permute.xlu0 %3975
    %v3978 = vmul.f32 %v3976, %v66
    %v3979 = vadd.f32 %v3972, %v3978
    %3980 = vset.pattern.permute.xlu0 1
    %3981 = vperm.xlu0 %3980, %v3862
    %v3982 = vpop.permute.xlu0 %3981
    %v3984 = vmul.f32 %v3982, %v80
    %3985 = vset.pattern.permute.xlu0 1
    %3986 = vperm.xlu0 %3985, %v3966
    %v3987 = vpop.permute.xlu0 %3986
    %v3989 = vmul.f32 %v3987, %v70
    %v3990 = vadd.f32 %v3984, %v3989
    %3991 = vset.pattern.permute.xlu0 2
    %3992 = vperm.xlu0 %3991, %v3862
    %v3993 = vpop.permute.xlu0 %3992
    %v3995 = vmul.f32 %v3993, %v81
    %3996 = vset.pattern.permute.xlu0 2
    %3997 = vperm.xlu0 %3996, %v3966
    %v3998 = vpop.permute.xlu0 %3997
    %v4000 = vmul.f32 %v3998, %v74
    %v4001 = vadd.f32 %v3995, %v4000
    %4002 = vset.pattern.permute.xlu0 3
    %4003 = vperm.xlu0 %4002, %v3862
    %v4004 = vpop.permute.xlu0 %4003
    %v4006 = vmul.f32 %v4004, %v82
    %4007 = vset.pattern.permute.xlu0 3
    %4008 = vperm.xlu0 %4007, %v3966
    %v4009 = vpop.permute.xlu0 %4008
    %v4011 = vmul.f32 %v4009, %v78
    %v4012 = vadd.f32 %v4006, %v4011
    %v4013 = vmul.f32 %v3979, %v3990
    %v4014 = vmul.f32 %v4001, %v4012
    %v4015 = vmul.f32 %v4013, %v4014
    %v4017 = vsel %vm417, %v4015, 0
    %4019 = vmatprep.subr.mxu0 0.0
    %4020 = vmatpush1.msra.mxu0 %v50
    %4021 = vmatprep.subr.mxu0 0.0
    %4022 = vmatpush1.msra.mxu0 %v51
    %4023 = vmatprep.subr.mxu0 0.0
    %4024 = vmatpush1.msra.mxu0 0.0
    %4025 = vmatprep.subr.mxu0 0.0
    %4026 = vmatpush1.msra.mxu0 0.0
    %4027 = vmatprep.subr.mxu0 0.0
    %4028 = vmatpush1.msra.mxu0 0.0
    %4029 = vmatprep.subr.mxu0 0.0
    %4030 = vmatpush1.msra.mxu0 0.0
    %4031 = vmatprep.subr.mxu0 0.0
    %4032 = vmatpush1.msra.mxu0 0.0
    %4033 = vmatprep.subr.mxu0 0.0
    %4034 = vmatpush1.msra.mxu0 0.0
    %4035 = vmatprep.subr.mxu0 0.0
    %4036 = vmatpush1.msra.mxu0 0.0
    %4037 = vmatprep.subr.mxu0 0.0
    %4038 = vmatpush1.msra.mxu0 0.0
    %4039 = vmatprep.subr.mxu0 0.0
    %4040 = vmatpush1.msra.mxu0 0.0
    %4041 = vmatprep.subr.mxu0 0.0
    %4042 = vmatpush1.msra.mxu0 0.0
    %4043 = vmatprep.subr.mxu0 0.0
    %4044 = vmatpush1.msra.mxu0 0.0
    %4045 = vmatprep.subr.mxu0 0.0
    %4046 = vmatpush1.msra.mxu0 0.0
    %4047 = vmatprep.subr.mxu0 0.0
    %4048 = vmatpush1.msra.mxu0 0.0
    %4049 = vmatprep.subr.mxu0 0.0
    %4050 = vmatpush1.msra.mxu0 0.0
    %4051 = vmatprep.subr.mxu0 0.0
    %4052 = vmatpush1.msra.mxu0 0.0
    %4053 = vmatprep.subr.mxu0 0.0
    %4054 = vmatpush1.msra.mxu0 0.0
    %4055 = vmatprep.subr.mxu0 0.0
    %4056 = vmatpush1.msra.mxu0 0.0
    %4057 = vmatprep.subr.mxu0 0.0
    %4058 = vmatpush1.msra.mxu0 0.0
    %4059 = vmatprep.subr.mxu0 0.0
    %4060 = vmatpush1.msra.mxu0 0.0
    %4061 = vmatprep.subr.mxu0 0.0
    %4062 = vmatpush1.msra.mxu0 0.0
    %4063 = vmatprep.subr.mxu0 0.0
    %4064 = vmatpush1.msra.mxu0 0.0
    %4065 = vmatprep.subr.mxu0 0.0
    %4066 = vmatpush1.msra.mxu0 0.0
    %4067 = vmatprep.subr.mxu0 0.0
    %4068 = vmatpush1.msra.mxu0 0.0
    %4069 = vmatprep.subr.mxu0 0.0
    %4070 = vmatpush1.msra.mxu0 0.0
    %4071 = vmatprep.subr.mxu0 0.0
    %4072 = vmatpush1.msra.mxu0 0.0
    %4073 = vmatprep.subr.mxu0 0.0
    %4074 = vmatpush1.msra.mxu0 0.0
    %4075 = vmatprep.subr.mxu0 0.0
    %4076 = vmatpush1.msra.mxu0 0.0
    %4077 = vmatprep.subr.mxu0 0.0
    %4078 = vmatpush1.msra.mxu0 0.0
    %4079 = vmatprep.subr.mxu0 0.0
    %4080 = vmatpush1.msra.mxu0 0.0
    %4081 = vmatprep.subr.mxu0 0.0
    %4082 = vmatpush1.msra.mxu0 0.0
    %4083 = vmatprep.mubr.f32.mxu0 0.0
    %4084 = vmatmul.mubr.f32.gmra.mrb[0].mxu0 %v4017
    %v4085 = vpop.f32.mrb[0].mxu0
    %v4086 = vadd.f32 0.0, %v4085
    %v4087 = vpop.f32.mrb[0].mxu0
    %4088 = vdwg.mxu0
    %v4089 = vmul.f32 %v4086, %v4086
    %4091 = vrot.lane.b32.xlu0 %v4089, 64
    %v4092 = vpop.permute.xlu0 %4091
    %v4094 = vadd.f32 %v4089, %v4092
    %v4096 = vsel %vm503, %v4094, 0
    %4098 = vmatprep.subr.mxu0 0.0
    %4099 = vmatpush1.msra.mxu0 %v52
    %4100 = vmatprep.subr.mxu0 0.0
    %4101 = vmatpush1.msra.mxu0 %v53
    %4102 = vmatprep.subr.mxu0 0.0
    %4103 = vmatpush1.msra.mxu0 %v54
    %4104 = vmatprep.subr.mxu0 0.0
    %4105 = vmatpush1.msra.mxu0 %v55
    %4106 = vmatprep.subr.mxu0 0.0
    %4107 = vmatpush1.msra.mxu0 %v56
    %4108 = vmatprep.subr.mxu0 0.0
    %4109 = vmatpush1.msra.mxu0 %v57
    %4110 = vmatprep.subr.mxu0 0.0
    %4111 = vmatpush1.msra.mxu0 %v58
    %4112 = vmatprep.subr.mxu0 0.0
    %4113 = vmatpush1.msra.mxu0 %v59
    %4114 = vmatprep.subr.mxu0 0.0
    %4115 = vmatpush1.msra.mxu0 0.0
    %4116 = vmatprep.subr.mxu0 0.0
    %4117 = vmatpush1.msra.mxu0 0.0
    %4118 = vmatprep.subr.mxu0 0.0
    %4119 = vmatpush1.msra.mxu0 0.0
    %4120 = vmatprep.subr.mxu0 0.0
    %4121 = vmatpush1.msra.mxu0 0.0
    %4122 = vmatprep.subr.mxu0 0.0
    %4123 = vmatpush1.msra.mxu0 0.0
    %4124 = vmatprep.subr.mxu0 0.0
    %4125 = vmatpush1.msra.mxu0 0.0
    %4126 = vmatprep.subr.mxu0 0.0
    %4127 = vmatpush1.msra.mxu0 0.0
    %4128 = vmatprep.subr.mxu0 0.0
    %4129 = vmatpush1.msra.mxu0 0.0
    %4130 = vmatprep.subr.mxu0 0.0
    %4131 = vmatpush1.msra.mxu0 0.0
    %4132 = vmatprep.subr.mxu0 0.0
    %4133 = vmatpush1.msra.mxu0 0.0
    %4134 = vmatprep.subr.mxu0 0.0
    %4135 = vmatpush1.msra.mxu0 0.0
    %4136 = vmatprep.subr.mxu0 0.0
    %4137 = vmatpush1.msra.mxu0 0.0
    %4138 = vmatprep.subr.mxu0 0.0
    %4139 = vmatpush1.msra.mxu0 0.0
    %4140 = vmatprep.subr.mxu0 0.0
    %4141 = vmatpush1.msra.mxu0 0.0
    %4142 = vmatprep.subr.mxu0 0.0
    %4143 = vmatpush1.msra.mxu0 0.0
    %4144 = vmatprep.subr.mxu0 0.0
    %4145 = vmatpush1.msra.mxu0 0.0
    %4146 = vmatprep.subr.mxu0 0.0
    %4147 = vmatpush1.msra.mxu0 0.0
    %4148 = vmatprep.subr.mxu0 0.0
    %4149 = vmatpush1.msra.mxu0 0.0
    %4150 = vmatprep.subr.mxu0 0.0
    %4151 = vmatpush1.msra.mxu0 0.0
    %4152 = vmatprep.subr.mxu0 0.0
    %4153 = vmatpush1.msra.mxu0 0.0
    %4154 = vmatprep.subr.mxu0 0.0
    %4155 = vmatpush1.msra.mxu0 0.0
    %4156 = vmatprep.subr.mxu0 0.0
    %4157 = vmatpush1.msra.mxu0 0.0
    %4158 = vmatprep.subr.mxu0 0.0
    %4159 = vmatpush1.msra.mxu0 0.0
    %4160 = vmatprep.subr.mxu0 0.0
    %4161 = vmatpush1.msra.mxu0 0.0
    %4162 = vmatprep.mubr.f32.mxu0 0.0
    %4163 = vmatmul.mubr.f32.gmra.mrb[0].mxu0 %v4096
    %v4164 = vpop.f32.mrb[0].mxu0
    %v4165 = vadd.f32 %v501, %v4164
    %v4166 = vpop.f32.mrb[0].mxu0
    %4167 = vdwg.mxu0
    %v4168 = vxor.u32 %v4165, 2147483648
    %v4169 = vmul.f32 %v4168, 1.442695
    %v4170 = vpow.pop %v4169
    %v4171 = vadd.f32 %v4170, 1.0
    %v4172 = vrcp.pop %v4171
    %v4173 = vmul.f32 1.0, %v4172
    %v4174 = vtanh.pop %v4165
    %v4175 = vmul.f32 %v4173, %v3672
    %4177 = vrot.lane.b32.xlu0 %v4174, 96
    %v4178 = vpop.permute.xlu0 %4177
    %v4180 = vmul.f32 %v4173, %v4178
    %4182 = vrot.lane.b32.xlu0 %v4180, 96
    %v4183 = vpop.permute.xlu0 %4182
    %v4185 = vadd.f32 %v4175, %v4183
    %v4186 = vtanh.pop %v4185
    %4188 = vrot.lane.b32.xlu0 %v4186, 96
    %v4189 = vpop.permute.xlu0 %4188
    %v4191 = vmul.f32 %v4173, %v4189
    %4193 = vrot.lane.b32.xlu0 %v4191, 32
    %v4194 = vpop.permute.xlu0 %4193
    %s4196 = scalar_lea.vmem [#allocation7], 14
    %4197 = vst.msk [vmem:[%s4196] sm:$0x3] %vm605, %v4194
    %4198 = vst.msk [vmem:[#allocation2] sm:$0x3] %vm605, %v4194
    %4199 = vst.msk [vmem:[#allocation3] sm:$0x3] %vm605, %v4185
    // Predicated region
    $region30: #{tpu_custom_call.1} parent=1 // pred_check
      %p4200 = pneg %p39
    $region31: #{tpu_custom_call.1} parent=1 // pred_check_branch
      %4202 = sbr.rel (%p4200) target = $region33
    $region32: #{tpu_custom_call.1} parent=1 // pred_region
      %4203 = vst.msk [vmem:[#allocation8] sm:$0x3] %vm605, %v4194
      %4204 = vst.msk [vmem:[#allocation10] sm:$0x3] %vm605, %v4185
    $region33: #{tpu_custom_call.1} parent=1 // pred_fallthru
      _
    // Predicated region
    $region34: #{tpu_custom_call.1} parent=1 // pred_check
      _
    $region35: #{tpu_custom_call.1} parent=1 // pred_check_branch
      %4206 = sbr.rel (0) target = $region37
    $region36: #{tpu_custom_call.1} parent=1 // pred_region
      %s4208 = ssub.s32 256, 256
      %4209 = vsyncadd [#allocation6], %s4208
      %s4210 = sshll.u32 [#allocation7], 4
      %s4211 = int_to_ptr.vmem [resolvable:$true] %s4210
      %4216 = dma.vmem_to_hbm [thread:$0]  %s4211, 256, %s5, [#allocation6], 32, 32, 2
    $region37: #{tpu_custom_call.1} parent=1 // pred_fallthru
      _
    // Predicated region
    $region38: #{tpu_custom_call.1} parent=1 // pred_check
      _
    $region39: #{tpu_custom_call.1} parent=1 // pred_check_branch
      %4218 = sbr.rel (0) target = $region41
    $region40: #{tpu_custom_call.1} parent=1 // pred_region
      %s4220 = ssub.s32 32, 32
      %4221 = vsyncadd [#allocation9], %s4220
      %s4223 = sshll.u32 [#allocation8], 4
      %s4224 = int_to_ptr.vmem [resolvable:$true] %s4223
      %4226 = dma.vmem_to_hbm [thread:$0]  %s4224, 32, %s6, [#allocation9]
    $region41: #{tpu_custom_call.1} parent=1 // pred_fallthru
      _
    // Predicated region
    $region42: #{tpu_custom_call.1} parent=1 // pred_check
      _
    $region43: #{tpu_custom_call.1} parent=1 // pred_check_branch
      %4228 = sbr.rel (0) target = $region45
    $region44: #{tpu_custom_call.1} parent=1 // pred_region
      %s4230 = ssub.s32 32, 32
      %4231 = vsyncadd [#allocation9], %s4230
      %s4233 = sshll.u32 [#allocation10], 4
      %s4234 = int_to_ptr.vmem [resolvable:$true] %s4233
      %4236 = dma.vmem_to_hbm [thread:$0]  %s4234, 32, %s7, [#allocation9]
    $region45: #{tpu_custom_call.1} parent=1 // pred_fallthru
      _
    // Predicated region
    $region46: #{tpu_custom_call.1} parent=1 // pred_check
      _
    $region47: #{tpu_custom_call.1} parent=1 // pred_check_branch
      %4238 = sbr.rel (0) target = $region49
    $region48: #{tpu_custom_call.1} parent=1 // pred_region
      %4239 = dma.done [#allocation6], 256
    $region49: #{tpu_custom_call.1} parent=1 // pred_fallthru
      _
    // Predicated region
    $region50: #{tpu_custom_call.1} parent=1 // pred_check
      _
    $region51: #{tpu_custom_call.1} parent=1 // pred_check_branch
      %4241 = sbr.rel (0) target = $region53
    $region52: #{tpu_custom_call.1} parent=1 // pred_region
      %4242 = dma.done [#allocation9], 32
    $region53: #{tpu_custom_call.1} parent=1 // pred_fallthru
      _
    // Predicated region
    $region54: #{tpu_custom_call.1} parent=1 // pred_check
      _
    $region55: #{tpu_custom_call.1} parent=1 // pred_check_branch
      %4244 = sbr.rel (0) target = $region57
    $region56: #{tpu_custom_call.1} parent=1 // pred_region
      %4245 = dma.done [#allocation9], 32
    $region57: #{tpu_custom_call.1} parent=1 // pred_fallthru
      _
    %4246 = vsyncpa [#allocation5], 1
    %4247 = vsyncpa [#allocation6], 1
    %4248 = vsyncpa [#allocation9], 1

</llo_original>
